<compile_context>
chip_gen: v7x
topology: tpu7x:2x2x1
jax: 0.10.0
libtpu: 0.0.40
codegen_flags: <defaults>
</compile_context>

<pallas_src>
import functools
import math

import jax
import jax.numpy as jnp
from jax import lax
from jax.experimental import pallas as pl
from jax.experimental.pallas import tpu as pltpu


# ------------------------- in-kernel building blocks -------------------------

def _layer_norm(x, gamma, beta, eps=1e-5):
    # F.layer_norm over the last dim (biased variance), eps=1e-5; f32 math.
    mu = jnp.mean(x, axis=-1, keepdims=True)
    var = jnp.mean((x - mu) ** 2, axis=-1, keepdims=True)
    return (x - mu) * lax.rsqrt(var + eps) * gamma + beta


def _mm(a, w_bf16):
    # bf16 MXU operands, f32 accumulation.
    return jnp.dot(a.astype(jnp.bfloat16), w_bf16,
                   preferred_element_type=jnp.float32)


def _mha(q, k, v, wo, bo, mask_bias, n_head, o_scratch):
    """Multi-head attention core.

    q: (Tq, D) f32, already scaled by 1/sqrt(d_k).  k, v: (Tk, D) f32.
    Head outputs are written into the (Tq, D) VMEM scratch so the output
    projection is a single D-wide matmul (concat-heads @ Wo) instead of
    n_head small serialized accumulations.
    """
    d = q.shape[-1]
    d_k = d // n_head
    qb = q.astype(jnp.bfloat16)
    kb = k.astype(jnp.bfloat16)
    vb = v.astype(jnp.bfloat16)

    for h in range(n_head):                       # small static head count
        sl = slice(h * d_k, (h + 1) * d_k)
        # scores = q_h @ k_h^T  (contract feature dim; f32 accumulation)
        s = lax.dot_general(qb[:, sl], kb[:, sl], (((1,), (1,)), ((), ())),
                            preferred_element_type=jnp.float32)     # (Tq, Tk)
        if mask_bias is not None:                 # mask built once, outside loop
            s = s + mask_bias
        s = s - jnp.max(s, axis=-1, keepdims=True)
        p = jnp.exp(s)
        p = p * pl.reciprocal(jnp.sum(p, axis=-1, keepdims=True), approx=True)
        o_scratch[:, sl] = jnp.dot(p.astype(jnp.bfloat16), vb[:, sl],
                                   preferred_element_type=jnp.float32)

    o = o_scratch[...]                             # (Tq, D) f32, all heads
    return _mm(o, wo) + bo                         # single (Tq,D)@(D,D) proj


# --------------------------------- kernel ------------------------------------

def _decoder_layer_kernel(n_head, tq,
                          x_ref, enc_ref,
                          g1_ref, be1_ref, wqkv1_ref, bqkv1_ref, wo1_ref, bo1_ref,
                          g2_ref, be2_ref, wq2_ref, bq2_ref, wkv2_ref, bkv2_ref,
                          wo2_ref, bo2_ref,
                          g3_ref, be3_ref, w1_ref, bf1_ref, w2_ref, bf2_ref,
                          out_ref, attn_scratch):
    T = x_ref.shape[1]
    D = out_ref.shape[2]
    d_k = D // n_head
    scale = 1.0 / math.sqrt(d_k)

    qi = pl.program_id(1)
    q0 = pl.multiple_of(qi * tq, tq)

    x_all = x_ref[0]                               # (T, D)  full decoder seq
    x_q = x_ref[0, pl.ds(q0, tq), :]               # (tq, D) this query tile
    enc = enc_ref[0]                               # (S, D)  encoder output

    # ---- stage 1: norm1 + causal self-attention + residual -------------------
    # (residual uses the *normed* x, matching the PyTorch forward)
    x1_all = _layer_norm(x_all, g1_ref[...], be1_ref[...])   # K/V source (full seq)
    x1_q = _layer_norm(x_q, g1_ref[...], be1_ref[...])       # Q source + residual

    # fused QKV weight (D, 3D): Q on the query tile, K|V in one wide matmul
    # over the full sequence.
    q1 = (_mm(x1_q, wqkv1_ref[:, :D]) + bqkv1_ref[:, :D]) * scale     # (tq, D)
    kv1 = _mm(x1_all, wqkv1_ref[:, D:]) + bqkv1_ref[:, D:]            # (T, 2D)
    k1, v1 = kv1[:, :D], kv1[:, D:]

    # causal mask bias built once per query tile (hoisted out of the head loop)
    rows = lax.broadcasted_iota(jnp.int32, (tq, T), 0) + q0
    cols = lax.broadcasted_iota(jnp.int32, (tq, T), 1)
    mask_bias = jnp.where(cols > rows, -jnp.inf, 0.0).astype(jnp.float32)

    attn1 = _mha(q1, k1, v1, wo1_ref[...], bo1_ref[...],
                 mask_bias, n_head, attn_scratch)
    x = x1_q + attn1                                                   # (tq, D)

    # ---- stage 2: norm2 + cross-attention over encoder output + residual -----
    x2 = _layer_norm(x, g2_ref[...], be2_ref[...])
    q2 = (_mm(x2, wq2_ref[...]) + bq2_ref[...]) * scale                # (tq, D)
    kv2 = _mm(enc, wkv2_ref[...]) + bkv2_ref[...]                      # (S, 2D)
    k2, v2 = kv2[:, :D], kv2[:, D:]
    attn2 = _mha(q2, k2, v2, wo2_ref[...], bo2_ref[...],
                 None, n_head, attn_scratch)
    x = x2 + attn2

    # ---- stage 3: norm3 + feed-forward (D -> 4D -> D, ReLU) + residual -------
    x3 = _layer_norm(x, g3_ref[...], be3_ref[...])
    h = jnp.maximum(_mm(x3, w1_ref[...]) + bf1_ref[...], 0.0)          # (tq, 4D)
    y = _mm(h, w2_ref[...]) + bf2_ref[...]                             # (tq, D)

    out_ref[0] = x3 + y                            # lane-dense (tq, D) store


# ------------------------------- host wrapper ---------------------------------

def _param_layout(D):
    # Unfused "PyTorch-style" parameter set (weights stored as (in, out)).
    return [
        ("g1", (1, D)), ("be1", (1, D)),
        ("wq1", (D, D)), ("bq1", (1, D)), ("wk1", (D, D)), ("bk1", (1, D)),
        ("wv1", (D, D)), ("bv1", (1, D)), ("wo1", (D, D)), ("bo1", (1, D)),
        ("g2", (1, D)), ("be2", (1, D)),
        ("wq2", (D, D)), ("bq2", (1, D)), ("wk2", (D, D)), ("bk2", (1, D)),
        ("wv2", (D, D)), ("bv2", (1, D)), ("wo2", (D, D)), ("bo2", (1, D)),
        ("g3", (1, D)), ("be3", (1, D)),
        ("w1", (D, 4 * D)), ("bf1", (1, 4 * D)),
        ("w2", (4 * D, D)), ("bf2", (1, D)),
    ]


def _fuse_params(p):
    """Fuse QKV / KV weights and cast matmul weights to bf16 (biases/LN f32)."""
    bf16, f32 = jnp.bfloat16, jnp.float32
    return [
        p["g1"].astype(f32), p["be1"].astype(f32),
        jnp.concatenate([p["wq1"], p["wk1"], p["wv1"]], axis=1).astype(bf16),
        jnp.concatenate([p["bq1"], p["bk1"], p["bv1"]], axis=1).astype(f32),
        p["wo1"].astype(bf16), p["bo1"].astype(f32),
        p["g2"].astype(f32), p["be2"].astype(f32),
        p["wq2"].astype(bf16), p["bq2"].astype(f32),
        jnp.concatenate([p["wk2"], p["wv2"]], axis=1).astype(bf16),
        jnp.concatenate([p["bk2"], p["bv2"]], axis=1).astype(f32),
        p["wo2"].astype(bf16), p["bo2"].astype(f32),
        p["g3"].astype(f32), p["be3"].astype(f32),
        p["w1"].astype(bf16), p["bf1"].astype(f32),
        p["w2"].astype(bf16), p["bf2"].astype(f32),
    ]


def decoder_layer(x, enc_out, params, n_head, q_block=None):
    B, T, D = x.shape
    S = enc_out.shape[1]
    assert D % n_head == 0
    if q_block is None:
        q_block = T                    # single q-tile: no redundant K/V recompute
    assert T % q_block == 0
    assert q_block == T or q_block % 8 == 0
    nq = T // q_block

    kparams = _fuse_params(params)

    in_specs = [
        # full decoder sequence for batch b (self-attn K/V need all rows);
        # block index is constant across the q-tile axis so it is DMA'd once.
        pl.BlockSpec((1, T, D), lambda b, qi: (b, 0, 0)),
        # full encoder sequence for batch b (cross-attn K/V)
        pl.BlockSpec((1, S, D), lambda b, qi: (b, 0, 0)),
    ] + [
        pl.BlockSpec(p.shape, lambda b, qi: (0, 0)) for p in kparams  # weights
    ]

    return pl.pallas_call(
        functools.partial(_decoder_layer_kernel, n_head, q_block),
        out_shape=jax.ShapeDtypeStruct((B, T, D), jnp.float32),
        grid=(B, nq),
        in_specs=in_specs,
        out_specs=pl.BlockSpec((1, q_block, D), lambda b, qi: (b, qi, 0)),
        scratch_shapes=[pltpu.VMEM((q_block, D), jnp.float32)],
        compiler_params=pltpu.CompilerParams(
            dimension_semantics=("parallel", "parallel"),
        ),
    )(x, enc_out, *kparams)


def init_params(key, D):
    layout = _param_layout(D)
    keys = jax.random.split(key, len(layout))
    params = {}
    for (name, shape), k in zip(layout, keys):
        if name.startswith("g"):                       # LayerNorm gamma
            params[name] = jnp.ones(shape, jnp.float32)
        elif name.startswith("w"):                     # linear weights
            params[name] = 0.05 * jax.random.normal(k, shape, jnp.float32)
        else:                                          # biases / beta
            params[name] = 0.01 * jax.random.normal(k, shape, jnp.float32)
    return params


# -------------------------- pure-JAX reference (check) ------------------------

def decoder_layer_ref(x, enc, p, n_head, matmul_dtype=jnp.float32):
    """Reference matching the PyTorch forward; matmul operands are cast to
    `matmul_dtype` (f32 accumulation) to mirror the kernel's mixed precision."""

    def mm(a, b):
        return jnp.dot(a.astype(matmul_dtype), b.astype(matmul_dtype),
                       preferred_element_type=jnp.float32)

    def ln(a, g, b):
        mu = jnp.mean(a, -1, keepdims=True)
        var = jnp.mean((a - mu) ** 2, -1, keepdims=True)
        return (a - mu) / jnp.sqrt(var + 1e-5) * g + b

    def mha(q_in, kv, wq, bq, wk, bk, wv, bv, wo, bo, causal):
        B, Tq, D = q_in.shape
        Tk = kv.shape[1]
        dk = D // n_head
        q = (mm(q_in, wq) + bq) * (1.0 / math.sqrt(dk))
        k = mm(kv, wk) + bk
        v = mm(kv, wv) + bv
        q = q.reshape(B, Tq, n_head, dk).transpose(0, 2, 1, 3)
        k = k.reshape(B, Tk, n_head, dk).transpose(0, 2, 1, 3)
        v = v.reshape(B, Tk, n_head, dk).transpose(0, 2, 1, 3)
        s = jnp.einsum('bhqd,bhkd->bhqk', q.astype(matmul_dtype),
                       k.astype(matmul_dtype),
                       preferred_element_type=jnp.float32)
        if causal:
            mask = jnp.triu(jnp.ones((Tq, Tk)), 1)
            s = jnp.where(mask == 1, -jnp.inf, s)
        a = jax.nn.softmax(s, axis=-1)
        o = jnp.einsum('bhqk,bhkd->bhqd', a.astype(matmul_dtype),
                       v.astype(matmul_dtype),
                       preferred_element_type=jnp.float32)
        o = o.transpose(0, 2, 1, 3).reshape(B, Tq, D)
        return mm(o, wo) + bo

    x = ln(x, p["g1"], p["be1"])
    x = x + mha(x, x, p["wq1"], p["bq1"], p["wk1"], p["bk1"],
                p["wv1"], p["bv1"], p["wo1"], p["bo1"], True)
    x = ln(x, p["g2"], p["be2"])
    x = x + mha(x, enc, p["wq2"], p["bq2"], p["wk2"], p["bk2"],
                p["wv2"], p["bv2"], p["wo2"], p["bo2"], False)
    x = ln(x, p["g3"], p["be3"])
    h = jax.nn.relu(mm(x, p["w1"]) + p["bf1"])
    return x + mm(h, p["w2"]) + p["bf2"]


# ----------------------------------- main -------------------------------------

if __name__ == "__main__":
    # Lane-dense config: D multiple of 128, grid = (B, T // q_block).
    B, T, S, D, H = 2, 32, 16, 128, 4          # batch, dec seq, enc seq, n_embd, heads

    key = jax.random.PRNGKey(0)
    kx, ke, kp = jax.random.split(key, 3)
    x = jax.random.normal(kx, (B, T, D), jnp.float32)
    enc_out = jax.random.normal(ke, (B, S, D), jnp.float32)
    params = init_params(kp, D)

    # References: same bf16-operand / f32-accumulate matmul precision as the
    # kernel (primary check), and full-f32 (coarse sanity check).
    ref_mixed = decoder_layer_ref(x, enc_out, params, H, matmul_dtype=jnp.bfloat16)
    ref_f32 = decoder_layer_ref(x, enc_out, params, H, matmul_dtype=jnp.float32)

    # Check both the single-tile path (q_block = T) and the q-tiled path.
    for q_block in (T, 8):
        out = jax.block_until_ready(
            decoder_layer(x, enc_out, params, H, q_block=q_block))
        assert out.shape == (B, T, D)

        err = float(jnp.max(jnp.abs(out - ref_mixed)))
        assert err < 5e-2, f"q_block={q_block}: mismatch vs bf16 reference: {err}"

        err32 = float(jnp.max(jnp.abs(out - ref_f32)))
        assert err32 < 0.25, f"q_block={q_block}: mismatch vs f32 reference: {err32}"

    # TODO(synk): dropout layers are identity (p=0.0 / eval mode); stochastic
    # dropout would need pltpu.prng_* if required.
    print("KERNEL_OK")
</pallas_src>

<mosaic_0001>
module attributes {stable_mosaic.version = 11 : i64} {
  func.func @_decoder_layer_kernel(%arg0: i32, %arg1: i32, %arg2: memref<1x32x128xf32, #tpu.memory_space<vmem>>, %arg3: memref<1x16x128xf32, #tpu.memory_space<vmem>>, %arg4: memref<1x128xf32, #tpu.memory_space<vmem>>, %arg5: memref<1x128xf32, #tpu.memory_space<vmem>>, %arg6: memref<128x384xbf16, #tpu.memory_space<vmem>>, %arg7: memref<1x384xf32, #tpu.memory_space<vmem>>, %arg8: memref<128x128xbf16, #tpu.memory_space<vmem>>, %arg9: memref<1x128xf32, #tpu.memory_space<vmem>>, %arg10: memref<1x128xf32, #tpu.memory_space<vmem>>, %arg11: memref<1x128xf32, #tpu.memory_space<vmem>>, %arg12: memref<128x128xbf16, #tpu.memory_space<vmem>>, %arg13: memref<1x128xf32, #tpu.memory_space<vmem>>, %arg14: memref<128x256xbf16, #tpu.memory_space<vmem>>, %arg15: memref<1x256xf32, #tpu.memory_space<vmem>>, %arg16: memref<128x128xbf16, #tpu.memory_space<vmem>>, %arg17: memref<1x128xf32, #tpu.memory_space<vmem>>, %arg18: memref<1x128xf32, #tpu.memory_space<vmem>>, %arg19: memref<1x128xf32, #tpu.memory_space<vmem>>, %arg20: memref<128x512xbf16, #tpu.memory_space<vmem>>, %arg21: memref<1x512xf32, #tpu.memory_space<vmem>>, %arg22: memref<512x128xbf16, #tpu.memory_space<vmem>>, %arg23: memref<1x128xf32, #tpu.memory_space<vmem>>, %arg24: memref<1x32x128xf32, #tpu.memory_space<vmem>>, %arg25: memref<32x128xf32, #tpu.memory_space<vmem>>) attributes {dimension_semantics = [#tpu.dimension_semantics<parallel>, #tpu.dimension_semantics<parallel>], iteration_bounds = array<i64: 2, 1>, scalar_prefetch = 0 : i64, scratch_operands = 1 : i64, tpu.core_type = #tpu.core_type<tc>, window_params = [{transform_indices = @transform_0, window_bounds = array<i64: 1, 32, 128>}, {transform_indices = @transform_1, window_bounds = array<i64: 1, 16, 128>}, {pipeline_mode = #tpu.pipeline_mode<synchronous>, transform_indices = @transform_2, window_bounds = array<i64: 1, 128>}, {pipeline_mode = #tpu.pipeline_mode<synchronous>, transform_indices = @transform_3, window_bounds = array<i64: 1, 128>}, {pipeline_mode = #tpu.pipeline_mode<synchronous>, transform_indices = @transform_4, window_bounds = array<i64: 128, 384>}, {pipeline_mode = #tpu.pipeline_mode<synchronous>, transform_indices = @transform_5, window_bounds = array<i64: 1, 384>}, {pipeline_mode = #tpu.pipeline_mode<synchronous>, transform_indices = @transform_6, window_bounds = array<i64: 128, 128>}, {pipeline_mode = #tpu.pipeline_mode<synchronous>, transform_indices = @transform_7, window_bounds = array<i64: 1, 128>}, {pipeline_mode = #tpu.pipeline_mode<synchronous>, transform_indices = @transform_8, window_bounds = array<i64: 1, 128>}, {pipeline_mode = #tpu.pipeline_mode<synchronous>, transform_indices = @transform_9, window_bounds = array<i64: 1, 128>}, {pipeline_mode = #tpu.pipeline_mode<synchronous>, transform_indices = @transform_10, window_bounds = array<i64: 128, 128>}, {pipeline_mode = #tpu.pipeline_mode<synchronous>, transform_indices = @transform_11, window_bounds = array<i64: 1, 128>}, {pipeline_mode = #tpu.pipeline_mode<synchronous>, transform_indices = @transform_12, window_bounds = array<i64: 128, 256>}, {pipeline_mode = #tpu.pipeline_mode<synchronous>, transform_indices = @transform_13, window_bounds = array<i64: 1, 256>}, {pipeline_mode = #tpu.pipeline_mode<synchronous>, transform_indices = @transform_14, window_bounds = array<i64: 128, 128>}, {pipeline_mode = #tpu.pipeline_mode<synchronous>, transform_indices = @transform_15, window_bounds = array<i64: 1, 128>}, {pipeline_mode = #tpu.pipeline_mode<synchronous>, transform_indices = @transform_16, window_bounds = array<i64: 1, 128>}, {pipeline_mode = #tpu.pipeline_mode<synchronous>, transform_indices = @transform_17, window_bounds = array<i64: 1, 128>}, {pipeline_mode = #tpu.pipeline_mode<synchronous>, transform_indices = @transform_18, window_bounds = array<i64: 128, 512>}, {pipeline_mode = #tpu.pipeline_mode<synchronous>, transform_indices = @transform_19, window_bounds = array<i64: 1, 512>}, {pipeline_mode = #tpu.pipeline_mode<synchronous>, transform_indices = @transform_20, window_bounds = array<i64: 512, 128>}, {pipeline_mode = #tpu.pipeline_mode<synchronous>, transform_indices = @transform_21, window_bounds = array<i64: 1, 128>}, {transform_indices = @transform_22, window_bounds = array<i64: 1, 32, 128>}]} {
    %c32_i32 = arith.constant 32 : i32
    %0 = arith.muli %arg1, %c32_i32 : i32
    %1 = tpu.assume_multiple %0, 32 : i32
    %c0 = arith.constant 0 : index
    %c0_0 = arith.constant 0 : index
    %c0_1 = arith.constant 0 : index
    %2 = vector.load %arg2[%c0, %c0_0, %c0_1] : memref<1x32x128xf32, #tpu.memory_space<vmem>>, vector<1x32x128xf32>
    %3 = vector.shape_cast %2 : vector<1x32x128xf32> to vector<32x128xf32>
    %c0_2 = arith.constant 0 : index
    %4 = arith.index_cast %1 : i32 to index
    %c0_3 = arith.constant 0 : index
    %5 = vector.load %arg2[%c0_2, %4, %c0_3] : memref<1x32x128xf32, #tpu.memory_space<vmem>>, vector<1x32x128xf32>
    %6 = vector.shape_cast %5 : vector<1x32x128xf32> to vector<32x128xf32>
    %c0_4 = arith.constant 0 : index
    %c0_5 = arith.constant 0 : index
    %c0_6 = arith.constant 0 : index
    %7 = vector.load %arg3[%c0_4, %c0_5, %c0_6] : memref<1x16x128xf32, #tpu.memory_space<vmem>>, vector<1x16x128xf32>
    %8 = vector.shape_cast %7 : vector<1x16x128xf32> to vector<16x128xf32>
    %c0_7 = arith.constant 0 : index
    %c0_8 = arith.constant 0 : index
    %9 = vector.load %arg4[%c0_7, %c0_8] : memref<1x128xf32, #tpu.memory_space<vmem>>, vector<1x128xf32>
    %c0_9 = arith.constant 0 : index
    %c0_10 = arith.constant 0 : index
    %10 = vector.load %arg5[%c0_9, %c0_10] : memref<1x128xf32, #tpu.memory_space<vmem>>, vector<1x128xf32>
    %cst = arith.constant dense<0.000000e+00> : vector<32xf32>
    %11 = vector.multi_reduction <add>, %3, %cst [1] : vector<32x128xf32> to vector<32xf32>
    %12 = vector.shape_cast %11 : vector<32xf32> to vector<32x1xf32>
    %cst_11 = arith.constant 1.280000e+02 : f32
    %13 = vector.broadcast %cst_11 : f32 to vector<32x1xf32>
    %14 = arith.divf %12, %13 : vector<32x1xf32>
    %15 = vector.broadcast %14 : vector<32x1xf32> to vector<32x128xf32>
    %16 = arith.subf %3, %15 : vector<32x128xf32>
    %17 = arith.mulf %16, %16 : vector<32x128xf32>
    %cst_12 = arith.constant dense<0.000000e+00> : vector<32xf32>
    %18 = vector.multi_reduction <add>, %17, %cst_12 [1] : vector<32x128xf32> to vector<32xf32>
    %19 = vector.shape_cast %18 : vector<32xf32> to vector<32x1xf32>
    %cst_13 = arith.constant 1.280000e+02 : f32
    %20 = vector.broadcast %cst_13 : f32 to vector<32x1xf32>
    %21 = arith.divf %19, %20 : vector<32x1xf32>
    %22 = vector.broadcast %14 : vector<32x1xf32> to vector<32x128xf32>
    %23 = arith.subf %3, %22 : vector<32x128xf32>
    %cst_14 = arith.constant 9.99999974E-6 : f32
    %24 = vector.broadcast %cst_14 : f32 to vector<32x1xf32>
    %25 = arith.addf %21, %24 : vector<32x1xf32>
    %26 = math.rsqrt %25 : vector<32x1xf32>
    %27 = vector.broadcast %26 : vector<32x1xf32> to vector<32x128xf32>
    %28 = arith.mulf %23, %27 : vector<32x128xf32>
    %29 = vector.broadcast %9 : vector<1x128xf32> to vector<32x128xf32>
    %30 = arith.mulf %28, %29 : vector<32x128xf32>
    %31 = vector.broadcast %10 : vector<1x128xf32> to vector<32x128xf32>
    %32 = arith.addf %30, %31 : vector<32x128xf32>
    %c0_15 = arith.constant 0 : index
    %c0_16 = arith.constant 0 : index
    %33 = vector.load %arg4[%c0_15, %c0_16] : memref<1x128xf32, #tpu.memory_space<vmem>>, vector<1x128xf32>
    %c0_17 = arith.constant 0 : index
    %c0_18 = arith.constant 0 : index
    %34 = vector.load %arg5[%c0_17, %c0_18] : memref<1x128xf32, #tpu.memory_space<vmem>>, vector<1x128xf32>
    %cst_19 = arith.constant dense<0.000000e+00> : vector<32xf32>
    %35 = vector.multi_reduction <add>, %6, %cst_19 [1] : vector<32x128xf32> to vector<32xf32>
    %36 = vector.shape_cast %35 : vector<32xf32> to vector<32x1xf32>
    %cst_20 = arith.constant 1.280000e+02 : f32
    %37 = vector.broadcast %cst_20 : f32 to vector<32x1xf32>
    %38 = arith.divf %36, %37 : vector<32x1xf32>
    %39 = vector.broadcast %38 : vector<32x1xf32> to vector<32x128xf32>
    %40 = arith.subf %6, %39 : vector<32x128xf32>
    %41 = arith.mulf %40, %40 : vector<32x128xf32>
    %cst_21 = arith.constant dense<0.000000e+00> : vector<32xf32>
    %42 = vector.multi_reduction <add>, %41, %cst_21 [1] : vector<32x128xf32> to vector<32xf32>
    %43 = vector.shape_cast %42 : vector<32xf32> to vector<32x1xf32>
    %cst_22 = arith.constant 1.280000e+02 : f32
    %44 = vector.broadcast %cst_22 : f32 to vector<32x1xf32>
    %45 = arith.divf %43, %44 : vector<32x1xf32>
    %46 = vector.broadcast %38 : vector<32x1xf32> to vector<32x128xf32>
    %47 = arith.subf %6, %46 : vector<32x128xf32>
    %cst_23 = arith.constant 9.99999974E-6 : f32
    %48 = vector.broadcast %cst_23 : f32 to vector<32x1xf32>
    %49 = arith.addf %45, %48 : vector<32x1xf32>
    %50 = math.rsqrt %49 : vector<32x1xf32>
    %51 = vector.broadcast %50 : vector<32x1xf32> to vector<32x128xf32>
    %52 = arith.mulf %47, %51 : vector<32x128xf32>
    %53 = vector.broadcast %33 : vector<1x128xf32> to vector<32x128xf32>
    %54 = arith.mulf %52, %53 : vector<32x128xf32>
    %55 = vector.broadcast %34 : vector<1x128xf32> to vector<32x128xf32>
    %56 = arith.addf %54, %55 : vector<32x128xf32>
    %c0_24 = arith.constant 0 : index
    %c0_25 = arith.constant 0 : index
    %57 = vector.load %arg6[%c0_24, %c0_25] : memref<128x384xbf16, #tpu.memory_space<vmem>>, vector<128x128xbf16>
    %58 = arith.truncf %56 : vector<32x128xf32> to vector<32x128xbf16>
    %cst_26 = arith.constant dense<0.000000e+00> : vector<32x128xf32>
    %59 = tpu.matmul %58, %57, %cst_26 {dimension_numbers = #tpu.dot_dimension_numbers<[1], [0], [0], [1], [0, 0, 1, 1], [], []>} : vector<32x128xbf16>, vector<128x128xbf16>, vector<32x128xf32> -> vector<32x128xf32>
    %c0_27 = arith.constant 0 : index
    %c0_28 = arith.constant 0 : index
    %60 = vector.load %arg7[%c0_27, %c0_28] : memref<1x384xf32, #tpu.memory_space<vmem>>, vector<1x128xf32>
    %61 = vector.broadcast %60 : vector<1x128xf32> to vector<32x128xf32>
    %62 = arith.addf %59, %61 : vector<32x128xf32>
    %cst_29 = arith.constant 0.176776692 : f32
    %63 = vector.broadcast %cst_29 : f32 to vector<32x128xf32>
    %64 = arith.mulf %62, %63 : vector<32x128xf32>
    %c0_30 = arith.constant 0 : index
    %c128 = arith.constant 128 : index
    %65 = vector.load %arg6[%c0_30, %c128] : memref<128x384xbf16, #tpu.memory_space<vmem>>, vector<128x256xbf16>
    %66 = arith.truncf %32 : vector<32x128xf32> to vector<32x128xbf16>
    %cst_31 = arith.constant dense<0.000000e+00> : vector<32x256xf32>
    %67 = tpu.matmul %66, %65, %cst_31 {dimension_numbers = #tpu.dot_dimension_numbers<[1], [0], [0], [1], [0, 0, 1, 1], [], []>} : vector<32x128xbf16>, vector<128x256xbf16>, vector<32x256xf32> -> vector<32x256xf32>
    %c0_32 = arith.constant 0 : index
    %c128_33 = arith.constant 128 : index
    %68 = vector.load %arg7[%c0_32, %c128_33] : memref<1x384xf32, #tpu.memory_space<vmem>>, vector<1x256xf32>
    %69 = vector.broadcast %68 : vector<1x256xf32> to vector<32x256xf32>
    %70 = arith.addf %67, %69 : vector<32x256xf32>
    %71 = vector.extract_strided_slice %70 {offsets = [0, 0], sizes = [32, 128], strides = [1, 1]} : vector<32x256xf32> to vector<32x128xf32>
    %72 = vector.extract_strided_slice %70 {offsets = [0, 128], sizes = [32, 128], strides = [1, 1]} : vector<32x256xf32> to vector<32x128xf32>
    %73 = tpu.iota {dimensions = array<i32: 0>} : vector<32x32xi32>
    %74 = vector.broadcast %1 : i32 to vector<32x32xi32>
    %75 = arith.addi %73, %74 : vector<32x32xi32>
    %76 = tpu.iota {dimensions = array<i32: 1>} : vector<32x32xi32>
    %77 = arith.cmpi sgt, %76, %75 : vector<32x32xi32>
    %cst_34 = arith.constant 0xFF800000 : f32
    %cst_35 = arith.constant 0.000000e+00 : f32
    %78 = vector.broadcast %cst_34 : f32 to vector<32x32xf32>
    %79 = vector.broadcast %cst_35 : f32 to vector<32x32xf32>
    %80 = arith.select %77, %78, %79 : vector<32x32xi1>, vector<32x32xf32>
    %c0_36 = arith.constant 0 : index
    %c0_37 = arith.constant 0 : index
    %81 = vector.load %arg8[%c0_36, %c0_37] : memref<128x128xbf16, #tpu.memory_space<vmem>>, vector<128x128xbf16>
    %c0_38 = arith.constant 0 : index
    %c0_39 = arith.constant 0 : index
    %82 = vector.load %arg9[%c0_38, %c0_39] : memref<1x128xf32, #tpu.memory_space<vmem>>, vector<1x128xf32>
    %83 = arith.truncf %64 : vector<32x128xf32> to vector<32x128xbf16>
    %84 = arith.truncf %71 : vector<32x128xf32> to vector<32x128xbf16>
    %85 = arith.truncf %72 : vector<32x128xf32> to vector<32x128xbf16>
    %86 = vector.extract_strided_slice %83 {offsets = [0, 0], sizes = [32, 32], strides = [1, 1]} : vector<32x128xbf16> to vector<32x32xbf16>
    %87 = vector.extract_strided_slice %84 {offsets = [0, 0], sizes = [32, 32], strides = [1, 1]} : vector<32x128xbf16> to vector<32x32xbf16>
    %cst_40 = arith.constant dense<0.000000e+00> : vector<32x32xf32>
    %88 = tpu.matmul %86, %87, %cst_40 {dimension_numbers = #tpu.dot_dimension_numbers<[1], [1], [0], [0], [0, 0, 1, 0], [], []>} : vector<32x32xbf16>, vector<32x32xbf16>, vector<32x32xf32> -> vector<32x32xf32>
    %89 = arith.addf %88, %80 : vector<32x32xf32>
    %cst_41 = arith.constant dense<0xFF800000> : vector<32xf32>
    %90 = vector.multi_reduction <maximumf>, %89, %cst_41 [1] : vector<32x32xf32> to vector<32xf32>
    %91 = vector.shape_cast %90 : vector<32xf32> to vector<32x1xf32>
    %92 = vector.broadcast %91 : vector<32x1xf32> to vector<32x32xf32>
    %93 = arith.subf %89, %92 : vector<32x32xf32>
    %94 = math.exp %93 : vector<32x32xf32>
    %cst_42 = arith.constant dense<0.000000e+00> : vector<32xf32>
    %95 = vector.multi_reduction <add>, %94, %cst_42 [1] : vector<32x32xf32> to vector<32xf32>
    %96 = vector.shape_cast %95 : vector<32xf32> to vector<32x1xf32>
    %97 = tpu.reciprocal %96 {approx = true} : vector<32x1xf32> -> vector<32x1xf32>
    %98 = vector.broadcast %97 : vector<32x1xf32> to vector<32x32xf32>
    %99 = arith.mulf %94, %98 : vector<32x32xf32>
    %100 = arith.truncf %99 : vector<32x32xf32> to vector<32x32xbf16>
    %101 = vector.extract_strided_slice %85 {offsets = [0, 0], sizes = [32, 32], strides = [1, 1]} : vector<32x128xbf16> to vector<32x32xbf16>
    %cst_43 = arith.constant dense<0.000000e+00> : vector<32x32xf32>
    %102 = tpu.matmul %100, %101, %cst_43 {dimension_numbers = #tpu.dot_dimension_numbers<[1], [0], [0], [1], [0, 0, 1, 1], [], []>} : vector<32x32xbf16>, vector<32x32xbf16>, vector<32x32xf32> -> vector<32x32xf32>
    %c0_44 = arith.constant 0 : index
    %c0_45 = arith.constant 0 : index
    %103 = vector.load %arg25[%c0_44, %c0_45] : memref<32x128xf32, #tpu.memory_space<vmem>>, vector<32x32xf32>
    tpu.vector_store %arg25[%c0_44, %c0_45], %102 {strides = array<i32>} : memref<32x128xf32, #tpu.memory_space<vmem>>, vector<32x32xf32>,
    %104 = vector.extract_strided_slice %83 {offsets = [0, 32], sizes = [32, 32], strides = [1, 1]} : vector<32x128xbf16> to vector<32x32xbf16>
    %105 = vector.extract_strided_slice %84 {offsets = [0, 32], sizes = [32, 32], strides = [1, 1]} : vector<32x128xbf16> to vector<32x32xbf16>
    %cst_46 = arith.constant dense<0.000000e+00> : vector<32x32xf32>
    %106 = tpu.matmul %104, %105, %cst_46 {dimension_numbers = #tpu.dot_dimension_numbers<[1], [1], [0], [0], [0, 0, 1, 0], [], []>} : vector<32x32xbf16>, vector<32x32xbf16>, vector<32x32xf32> -> vector<32x32xf32>
    %107 = arith.addf %106, %80 : vector<32x32xf32>
    %cst_47 = arith.constant dense<0xFF800000> : vector<32xf32>
    %108 = vector.multi_reduction <maximumf>, %107, %cst_47 [1] : vector<32x32xf32> to vector<32xf32>
    %109 = vector.shape_cast %108 : vector<32xf32> to vector<32x1xf32>
    %110 = vector.broadcast %109 : vector<32x1xf32> to vector<32x32xf32>
    %111 = arith.subf %107, %110 : vector<32x32xf32>
    %112 = math.exp %111 : vector<32x32xf32>
    %cst_48 = arith.constant dense<0.000000e+00> : vector<32xf32>
    %113 = vector.multi_reduction <add>, %112, %cst_48 [1] : vector<32x32xf32> to vector<32xf32>
    %114 = vector.shape_cast %113 : vector<32xf32> to vector<32x1xf32>
    %115 = tpu.reciprocal %114 {approx = true} : vector<32x1xf32> -> vector<32x1xf32>
    %116 = vector.broadcast %115 : vector<32x1xf32> to vector<32x32xf32>
    %117 = arith.mulf %112, %116 : vector<32x32xf32>
    %118 = arith.truncf %117 : vector<32x32xf32> to vector<32x32xbf16>
    %119 = vector.extract_strided_slice %85 {offsets = [0, 32], sizes = [32, 32], strides = [1, 1]} : vector<32x128xbf16> to vector<32x32xbf16>
    %cst_49 = arith.constant dense<0.000000e+00> : vector<32x32xf32>
    %120 = tpu.matmul %118, %119, %cst_49 {dimension_numbers = #tpu.dot_dimension_numbers<[1], [0], [0], [1], [0, 0, 1, 1], [], []>} : vector<32x32xbf16>, vector<32x32xbf16>, vector<32x32xf32> -> vector<32x32xf32>
    %c0_50 = arith.constant 0 : index
    %c32 = arith.constant 32 : index
    %121 = vector.load %arg25[%c0_50, %c32] : memref<32x128xf32, #tpu.memory_space<vmem>>, vector<32x32xf32>
    tpu.vector_store %arg25[%c0_50, %c32], %120 {strides = array<i32>} : memref<32x128xf32, #tpu.memory_space<vmem>>, vector<32x32xf32>,
    %122 = vector.extract_strided_slice %83 {offsets = [0, 64], sizes = [32, 32], strides = [1, 1]} : vector<32x128xbf16> to vector<32x32xbf16>
    %123 = vector.extract_strided_slice %84 {offsets = [0, 64], sizes = [32, 32], strides = [1, 1]} : vector<32x128xbf16> to vector<32x32xbf16>
    %cst_51 = arith.constant dense<0.000000e+00> : vector<32x32xf32>
    %124 = tpu.matmul %122, %123, %cst_51 {dimension_numbers = #tpu.dot_dimension_numbers<[1], [1], [0], [0], [0, 0, 1, 0], [], []>} : vector<32x32xbf16>, vector<32x32xbf16>, vector<32x32xf32> -> vector<32x32xf32>
    %125 = arith.addf %124, %80 : vector<32x32xf32>
    %cst_52 = arith.constant dense<0xFF800000> : vector<32xf32>
    %126 = vector.multi_reduction <maximumf>, %125, %cst_52 [1] : vector<32x32xf32> to vector<32xf32>
    %127 = vector.shape_cast %126 : vector<32xf32> to vector<32x1xf32>
    %128 = vector.broadcast %127 : vector<32x1xf32> to vector<32x32xf32>
    %129 = arith.subf %125, %128 : vector<32x32xf32>
    %130 = math.exp %129 : vector<32x32xf32>
    %cst_53 = arith.constant dense<0.000000e+00> : vector<32xf32>
    %131 = vector.multi_reduction <add>, %130, %cst_53 [1] : vector<32x32xf32> to vector<32xf32>
    %132 = vector.shape_cast %131 : vector<32xf32> to vector<32x1xf32>
    %133 = tpu.reciprocal %132 {approx = true} : vector<32x1xf32> -> vector<32x1xf32>
    %134 = vector.broadcast %133 : vector<32x1xf32> to vector<32x32xf32>
    %135 = arith.mulf %130, %134 : vector<32x32xf32>
    %136 = arith.truncf %135 : vector<32x32xf32> to vector<32x32xbf16>
    %137 = vector.extract_strided_slice %85 {offsets = [0, 64], sizes = [32, 32], strides = [1, 1]} : vector<32x128xbf16> to vector<32x32xbf16>
    %cst_54 = arith.constant dense<0.000000e+00> : vector<32x32xf32>
    %138 = tpu.matmul %136, %137, %cst_54 {dimension_numbers = #tpu.dot_dimension_numbers<[1], [0], [0], [1], [0, 0, 1, 1], [], []>} : vector<32x32xbf16>, vector<32x32xbf16>, vector<32x32xf32> -> vector<32x32xf32>
    %c0_55 = arith.constant 0 : index
    %c64 = arith.constant 64 : index
    %139 = vector.load %arg25[%c0_55, %c64] : memref<32x128xf32, #tpu.memory_space<vmem>>, vector<32x32xf32>
    tpu.vector_store %arg25[%c0_55, %c64], %138 {strides = array<i32>} : memref<32x128xf32, #tpu.memory_space<vmem>>, vector<32x32xf32>,
    %140 = vector.extract_strided_slice %83 {offsets = [0, 96], sizes = [32, 32], strides = [1, 1]} : vector<32x128xbf16> to vector<32x32xbf16>
    %141 = vector.extract_strided_slice %84 {offsets = [0, 96], sizes = [32, 32], strides = [1, 1]} : vector<32x128xbf16> to vector<32x32xbf16>
    %cst_56 = arith.constant dense<0.000000e+00> : vector<32x32xf32>
    %142 = tpu.matmul %140, %141, %cst_56 {dimension_numbers = #tpu.dot_dimension_numbers<[1], [1], [0], [0], [0, 0, 1, 0], [], []>} : vector<32x32xbf16>, vector<32x32xbf16>, vector<32x32xf32> -> vector<32x32xf32>
    %143 = arith.addf %142, %80 : vector<32x32xf32>
    %cst_57 = arith.constant dense<0xFF800000> : vector<32xf32>
    %144 = vector.multi_reduction <maximumf>, %143, %cst_57 [1] : vector<32x32xf32> to vector<32xf32>
    %145 = vector.shape_cast %144 : vector<32xf32> to vector<32x1xf32>
    %146 = vector.broadcast %145 : vector<32x1xf32> to vector<32x32xf32>
    %147 = arith.subf %143, %146 : vector<32x32xf32>
    %148 = math.exp %147 : vector<32x32xf32>
    %cst_58 = arith.constant dense<0.000000e+00> : vector<32xf32>
    %149 = vector.multi_reduction <add>, %148, %cst_58 [1] : vector<32x32xf32> to vector<32xf32>
    %150 = vector.shape_cast %149 : vector<32xf32> to vector<32x1xf32>
    %151 = tpu.reciprocal %150 {approx = true} : vector<32x1xf32> -> vector<32x1xf32>
    %152 = vector.broadcast %151 : vector<32x1xf32> to vector<32x32xf32>
    %153 = arith.mulf %148, %152 : vector<32x32xf32>
    %154 = arith.truncf %153 : vector<32x32xf32> to vector<32x32xbf16>
    %155 = vector.extract_strided_slice %85 {offsets = [0, 96], sizes = [32, 32], strides = [1, 1]} : vector<32x128xbf16> to vector<32x32xbf16>
    %cst_59 = arith.constant dense<0.000000e+00> : vector<32x32xf32>
    %156 = tpu.matmul %154, %155, %cst_59 {dimension_numbers = #tpu.dot_dimension_numbers<[1], [0], [0], [1], [0, 0, 1, 1], [], []>} : vector<32x32xbf16>, vector<32x32xbf16>, vector<32x32xf32> -> vector<32x32xf32>
    %c0_60 = arith.constant 0 : index
    %c96 = arith.constant 96 : index
    %157 = vector.load %arg25[%c0_60, %c96] : memref<32x128xf32, #tpu.memory_space<vmem>>, vector<32x32xf32>
    tpu.vector_store %arg25[%c0_60, %c96], %156 {strides = array<i32>} : memref<32x128xf32, #tpu.memory_space<vmem>>, vector<32x32xf32>,
    %c0_61 = arith.constant 0 : index
    %c0_62 = arith.constant 0 : index
    %158 = vector.load %arg25[%c0_61, %c0_62] : memref<32x128xf32, #tpu.memory_space<vmem>>, vector<32x128xf32>
    %159 = arith.truncf %158 : vector<32x128xf32> to vector<32x128xbf16>
    %cst_63 = arith.constant dense<0.000000e+00> : vector<32x128xf32>
    %160 = tpu.matmul %159, %81, %cst_63 {dimension_numbers = #tpu.dot_dimension_numbers<[1], [0], [0], [1], [0, 0, 1, 1], [], []>} : vector<32x128xbf16>, vector<128x128xbf16>, vector<32x128xf32> -> vector<32x128xf32>
    %161 = vector.broadcast %82 : vector<1x128xf32> to vector<32x128xf32>
    %162 = arith.addf %160, %161 : vector<32x128xf32>
    %163 = arith.addf %56, %162 : vector<32x128xf32>
    %c0_64 = arith.constant 0 : index
    %c0_65 = arith.constant 0 : index
    %164 = vector.load %arg10[%c0_64, %c0_65] : memref<1x128xf32, #tpu.memory_space<vmem>>, vector<1x128xf32>
    %c0_66 = arith.constant 0 : index
    %c0_67 = arith.constant 0 : index
    %165 = vector.load %arg11[%c0_66, %c0_67] : memref<1x128xf32, #tpu.memory_space<vmem>>, vector<1x128xf32>
    %cst_68 = arith.constant dense<0.000000e+00> : vector<32xf32>
    %166 = vector.multi_reduction <add>, %163, %cst_68 [1] : vector<32x128xf32> to vector<32xf32>
    %167 = vector.shape_cast %166 : vector<32xf32> to vector<32x1xf32>
    %cst_69 = arith.constant 1.280000e+02 : f32
    %168 = vector.broadcast %cst_69 : f32 to vector<32x1xf32>
    %169 = arith.divf %167, %168 : vector<32x1xf32>
    %170 = vector.broadcast %169 : vector<32x1xf32> to vector<32x128xf32>
    %171 = arith.subf %163, %170 : vector<32x128xf32>
    %172 = arith.mulf %171, %171 : vector<32x128xf32>
    %cst_70 = arith.constant dense<0.000000e+00> : vector<32xf32>
    %173 = vector.multi_reduction <add>, %172, %cst_70 [1] : vector<32x128xf32> to vector<32xf32>
    %174 = vector.shape_cast %173 : vector<32xf32> to vector<32x1xf32>
    %cst_71 = arith.constant 1.280000e+02 : f32
    %175 = vector.broadcast %cst_71 : f32 to vector<32x1xf32>
    %176 = arith.divf %174, %175 : vector<32x1xf32>
    %177 = vector.broadcast %169 : vector<32x1xf32> to vector<32x128xf32>
    %178 = arith.subf %163, %177 : vector<32x128xf32>
    %cst_72 = arith.constant 9.99999974E-6 : f32
    %179 = vector.broadcast %cst_72 : f32 to vector<32x1xf32>
    %180 = arith.addf %176, %179 : vector<32x1xf32>
    %181 = math.rsqrt %180 : vector<32x1xf32>
    %182 = vector.broadcast %181 : vector<32x1xf32> to vector<32x128xf32>
    %183 = arith.mulf %178, %182 : vector<32x128xf32>
    %184 = vector.broadcast %164 : vector<1x128xf32> to vector<32x128xf32>
    %185 = arith.mulf %183, %184 : vector<32x128xf32>
    %186 = vector.broadcast %165 : vector<1x128xf32> to vector<32x128xf32>
    %187 = arith.addf %185, %186 : vector<32x128xf32>
    %c0_73 = arith.constant 0 : index
    %c0_74 = arith.constant 0 : index
    %188 = vector.load %arg12[%c0_73, %c0_74] : memref<128x128xbf16, #tpu.memory_space<vmem>>, vector<128x128xbf16>
    %189 = arith.truncf %187 : vector<32x128xf32> to vector<32x128xbf16>
    %cst_75 = arith.constant dense<0.000000e+00> : vector<32x128xf32>
    %190 = tpu.matmul %189, %188, %cst_75 {dimension_numbers = #tpu.dot_dimension_numbers<[1], [0], [0], [1], [0, 0, 1, 1], [], []>} : vector<32x128xbf16>, vector<128x128xbf16>, vector<32x128xf32> -> vector<32x128xf32>
    %c0_76 = arith.constant 0 : index
    %c0_77 = arith.constant 0 : index
    %191 = vector.load %arg13[%c0_76, %c0_77] : memref<1x128xf32, #tpu.memory_space<vmem>>, vector<1x128xf32>
    %192 = vector.broadcast %191 : vector<1x128xf32> to vector<32x128xf32>
    %193 = arith.addf %190, %192 : vector<32x128xf32>
    %cst_78 = arith.constant 0.176776692 : f32
    %194 = vector.broadcast %cst_78 : f32 to vector<32x128xf32>
    %195 = arith.mulf %193, %194 : vector<32x128xf32>
    %c0_79 = arith.constant 0 : index
    %c0_80 = arith.constant 0 : index
    %196 = vector.load %arg14[%c0_79, %c0_80] : memref<128x256xbf16, #tpu.memory_space<vmem>>, vector<128x256xbf16>
    %197 = arith.truncf %8 : vector<16x128xf32> to vector<16x128xbf16>
    %cst_81 = arith.constant dense<0.000000e+00> : vector<16x256xf32>
    %198 = tpu.matmul %197, %196, %cst_81 {dimension_numbers = #tpu.dot_dimension_numbers<[1], [0], [0], [1], [0, 0, 1, 1], [], []>} : vector<16x128xbf16>, vector<128x256xbf16>, vector<16x256xf32> -> vector<16x256xf32>
    %c0_82 = arith.constant 0 : index
    %c0_83 = arith.constant 0 : index
    %199 = vector.load %arg15[%c0_82, %c0_83] : memref<1x256xf32, #tpu.memory_space<vmem>>, vector<1x256xf32>
    %200 = vector.broadcast %199 : vector<1x256xf32> to vector<16x256xf32>
    %201 = arith.addf %198, %200 : vector<16x256xf32>
    %202 = vector.extract_strided_slice %201 {offsets = [0, 0], sizes = [16, 128], strides = [1, 1]} : vector<16x256xf32> to vector<16x128xf32>
    %203 = vector.extract_strided_slice %201 {offsets = [0, 128], sizes = [16, 128], strides = [1, 1]} : vector<16x256xf32> to vector<16x128xf32>
    %c0_84 = arith.constant 0 : index
    %c0_85 = arith.constant 0 : index
    %204 = vector.load %arg16[%c0_84, %c0_85] : memref<128x128xbf16, #tpu.memory_space<vmem>>, vector<128x128xbf16>
    %c0_86 = arith.constant 0 : index
    %c0_87 = arith.constant 0 : index
    %205 = vector.load %arg17[%c0_86, %c0_87] : memref<1x128xf32, #tpu.memory_space<vmem>>, vector<1x128xf32>
    %206 = arith.truncf %195 : vector<32x128xf32> to vector<32x128xbf16>
    %207 = arith.truncf %202 : vector<16x128xf32> to vector<16x128xbf16>
    %208 = arith.truncf %203 : vector<16x128xf32> to vector<16x128xbf16>
    %209 = vector.extract_strided_slice %206 {offsets = [0, 0], sizes = [32, 32], strides = [1, 1]} : vector<32x128xbf16> to vector<32x32xbf16>
    %210 = vector.extract_strided_slice %207 {offsets = [0, 0], sizes = [16, 32], strides = [1, 1]} : vector<16x128xbf16> to vector<16x32xbf16>
    %cst_88 = arith.constant dense<0.000000e+00> : vector<32x16xf32>
    %211 = tpu.matmul %209, %210, %cst_88 {dimension_numbers = #tpu.dot_dimension_numbers<[1], [1], [0], [0], [0, 0, 1, 0], [], []>} : vector<32x32xbf16>, vector<16x32xbf16>, vector<32x16xf32> -> vector<32x16xf32>
    %cst_89 = arith.constant dense<0xFF800000> : vector<32xf32>
    %212 = vector.multi_reduction <maximumf>, %211, %cst_89 [1] : vector<32x16xf32> to vector<32xf32>
    %213 = vector.shape_cast %212 : vector<32xf32> to vector<32x1xf32>
    %214 = vector.broadcast %213 : vector<32x1xf32> to vector<32x16xf32>
    %215 = arith.subf %211, %214 : vector<32x16xf32>
    %216 = math.exp %215 : vector<32x16xf32>
    %cst_90 = arith.constant dense<0.000000e+00> : vector<32xf32>
    %217 = vector.multi_reduction <add>, %216, %cst_90 [1] : vector<32x16xf32> to vector<32xf32>
    %218 = vector.shape_cast %217 : vector<32xf32> to vector<32x1xf32>
    %219 = tpu.reciprocal %218 {approx = true} : vector<32x1xf32> -> vector<32x1xf32>
    %220 = vector.broadcast %219 : vector<32x1xf32> to vector<32x16xf32>
    %221 = arith.mulf %216, %220 : vector<32x16xf32>
    %222 = arith.truncf %221 : vector<32x16xf32> to vector<32x16xbf16>
    %223 = vector.extract_strided_slice %208 {offsets = [0, 0], sizes = [16, 32], strides = [1, 1]} : vector<16x128xbf16> to vector<16x32xbf16>
    %cst_91 = arith.constant dense<0.000000e+00> : vector<32x32xf32>
    %224 = tpu.matmul %222, %223, %cst_91 {dimension_numbers = #tpu.dot_dimension_numbers<[1], [0], [0], [1], [0, 0, 1, 1], [], []>} : vector<32x16xbf16>, vector<16x32xbf16>, vector<32x32xf32> -> vector<32x32xf32>
    %c0_92 = arith.constant 0 : index
    %c0_93 = arith.constant 0 : index
    %225 = vector.load %arg25[%c0_92, %c0_93] : memref<32x128xf32, #tpu.memory_space<vmem>>, vector<32x32xf32>
    tpu.vector_store %arg25[%c0_92, %c0_93], %224 {strides = array<i32>} : memref<32x128xf32, #tpu.memory_space<vmem>>, vector<32x32xf32>,
    %226 = vector.extract_strided_slice %206 {offsets = [0, 32], sizes = [32, 32], strides = [1, 1]} : vector<32x128xbf16> to vector<32x32xbf16>
    %227 = vector.extract_strided_slice %207 {offsets = [0, 32], sizes = [16, 32], strides = [1, 1]} : vector<16x128xbf16> to vector<16x32xbf16>
    %cst_94 = arith.constant dense<0.000000e+00> : vector<32x16xf32>
    %228 = tpu.matmul %226, %227, %cst_94 {dimension_numbers = #tpu.dot_dimension_numbers<[1], [1], [0], [0], [0, 0, 1, 0], [], []>} : vector<32x32xbf16>, vector<16x32xbf16>, vector<32x16xf32> -> vector<32x16xf32>
    %cst_95 = arith.constant dense<0xFF800000> : vector<32xf32>
    %229 = vector.multi_reduction <maximumf>, %228, %cst_95 [1] : vector<32x16xf32> to vector<32xf32>
    %230 = vector.shape_cast %229 : vector<32xf32> to vector<32x1xf32>
    %231 = vector.broadcast %230 : vector<32x1xf32> to vector<32x16xf32>
    %232 = arith.subf %228, %231 : vector<32x16xf32>
    %233 = math.exp %232 : vector<32x16xf32>
    %cst_96 = arith.constant dense<0.000000e+00> : vector<32xf32>
    %234 = vector.multi_reduction <add>, %233, %cst_96 [1] : vector<32x16xf32> to vector<32xf32>
    %235 = vector.shape_cast %234 : vector<32xf32> to vector<32x1xf32>
    %236 = tpu.reciprocal %235 {approx = true} : vector<32x1xf32> -> vector<32x1xf32>
    %237 = vector.broadcast %236 : vector<32x1xf32> to vector<32x16xf32>
    %238 = arith.mulf %233, %237 : vector<32x16xf32>
    %239 = arith.truncf %238 : vector<32x16xf32> to vector<32x16xbf16>
    %240 = vector.extract_strided_slice %208 {offsets = [0, 32], sizes = [16, 32], strides = [1, 1]} : vector<16x128xbf16> to vector<16x32xbf16>
    %cst_97 = arith.constant dense<0.000000e+00> : vector<32x32xf32>
    %241 = tpu.matmul %239, %240, %cst_97 {dimension_numbers = #tpu.dot_dimension_numbers<[1], [0], [0], [1], [0, 0, 1, 1], [], []>} : vector<32x16xbf16>, vector<16x32xbf16>, vector<32x32xf32> -> vector<32x32xf32>
    %c0_98 = arith.constant 0 : index
    %c32_99 = arith.constant 32 : index
    %242 = vector.load %arg25[%c0_98, %c32_99] : memref<32x128xf32, #tpu.memory_space<vmem>>, vector<32x32xf32>
    tpu.vector_store %arg25[%c0_98, %c32_99], %241 {strides = array<i32>} : memref<32x128xf32, #tpu.memory_space<vmem>>, vector<32x32xf32>,
    %243 = vector.extract_strided_slice %206 {offsets = [0, 64], sizes = [32, 32], strides = [1, 1]} : vector<32x128xbf16> to vector<32x32xbf16>
    %244 = vector.extract_strided_slice %207 {offsets = [0, 64], sizes = [16, 32], strides = [1, 1]} : vector<16x128xbf16> to vector<16x32xbf16>
    %cst_100 = arith.constant dense<0.000000e+00> : vector<32x16xf32>
    %245 = tpu.matmul %243, %244, %cst_100 {dimension_numbers = #tpu.dot_dimension_numbers<[1], [1], [0], [0], [0, 0, 1, 0], [], []>} : vector<32x32xbf16>, vector<16x32xbf16>, vector<32x16xf32> -> vector<32x16xf32>
    %cst_101 = arith.constant dense<0xFF800000> : vector<32xf32>
    %246 = vector.multi_reduction <maximumf>, %245, %cst_101 [1] : vector<32x16xf32> to vector<32xf32>
    %247 = vector.shape_cast %246 : vector<32xf32> to vector<32x1xf32>
    %248 = vector.broadcast %247 : vector<32x1xf32> to vector<32x16xf32>
    %249 = arith.subf %245, %248 : vector<32x16xf32>
    %250 = math.exp %249 : vector<32x16xf32>
    %cst_102 = arith.constant dense<0.000000e+00> : vector<32xf32>
    %251 = vector.multi_reduction <add>, %250, %cst_102 [1] : vector<32x16xf32> to vector<32xf32>
    %252 = vector.shape_cast %251 : vector<32xf32> to vector<32x1xf32>
    %253 = tpu.reciprocal %252 {approx = true} : vector<32x1xf32> -> vector<32x1xf32>
    %254 = vector.broadcast %253 : vector<32x1xf32> to vector<32x16xf32>
    %255 = arith.mulf %250, %254 : vector<32x16xf32>
    %256 = arith.truncf %255 : vector<32x16xf32> to vector<32x16xbf16>
    %257 = vector.extract_strided_slice %208 {offsets = [0, 64], sizes = [16, 32], strides = [1, 1]} : vector<16x128xbf16> to vector<16x32xbf16>
    %cst_103 = arith.constant dense<0.000000e+00> : vector<32x32xf32>
    %258 = tpu.matmul %256, %257, %cst_103 {dimension_numbers = #tpu.dot_dimension_numbers<[1], [0], [0], [1], [0, 0, 1, 1], [], []>} : vector<32x16xbf16>, vector<16x32xbf16>, vector<32x32xf32> -> vector<32x32xf32>
    %c0_104 = arith.constant 0 : index
    %c64_105 = arith.constant 64 : index
    %259 = vector.load %arg25[%c0_104, %c64_105] : memref<32x128xf32, #tpu.memory_space<vmem>>, vector<32x32xf32>
    tpu.vector_store %arg25[%c0_104, %c64_105], %258 {strides = array<i32>} : memref<32x128xf32, #tpu.memory_space<vmem>>, vector<32x32xf32>,
    %260 = vector.extract_strided_slice %206 {offsets = [0, 96], sizes = [32, 32], strides = [1, 1]} : vector<32x128xbf16> to vector<32x32xbf16>
    %261 = vector.extract_strided_slice %207 {offsets = [0, 96], sizes = [16, 32], strides = [1, 1]} : vector<16x128xbf16> to vector<16x32xbf16>
    %cst_106 = arith.constant dense<0.000000e+00> : vector<32x16xf32>
    %262 = tpu.matmul %260, %261, %cst_106 {dimension_numbers = #tpu.dot_dimension_numbers<[1], [1], [0], [0], [0, 0, 1, 0], [], []>} : vector<32x32xbf16>, vector<16x32xbf16>, vector<32x16xf32> -> vector<32x16xf32>
    %cst_107 = arith.constant dense<0xFF800000> : vector<32xf32>
    %263 = vector.multi_reduction <maximumf>, %262, %cst_107 [1] : vector<32x16xf32> to vector<32xf32>
    %264 = vector.shape_cast %263 : vector<32xf32> to vector<32x1xf32>
    %265 = vector.broadcast %264 : vector<32x1xf32> to vector<32x16xf32>
    %266 = arith.subf %262, %265 : vector<32x16xf32>
    %267 = math.exp %266 : vector<32x16xf32>
    %cst_108 = arith.constant dense<0.000000e+00> : vector<32xf32>
    %268 = vector.multi_reduction <add>, %267, %cst_108 [1] : vector<32x16xf32> to vector<32xf32>
    %269 = vector.shape_cast %268 : vector<32xf32> to vector<32x1xf32>
    %270 = tpu.reciprocal %269 {approx = true} : vector<32x1xf32> -> vector<32x1xf32>
    %271 = vector.broadcast %270 : vector<32x1xf32> to vector<32x16xf32>
    %272 = arith.mulf %267, %271 : vector<32x16xf32>
    %273 = arith.truncf %272 : vector<32x16xf32> to vector<32x16xbf16>
    %274 = vector.extract_strided_slice %208 {offsets = [0, 96], sizes = [16, 32], strides = [1, 1]} : vector<16x128xbf16> to vector<16x32xbf16>
    %cst_109 = arith.constant dense<0.000000e+00> : vector<32x32xf32>
    %275 = tpu.matmul %273, %274, %cst_109 {dimension_numbers = #tpu.dot_dimension_numbers<[1], [0], [0], [1], [0, 0, 1, 1], [], []>} : vector<32x16xbf16>, vector<16x32xbf16>, vector<32x32xf32> -> vector<32x32xf32>
    %c0_110 = arith.constant 0 : index
    %c96_111 = arith.constant 96 : index
    %276 = vector.load %arg25[%c0_110, %c96_111] : memref<32x128xf32, #tpu.memory_space<vmem>>, vector<32x32xf32>
    tpu.vector_store %arg25[%c0_110, %c96_111], %275 {strides = array<i32>} : memref<32x128xf32, #tpu.memory_space<vmem>>, vector<32x32xf32>,
    %c0_112 = arith.constant 0 : index
    %c0_113 = arith.constant 0 : index
    %277 = vector.load %arg25[%c0_112, %c0_113] : memref<32x128xf32, #tpu.memory_space<vmem>>, vector<32x128xf32>
    %278 = arith.truncf %277 : vector<32x128xf32> to vector<32x128xbf16>
    %cst_114 = arith.constant dense<0.000000e+00> : vector<32x128xf32>
    %279 = tpu.matmul %278, %204, %cst_114 {dimension_numbers = #tpu.dot_dimension_numbers<[1], [0], [0], [1], [0, 0, 1, 1], [], []>} : vector<32x128xbf16>, vector<128x128xbf16>, vector<32x128xf32> -> vector<32x128xf32>
    %280 = vector.broadcast %205 : vector<1x128xf32> to vector<32x128xf32>
    %281 = arith.addf %279, %280 : vector<32x128xf32>
    %282 = arith.addf %187, %281 : vector<32x128xf32>
    %c0_115 = arith.constant 0 : index
    %c0_116 = arith.constant 0 : index
    %283 = vector.load %arg18[%c0_115, %c0_116] : memref<1x128xf32, #tpu.memory_space<vmem>>, vector<1x128xf32>
    %c0_117 = arith.constant 0 : index
    %c0_118 = arith.constant 0 : index
    %284 = vector.load %arg19[%c0_117, %c0_118] : memref<1x128xf32, #tpu.memory_space<vmem>>, vector<1x128xf32>
    %cst_119 = arith.constant dense<0.000000e+00> : vector<32xf32>
    %285 = vector.multi_reduction <add>, %282, %cst_119 [1] : vector<32x128xf32> to vector<32xf32>
    %286 = vector.shape_cast %285 : vector<32xf32> to vector<32x1xf32>
    %cst_120 = arith.constant 1.280000e+02 : f32
    %287 = vector.broadcast %cst_120 : f32 to vector<32x1xf32>
    %288 = arith.divf %286, %287 : vector<32x1xf32>
    %289 = vector.broadcast %288 : vector<32x1xf32> to vector<32x128xf32>
    %290 = arith.subf %282, %289 : vector<32x128xf32>
    %291 = arith.mulf %290, %290 : vector<32x128xf32>
    %cst_121 = arith.constant dense<0.000000e+00> : vector<32xf32>
    %292 = vector.multi_reduction <add>, %291, %cst_121 [1] : vector<32x128xf32> to vector<32xf32>
    %293 = vector.shape_cast %292 : vector<32xf32> to vector<32x1xf32>
    %cst_122 = arith.constant 1.280000e+02 : f32
    %294 = vector.broadcast %cst_122 : f32 to vector<32x1xf32>
    %295 = arith.divf %293, %294 : vector<32x1xf32>
    %296 = vector.broadcast %288 : vector<32x1xf32> to vector<32x128xf32>
    %297 = arith.subf %282, %296 : vector<32x128xf32>
    %cst_123 = arith.constant 9.99999974E-6 : f32
    %298 = vector.broadcast %cst_123 : f32 to vector<32x1xf32>
    %299 = arith.addf %295, %298 : vector<32x1xf32>
    %300 = math.rsqrt %299 : vector<32x1xf32>
    %301 = vector.broadcast %300 : vector<32x1xf32> to vector<32x128xf32>
    %302 = arith.mulf %297, %301 : vector<32x128xf32>
    %303 = vector.broadcast %283 : vector<1x128xf32> to vector<32x128xf32>
    %304 = arith.mulf %302, %303 : vector<32x128xf32>
    %305 = vector.broadcast %284 : vector<1x128xf32> to vector<32x128xf32>
    %306 = arith.addf %304, %305 : vector<32x128xf32>
    %c0_124 = arith.constant 0 : index
    %c0_125 = arith.constant 0 : index
    %307 = vector.load %arg20[%c0_124, %c0_125] : memref<128x512xbf16, #tpu.memory_space<vmem>>, vector<128x512xbf16>
    %308 = arith.truncf %306 : vector<32x128xf32> to vector<32x128xbf16>
    %cst_126 = arith.constant dense<0.000000e+00> : vector<32x512xf32>
    %309 = tpu.matmul %308, %307, %cst_126 {dimension_numbers = #tpu.dot_dimension_numbers<[1], [0], [0], [1], [0, 0, 1, 1], [], []>} : vector<32x128xbf16>, vector<128x512xbf16>, vector<32x512xf32> -> vector<32x512xf32>
    %c0_127 = arith.constant 0 : index
    %c0_128 = arith.constant 0 : index
    %310 = vector.load %arg21[%c0_127, %c0_128] : memref<1x512xf32, #tpu.memory_space<vmem>>, vector<1x512xf32>
    %311 = vector.broadcast %310 : vector<1x512xf32> to vector<32x512xf32>
    %312 = arith.addf %309, %311 : vector<32x512xf32>
    %cst_129 = arith.constant 0.000000e+00 : f32
    %313 = vector.broadcast %cst_129 : f32 to vector<32x512xf32>
    %314 = arith.maximumf %312, %313 : vector<32x512xf32>
    %c0_130 = arith.constant 0 : index
    %c0_131 = arith.constant 0 : index
    %315 = vector.load %arg22[%c0_130, %c0_131] : memref<512x128xbf16, #tpu.memory_space<vmem>>, vector<512x128xbf16>
    %316 = arith.truncf %314 : vector<32x512xf32> to vector<32x512xbf16>
    %cst_132 = arith.constant dense<0.000000e+00> : vector<32x128xf32>
    %317 = tpu.matmul %316, %315, %cst_132 {dimension_numbers = #tpu.dot_dimension_numbers<[1], [0], [0], [1], [0, 0, 1, 1], [], []>} : vector<32x512xbf16>, vector<512x128xbf16>, vector<32x128xf32> -> vector<32x128xf32>
    %c0_133 = arith.constant 0 : index
    %c0_134 = arith.constant 0 : index
    %318 = vector.load %arg23[%c0_133, %c0_134] : memref<1x128xf32, #tpu.memory_space<vmem>>, vector<1x128xf32>
    %319 = vector.broadcast %318 : vector<1x128xf32> to vector<32x128xf32>
    %320 = arith.addf %317, %319 : vector<32x128xf32>
    %321 = arith.addf %306, %320 : vector<32x128xf32>
    %c0_135 = arith.constant 0 : index
    %c0_136 = arith.constant 0 : index
    %c0_137 = arith.constant 0 : index
    %322 = vector.load %arg24[%c0_135, %c0_136, %c0_137] : memref<1x32x128xf32, #tpu.memory_space<vmem>>, vector<1x32x128xf32>
    %323 = vector.shape_cast %322 : vector<1x32x128xf32> to vector<32x128xf32>
    %324 = vector.shape_cast %321 : vector<32x128xf32> to vector<1x32x128xf32>
    tpu.vector_store %arg24[%c0_135, %c0_136, %c0_137], %324 {strides = array<i32>} : memref<1x32x128xf32, #tpu.memory_space<vmem>>, vector<1x32x128xf32>,
    return
  }
  func.func @transform_0(%arg0: i32, %arg1: i32) -> (i32, i32, i32) {
    %c0_i32 = arith.constant 0 : i32
    %c0_i32_0 = arith.constant 0 : i32
    %c0_i32_1 = arith.constant 0 : i32
    return %arg0, %c0_i32, %c0_i32_0 : i32, i32, i32
  }
  func.func @transform_1(%arg0: i32, %arg1: i32) -> (i32, i32, i32) {
    %c0_i32 = arith.constant 0 : i32
    %c0_i32_0 = arith.constant 0 : i32
    %c0_i32_1 = arith.constant 0 : i32
    return %arg0, %c0_i32, %c0_i32_0 : i32, i32, i32
  }
  func.func @transform_2(%arg0: i32, %arg1: i32) -> (i32, i32) {
    %c0_i32 = arith.constant 0 : i32
    %c0_i32_0 = arith.constant 0 : i32
    %c0_i32_1 = arith.constant 0 : i32
    return %c0_i32, %c0_i32_0 : i32, i32
  }
  func.func @transform_3(%arg0: i32, %arg1: i32) -> (i32, i32) {
    %c0_i32 = arith.constant 0 : i32
    %c0_i32_0 = arith.constant 0 : i32
    %c0_i32_1 = arith.constant 0 : i32
    return %c0_i32, %c0_i32_0 : i32, i32
  }
  func.func @transform_4(%arg0: i32, %arg1: i32) -> (i32, i32) {
    %c0_i32 = arith.constant 0 : i32
    %c0_i32_0 = arith.constant 0 : i32
    %c0_i32_1 = arith.constant 0 : i32
    return %c0_i32, %c0_i32_0 : i32, i32
  }
  func.func @transform_5(%arg0: i32, %arg1: i32) -> (i32, i32) {
    %c0_i32 = arith.constant 0 : i32
    %c0_i32_0 = arith.constant 0 : i32
    %c0_i32_1 = arith.constant 0 : i32
    return %c0_i32, %c0_i32_0 : i32, i32
  }
  func.func @transform_6(%arg0: i32, %arg1: i32) -> (i32, i32) {
    %c0_i32 = arith.constant 0 : i32
    %c0_i32_0 = arith.constant 0 : i32
    %c0_i32_1 = arith.constant 0 : i32
    return %c0_i32, %c0_i32_0 : i32, i32
  }
  func.func @transform_7(%arg0: i32, %arg1: i32) -> (i32, i32) {
    %c0_i32 = arith.constant 0 : i32
    %c0_i32_0 = arith.constant 0 : i32
    %c0_i32_1 = arith.constant 0 : i32
    return %c0_i32, %c0_i32_0 : i32, i32
  }
  func.func @transform_8(%arg0: i32, %arg1: i32) -> (i32, i32) {
    %c0_i32 = arith.constant 0 : i32
    %c0_i32_0 = arith.constant 0 : i32
    %c0_i32_1 = arith.constant 0 : i32
    return %c0_i32, %c0_i32_0 : i32, i32
  }
  func.func @transform_9(%arg0: i32, %arg1: i32) -> (i32, i32) {
    %c0_i32 = arith.constant 0 : i32
    %c0_i32_0 = arith.constant 0 : i32
    %c0_i32_1 = arith.constant 0 : i32
    return %c0_i32, %c0_i32_0 : i32, i32
  }
  func.func @transform_10(%arg0: i32, %arg1: i32) -> (i32, i32) {
    %c0_i32 = arith.constant 0 : i32
    %c0_i32_0 = arith.constant 0 : i32
    %c0_i32_1 = arith.constant 0 : i32
    return %c0_i32, %c0_i32_0 : i32, i32
  }
  func.func @transform_11(%arg0: i32, %arg1: i32) -> (i32, i32) {
    %c0_i32 = arith.constant 0 : i32
    %c0_i32_0 = arith.constant 0 : i32
    %c0_i32_1 = arith.constant 0 : i32
    return %c0_i32, %c0_i32_0 : i32, i32
  }
  func.func @transform_12(%arg0: i32, %arg1: i32) -> (i32, i32) {
    %c0_i32 = arith.constant 0 : i32
    %c0_i32_0 = arith.constant 0 : i32
    %c0_i32_1 = arith.constant 0 : i32
    return %c0_i32, %c0_i32_0 : i32, i32
  }
  func.func @transform_13(%arg0: i32, %arg1: i32) -> (i32, i32) {
    %c0_i32 = arith.constant 0 : i32
    %c0_i32_0 = arith.constant 0 : i32
    %c0_i32_1 = arith.constant 0 : i32
    return %c0_i32, %c0_i32_0 : i32, i32
  }
  func.func @transform_14(%arg0: i32, %arg1: i32) -> (i32, i32) {
    %c0_i32 = arith.constant 0 : i32
    %c0_i32_0 = arith.constant 0 : i32
    %c0_i32_1 = arith.constant 0 : i32
    return %c0_i32, %c0_i32_0 : i32, i32
  }
  func.func @transform_15(%arg0: i32, %arg1: i32) -> (i32, i32) {
    %c0_i32 = arith.constant 0 : i32
    %c0_i32_0 = arith.constant 0 : i32
    %c0_i32_1 = arith.constant 0 : i32
    return %c0_i32, %c0_i32_0 : i32, i32
  }
  func.func @transform_16(%arg0: i32, %arg1: i32) -> (i32, i32) {
    %c0_i32 = arith.constant 0 : i32
    %c0_i32_0 = arith.constant 0 : i32
    %c0_i32_1 = arith.constant 0 : i32
    return %c0_i32, %c0_i32_0 : i32, i32
  }
  func.func @transform_17(%arg0: i32, %arg1: i32) -> (i32, i32) {
    %c0_i32 = arith.constant 0 : i32
    %c0_i32_0 = arith.constant 0 : i32
    %c0_i32_1 = arith.constant 0 : i32
    return %c0_i32, %c0_i32_0 : i32, i32
  }
  func.func @transform_18(%arg0: i32, %arg1: i32) -> (i32, i32) {
    %c0_i32 = arith.constant 0 : i32
    %c0_i32_0 = arith.constant 0 : i32
    %c0_i32_1 = arith.constant 0 : i32
    return %c0_i32, %c0_i32_0 : i32, i32
  }
  func.func @transform_19(%arg0: i32, %arg1: i32) -> (i32, i32) {
    %c0_i32 = arith.constant 0 : i32
    %c0_i32_0 = arith.constant 0 : i32
    %c0_i32_1 = arith.constant 0 : i32
    return %c0_i32, %c0_i32_0 : i32, i32
  }
  func.func @transform_20(%arg0: i32, %arg1: i32) -> (i32, i32) {
    %c0_i32 = arith.constant 0 : i32
    %c0_i32_0 = arith.constant 0 : i32
    %c0_i32_1 = arith.constant 0 : i32
    return %c0_i32, %c0_i32_0 : i32, i32
  }
  func.func @transform_21(%arg0: i32, %arg1: i32) -> (i32, i32) {
    %c0_i32 = arith.constant 0 : i32
    %c0_i32_0 = arith.constant 0 : i32
    %c0_i32_1 = arith.constant 0 : i32
    return %c0_i32, %c0_i32_0 : i32, i32
  }
  func.func @transform_22(%arg0: i32, %arg1: i32) -> (i32, i32, i32) {
    %c0_i32 = arith.constant 0 : i32
    %c0_i32_0 = arith.constant 0 : i32
    return %arg0, %arg1, %c0_i32 : i32, i32, i32
  }
}

</mosaic_0001>

<llo_original>
// kernel: tpu_custom_call.1
$region0: #{tpu_custom_call.1}
  #allocation0 [shape = 'u32[]', space=smem, size = 0x4, offset = 0x4, fixed_abs, tag = 'smem constant byte address 0x4 - core index']
  #allocation1 [shape = 'u32[144,128]{1,0:T(1,128)}', space=vmem, size = 0x12000, scoped, tag = 'internal scratch']
  #allocation2 [shape = 'f32[32,128]{1,0:T(8,128)}', space=vmem, size = 0x4000, scoped, tag = 'scratch operand']
  %s0 = inlined_call_operand.hbm [shape: f32[2,32,128], index: 0, kind: input, shape index: {}]
  %s1 = inlined_call_operand.hbm [shape: f32[2,16,128], index: 1, kind: input, shape index: {}]
  %s2 = inlined_call_operand.hbm [shape: f32[1,128], index: 2, kind: input, shape index: {}]
  %s3 = inlined_call_operand.vmem [shape: f32[1,128], index: 3, kind: input, shape index: {}]
  %s4 = inlined_call_operand.hbm [shape: bf16[128,384], index: 4, kind: input, shape index: {}]
  %s5 = inlined_call_operand.vmem [shape: f32[1,384], index: 5, kind: input, shape index: {}]
  %s6 = inlined_call_operand.hbm [shape: bf16[128,128], index: 6, kind: input, shape index: {}]
  %s7 = inlined_call_operand.vmem [shape: f32[1,128], index: 7, kind: input, shape index: {}]
  %s8 = inlined_call_operand.vmem [shape: f32[1,128], index: 8, kind: input, shape index: {}]
  %s9 = inlined_call_operand.vmem [shape: f32[1,128], index: 9, kind: input, shape index: {}]
  %s10 = inlined_call_operand.hbm [shape: bf16[128,128], index: 10, kind: input, shape index: {}]
  %s11 = inlined_call_operand.vmem [shape: f32[1,128], index: 11, kind: input, shape index: {}]
  %s12 = inlined_call_operand.hbm [shape: bf16[128,256], index: 12, kind: input, shape index: {}]
  %s13 = inlined_call_operand.vmem [shape: f32[1,256], index: 13, kind: input, shape index: {}]
  %s14 = inlined_call_operand.hbm [shape: bf16[128,128], index: 14, kind: input, shape index: {}]
  %s15 = inlined_call_operand.vmem [shape: f32[1,128], index: 15, kind: input, shape index: {}]
  %s16 = inlined_call_operand.vmem [shape: f32[1,128], index: 16, kind: input, shape index: {}]
  %s17 = inlined_call_operand.vmem [shape: f32[1,128], index: 17, kind: input, shape index: {}]
  %s18 = inlined_call_operand.hbm [shape: bf16[128,512], index: 18, kind: input, shape index: {}]
  %s19 = inlined_call_operand.vmem [shape: f32[1,512], index: 19, kind: input, shape index: {}]
  %s20 = inlined_call_operand.hbm [shape: bf16[512,128], index: 20, kind: input, shape index: {}]
  %s21 = inlined_call_operand.vmem [shape: f32[1,128], index: 21, kind: input, shape index: {}]
  %s22 = inlined_call_operand.hbm [shape: f32[2,32,128], index: 22, kind: output, shape index: {}]
  %s23 = sld [smem:[#allocation0]]
  $region161: #{tpu_custom_call.1} parent=0
    _
  %s25 = ssub.s32 1, %s23
  %s26 = scalar_select 0, %s25, %s23
  $region1: #{tpu_custom_call.1} parent=0
    #allocation3 [shape = 'u8[32768]{0}', space=vmem, size = 0x8000, scoped, tag = 'input window, operand 0']
    #allocation4 [shape = 's32[2]{0}', space=sflag, size = 0x8, scoped, tag = 'scoped memory for tpu_custom_call.1']
    #allocation5 [shape = 's32[2]{0}', space=sflag, size = 0x8, scoped, tag = 'scoped memory for tpu_custom_call.1']
    #allocation6 [shape = 'u8[16384]{0}', space=vmem, size = 0x4000, scoped, tag = 'input window, operand 1']
    #allocation7 [shape = 's32[2]{0}', space=sflag, size = 0x8, scoped, tag = 'scoped memory for tpu_custom_call.1']
    #allocation8 [shape = 'u8[512]{0}', space=vmem, size = 0x400, scoped, tag = 'input window, operand 2, single buffered']
    #allocation9 [shape = 'u8[98304]{0}', space=vmem, size = 0x18000, scoped, tag = 'input window, operand 4, single buffered']
    #allocation10 [shape = 's32[1]{0}', space=sflag, size = 0x4, scoped, tag = 'scoped memory for tpu_custom_call.1']
    #allocation11 [shape = 'u8[32768]{0}', space=vmem, size = 0x8000, scoped, tag = 'input window, operand 6, single buffered']
    #allocation12 [shape = 'u8[32768]{0}', space=vmem, size = 0x8000, scoped, tag = 'input window, operand 10, single buffered']
    #allocation13 [shape = 's32[1]{0}', space=sflag, size = 0x4, scoped, tag = 'scoped memory for tpu_custom_call.1']
    #allocation14 [shape = 'u8[65536]{0}', space=vmem, size = 0x10000, scoped, tag = 'input window, operand 12, single buffered']
    #allocation15 [shape = 'u8[32768]{0}', space=vmem, size = 0x8000, scoped, tag = 'input window, operand 14, single buffered']
    #allocation16 [shape = 's32[1]{0}', space=sflag, size = 0x4, scoped, tag = 'scoped memory for tpu_custom_call.1']
    #allocation17 [shape = 'u8[131072]{0}', space=vmem, size = 0x20000, scoped, tag = 'input window, operand 18, single buffered']
    #allocation18 [shape = 'u8[131072]{0}', space=vmem, size = 0x20000, scoped, tag = 'input window, operand 20, single buffered']
    #allocation19 [shape = 's32[1]{0}', space=sflag, size = 0x4, scoped, tag = 'scoped memory for tpu_custom_call.1']
    #allocation20 [shape = 'u8[32768]{0}', space=vmem, size = 0x8000, scoped, tag = 'output window, operand 0']
    %27 = vsyncpa [#allocation4], 0
    %s28 = scalar_lea.sflag [#allocation4], 1
    %29 = vsyncpa %s28, 0
    %30 = vsyncpa [#allocation7], 0
    %s31 = scalar_lea.sflag [#allocation7], 1
    %32 = vsyncpa %s31, 0
    %33 = vsyncpa [#allocation10], 0
    %34 = vsyncpa [#allocation13], 0
    %35 = vsyncpa [#allocation16], 0
    %36 = vsyncpa [#allocation19], 0
    %37 = vsyncpa [#allocation5], 0
    %s38 = scalar_lea.sflag [#allocation5], 1
    %39 = vsyncpa %s38, 0
    loop: start=0, step=1, limit=4
    $region2: #{tpu_custom_call.1} parent=1 // loop_pre_header
      _
    $region3: #{tpu_custom_call.1} parent=1 // loop_header
      %s41 = sphi 0, %s45
      %p42 = scmp.ge.s32.totalorder %s41, 4
      %s48 = sphi 0, %s60
      %s49 = sphi 0, %s56
      %s50 = sphi 0, %s48
      %s51 = sphi 0, %s49
      %s52 = sphi 0, %s50
      %s53 = sphi 0, %s51
      %s63 = sphi 0, %s65
      %s66 = sphi 0, %s63
      %s67 = sphi 0, %s66
      %s83 = sphi 0, %s67
      %s89 = sphi 0, %s91
      %s92 = sphi 0, %s89
      %s93 = sphi 0, %s92
      %s109 = sphi 0, %s93
      %s113 = sphi 0, %s113
      %s115 = sphi 0, %s113
      %s116 = sphi 0, %s115
      %s130 = sphi 0, %s116
      %s134 = sphi 0, %s134
      %s136 = sphi 0, %s134
      %s137 = sphi 0, %s136
      %s151 = sphi 0, %s137
      %s155 = sphi 0, %s155
      %s157 = sphi 0, %s155
      %s158 = sphi 0, %s157
      %s172 = sphi 0, %s158
      %s176 = sphi 0, %s176
      %s178 = sphi 0, %s176
      %s179 = sphi 0, %s178
      %s193 = sphi 0, %s179
      %s197 = sphi 0, %s197
      %s199 = sphi 0, %s197
      %s200 = sphi 0, %s199
      %s214 = sphi 0, %s200
      %s218 = sphi 0, %s218
      %s220 = sphi 0, %s218
      %s221 = sphi 0, %s220
      %s235 = sphi 0, %s221
      %s239 = sphi 0, %s239
      %s241 = sphi 0, %s239
      %s242 = sphi 0, %s241
      %s256 = sphi 0, %s242
      %s260 = sphi 0, %s260
      %s262 = sphi 0, %s260
      %s263 = sphi 0, %s262
      %s277 = sphi 0, %s263
      %s281 = sphi 0, %s281
      %s283 = sphi 0, %s281
      %s284 = sphi 0, %s283
      %s298 = sphi 0, %s284
      %s302 = sphi 0, %s302
      %s304 = sphi 0, %s302
      %s305 = sphi 0, %s304
      %s319 = sphi 0, %s305
      %s323 = sphi 0, %s323
      %s325 = sphi 0, %s323
      %s326 = sphi 0, %s325
      %s340 = sphi 0, %s326
      %s344 = sphi 0, %s344
      %s346 = sphi 0, %s344
      %s347 = sphi 0, %s346
      %s361 = sphi 0, %s347
      %s365 = sphi 0, %s365
      %s367 = sphi 0, %s365
      %s368 = sphi 0, %s367
      %s382 = sphi 0, %s368
      %s386 = sphi 0, %s386
      %s388 = sphi 0, %s386
      %s389 = sphi 0, %s388
      %s403 = sphi 0, %s389
      %s407 = sphi 0, %s407
      %s409 = sphi 0, %s407
      %s410 = sphi 0, %s409
      %s424 = sphi 0, %s410
      %s428 = sphi 0, %s428
      %s430 = sphi 0, %s428
      %s431 = sphi 0, %s430
      %s445 = sphi 0, %s431
      %s449 = sphi 0, %s449
      %s451 = sphi 0, %s449
      %s452 = sphi 0, %s451
      %s466 = sphi 0, %s452
      %s470 = sphi 0, %s470
      %s472 = sphi 0, %s470
      %s473 = sphi 0, %s472
      %s487 = sphi 0, %s473
      %s491 = sphi 0, %s491
      %s493 = sphi 0, %s491
      %s494 = sphi 0, %s493
      %s508 = sphi 0, %s494
      %s512 = sphi 0, %s512
      %s514 = sphi 0, %s512
      %s515 = sphi 0, %s514
      %s529 = sphi 0, %s515
      %s537 = sphi 0, %s539
      %s540 = sphi 0, %s537
      %s541 = sphi 0, %s540
      %s557 = sphi 0, %s541
    $region4: #{tpu_custom_call.1} parent=1 // loop_header_branch
      %44 = sbr.rel (%p42) target = $region8
    $region5: #{tpu_custom_call.1} parent=1 // loop_body
      %s46 = ssub.s32 %s41, 1
      %s47 = ssub.s32 %s41, 2
      %s54 = sadd.s32 1, %s49
      %p55 = scmp.ge.s32.totalorder %s54, 1
      %s56 = scalar_select %p55, 0, %s54
      %s57 = sadd.s32 1, %s48
      %s58 = scalar_select %p55, %s57, %s48
      %p59 = scmp.ge.s32.totalorder %s58, 2
      %s60 = scalar_select %p59, 0, %s58
      %s61 = ssub.s32 %s48, %s60
      %p62 = scmp.eq.s32.totalorder %s61, 0
      %s64 = sadd.s32 %s63, 1
      %s65 = scalar_select %p62, %s63, %s64
      %p68 = pneg %p62
      %p69 = scmp.eq.s32.totalorder %s41, 1
      %p70 = por %p68, %p69
      %p71 = scmp.ne.s32.totalorder %s63, %s66
      %p72 = scmp.eq.s32.totalorder %s41, 0
      %p73 = por %p71, %p72
      %p74 = scmp.ne.s32.totalorder %s63, %s66
      %p75 = scmp.eq.s32.totalorder %s46, 1
      %p76 = por %p74, %p75
      %p77 = scmp.ne.s32.totalorder %s66, %s67
      %p78 = scmp.eq.s32.totalorder %s46, 0
      %p79 = por %p77, %p78
      %p80 = scmp.ne.s32.totalorder %s66, %s67
      %p81 = scmp.eq.s32.totalorder %s47, 1
      %p82 = por %p80, %p81
      %p84 = scmp.ne.s32.totalorder %s67, %s83
      %p85 = scmp.eq.s32.totalorder %s47, 0
      %p86 = por %p84, %p85
      %s87 = ssub.s32 %s48, %s60
      %p88 = scmp.eq.s32.totalorder %s87, 0
      %s90 = sadd.s32 %s89, 1
      %s91 = scalar_select %p88, %s89, %s90
      %p94 = pneg %p88
      %p95 = scmp.eq.s32.totalorder %s41, 1
      %p96 = por %p94, %p95
      %p97 = scmp.ne.s32.totalorder %s89, %s92
      %p98 = scmp.eq.s32.totalorder %s41, 0
      %p99 = por %p97, %p98
      %p100 = scmp.ne.s32.totalorder %s89, %s92
      %p101 = scmp.eq.s32.totalorder %s46, 1
      %p102 = por %p100, %p101
      %p103 = scmp.ne.s32.totalorder %s92, %s93
      %p104 = scmp.eq.s32.totalorder %s46, 0
      %p105 = por %p103, %p104
      %p106 = scmp.ne.s32.totalorder %s92, %s93
      %p107 = scmp.eq.s32.totalorder %s47, 1
      %p108 = por %p106, %p107
      %p110 = scmp.ne.s32.totalorder %s93, %s109
      %p111 = scmp.eq.s32.totalorder %s47, 0
      %p112 = por %p110, %p111
      %s114 = sadd.s32 %s113, 1
      %p117 = scmp.eq.s32.totalorder %s41, 1
      %p118 = scmp.ne.s32.totalorder %s113, %s115
      %p119 = scmp.eq.s32.totalorder %s41, 0
      %p120 = por %p118, %p119
      %p121 = scmp.ne.s32.totalorder %s113, %s115
      %p122 = scmp.eq.s32.totalorder %s46, 1
      %p123 = por %p121, %p122
      %p124 = scmp.ne.s32.totalorder %s115, %s116
      %p125 = scmp.eq.s32.totalorder %s46, 0
      %p126 = por %p124, %p125
      %p127 = scmp.ne.s32.totalorder %s115, %s116
      %p128 = scmp.eq.s32.totalorder %s47, 1
      %p129 = por %p127, %p128
      %p131 = scmp.ne.s32.totalorder %s116, %s130
      %p132 = scmp.eq.s32.totalorder %s47, 0
      %p133 = por %p131, %p132
      %s135 = sadd.s32 %s134, 1
      %p138 = scmp.eq.s32.totalorder %s41, 1
      %p139 = scmp.ne.s32.totalorder %s134, %s136
      %p140 = scmp.eq.s32.totalorder %s41, 0
      %p141 = por %p139, %p140
      %p142 = scmp.ne.s32.totalorder %s134, %s136
      %p143 = scmp.eq.s32.totalorder %s46, 1
      %p144 = por %p142, %p143
      %p145 = scmp.ne.s32.totalorder %s136, %s137
      %p146 = scmp.eq.s32.totalorder %s46, 0
      %p147 = por %p145, %p146
      %p148 = scmp.ne.s32.totalorder %s136, %s137
      %p149 = scmp.eq.s32.totalorder %s47, 1
      %p150 = por %p148, %p149
      %p152 = scmp.ne.s32.totalorder %s137, %s151
      %p153 = scmp.eq.s32.totalorder %s47, 0
      %p154 = por %p152, %p153
      %s156 = sadd.s32 %s155, 1
      %p159 = scmp.eq.s32.totalorder %s41, 1
      %p160 = scmp.ne.s32.totalorder %s155, %s157
      %p161 = scmp.eq.s32.totalorder %s41, 0
      %p162 = por %p160, %p161
      %p163 = scmp.ne.s32.totalorder %s155, %s157
      %p164 = scmp.eq.s32.totalorder %s46, 1
      %p165 = por %p163, %p164
      %p166 = scmp.ne.s32.totalorder %s157, %s158
      %p167 = scmp.eq.s32.totalorder %s46, 0
      %p168 = por %p166, %p167
      %p169 = scmp.ne.s32.totalorder %s157, %s158
      %p170 = scmp.eq.s32.totalorder %s47, 1
      %p171 = por %p169, %p170
      %p173 = scmp.ne.s32.totalorder %s158, %s172
      %p174 = scmp.eq.s32.totalorder %s47, 0
      %p175 = por %p173, %p174
      %s177 = sadd.s32 %s176, 1
      %p180 = scmp.eq.s32.totalorder %s41, 1
      %p181 = scmp.ne.s32.totalorder %s176, %s178
      %p182 = scmp.eq.s32.totalorder %s41, 0
      %p183 = por %p181, %p182
      %p184 = scmp.ne.s32.totalorder %s176, %s178
      %p185 = scmp.eq.s32.totalorder %s46, 1
      %p186 = por %p184, %p185
      %p187 = scmp.ne.s32.totalorder %s178, %s179
      %p188 = scmp.eq.s32.totalorder %s46, 0
      %p189 = por %p187, %p188
      %p190 = scmp.ne.s32.totalorder %s178, %s179
      %p191 = scmp.eq.s32.totalorder %s47, 1
      %p192 = por %p190, %p191
      %p194 = scmp.ne.s32.totalorder %s179, %s193
      %p195 = scmp.eq.s32.totalorder %s47, 0
      %p196 = por %p194, %p195
      %s198 = sadd.s32 %s197, 1
      %p201 = scmp.eq.s32.totalorder %s41, 1
      %p202 = scmp.ne.s32.totalorder %s197, %s199
      %p203 = scmp.eq.s32.totalorder %s41, 0
      %p204 = por %p202, %p203
      %p205 = scmp.ne.s32.totalorder %s197, %s199
      %p206 = scmp.eq.s32.totalorder %s46, 1
      %p207 = por %p205, %p206
      %p208 = scmp.ne.s32.totalorder %s199, %s200
      %p209 = scmp.eq.s32.totalorder %s46, 0
      %p210 = por %p208, %p209
      %p211 = scmp.ne.s32.totalorder %s199, %s200
      %p212 = scmp.eq.s32.totalorder %s47, 1
      %p213 = por %p211, %p212
      %p215 = scmp.ne.s32.totalorder %s200, %s214
      %p216 = scmp.eq.s32.totalorder %s47, 0
      %p217 = por %p215, %p216
      %s219 = sadd.s32 %s218, 1
      %p222 = scmp.eq.s32.totalorder %s41, 1
      %p223 = scmp.ne.s32.totalorder %s218, %s220
      %p224 = scmp.eq.s32.totalorder %s41, 0
      %p225 = por %p223, %p224
      %p226 = scmp.ne.s32.totalorder %s218, %s220
      %p227 = scmp.eq.s32.totalorder %s46, 1
      %p228 = por %p226, %p227
      %p229 = scmp.ne.s32.totalorder %s220, %s221
      %p230 = scmp.eq.s32.totalorder %s46, 0
      %p231 = por %p229, %p230
      %p232 = scmp.ne.s32.totalorder %s220, %s221
      %p233 = scmp.eq.s32.totalorder %s47, 1
      %p234 = por %p232, %p233
      %p236 = scmp.ne.s32.totalorder %s221, %s235
      %p237 = scmp.eq.s32.totalorder %s47, 0
      %p238 = por %p236, %p237
      %s240 = sadd.s32 %s239, 1
      %p243 = scmp.eq.s32.totalorder %s41, 1
      %p244 = scmp.ne.s32.totalorder %s239, %s241
      %p245 = scmp.eq.s32.totalorder %s41, 0
      %p246 = por %p244, %p245
      %p247 = scmp.ne.s32.totalorder %s239, %s241
      %p248 = scmp.eq.s32.totalorder %s46, 1
      %p249 = por %p247, %p248
      %p250 = scmp.ne.s32.totalorder %s241, %s242
      %p251 = scmp.eq.s32.totalorder %s46, 0
      %p252 = por %p250, %p251
      %p253 = scmp.ne.s32.totalorder %s241, %s242
      %p254 = scmp.eq.s32.totalorder %s47, 1
      %p255 = por %p253, %p254
      %p257 = scmp.ne.s32.totalorder %s242, %s256
      %p258 = scmp.eq.s32.totalorder %s47, 0
      %p259 = por %p257, %p258
      %s261 = sadd.s32 %s260, 1
      %p264 = scmp.eq.s32.totalorder %s41, 1
      %p265 = scmp.ne.s32.totalorder %s260, %s262
      %p266 = scmp.eq.s32.totalorder %s41, 0
      %p267 = por %p265, %p266
      %p268 = scmp.ne.s32.totalorder %s260, %s262
      %p269 = scmp.eq.s32.totalorder %s46, 1
      %p270 = por %p268, %p269
      %p271 = scmp.ne.s32.totalorder %s262, %s263
      %p272 = scmp.eq.s32.totalorder %s46, 0
      %p273 = por %p271, %p272
      %p274 = scmp.ne.s32.totalorder %s262, %s263
      %p275 = scmp.eq.s32.totalorder %s47, 1
      %p276 = por %p274, %p275
      %p278 = scmp.ne.s32.totalorder %s263, %s277
      %p279 = scmp.eq.s32.totalorder %s47, 0
      %p280 = por %p278, %p279
      %s282 = sadd.s32 %s281, 1
      %p285 = scmp.eq.s32.totalorder %s41, 1
      %p286 = scmp.ne.s32.totalorder %s281, %s283
      %p287 = scmp.eq.s32.totalorder %s41, 0
      %p288 = por %p286, %p287
      %p289 = scmp.ne.s32.totalorder %s281, %s283
      %p290 = scmp.eq.s32.totalorder %s46, 1
      %p291 = por %p289, %p290
      %p292 = scmp.ne.s32.totalorder %s283, %s284
      %p293 = scmp.eq.s32.totalorder %s46, 0
      %p294 = por %p292, %p293
      %p295 = scmp.ne.s32.totalorder %s283, %s284
      %p296 = scmp.eq.s32.totalorder %s47, 1
      %p297 = por %p295, %p296
      %p299 = scmp.ne.s32.totalorder %s284, %s298
      %p300 = scmp.eq.s32.totalorder %s47, 0
      %p301 = por %p299, %p300
      %s303 = sadd.s32 %s302, 1
      %p306 = scmp.eq.s32.totalorder %s41, 1
      %p307 = scmp.ne.s32.totalorder %s302, %s304
      %p308 = scmp.eq.s32.totalorder %s41, 0
      %p309 = por %p307, %p308
      %p310 = scmp.ne.s32.totalorder %s302, %s304
      %p311 = scmp.eq.s32.totalorder %s46, 1
      %p312 = por %p310, %p311
      %p313 = scmp.ne.s32.totalorder %s304, %s305
      %p314 = scmp.eq.s32.totalorder %s46, 0
      %p315 = por %p313, %p314
      %p316 = scmp.ne.s32.totalorder %s304, %s305
      %p317 = scmp.eq.s32.totalorder %s47, 1
      %p318 = por %p316, %p317
      %p320 = scmp.ne.s32.totalorder %s305, %s319
      %p321 = scmp.eq.s32.totalorder %s47, 0
      %p322 = por %p320, %p321
      %s324 = sadd.s32 %s323, 1
      %p327 = scmp.eq.s32.totalorder %s41, 1
      %p328 = scmp.ne.s32.totalorder %s323, %s325
      %p329 = scmp.eq.s32.totalorder %s41, 0
      %p330 = por %p328, %p329
      %p331 = scmp.ne.s32.totalorder %s323, %s325
      %p332 = scmp.eq.s32.totalorder %s46, 1
      %p333 = por %p331, %p332
      %p334 = scmp.ne.s32.totalorder %s325, %s326
      %p335 = scmp.eq.s32.totalorder %s46, 0
      %p336 = por %p334, %p335
      %p337 = scmp.ne.s32.totalorder %s325, %s326
      %p338 = scmp.eq.s32.totalorder %s47, 1
      %p339 = por %p337, %p338
      %p341 = scmp.ne.s32.totalorder %s326, %s340
      %p342 = scmp.eq.s32.totalorder %s47, 0
      %p343 = por %p341, %p342
      %s345 = sadd.s32 %s344, 1
      %p348 = scmp.eq.s32.totalorder %s41, 1
      %p349 = scmp.ne.s32.totalorder %s344, %s346
      %p350 = scmp.eq.s32.totalorder %s41, 0
      %p351 = por %p349, %p350
      %p352 = scmp.ne.s32.totalorder %s344, %s346
      %p353 = scmp.eq.s32.totalorder %s46, 1
      %p354 = por %p352, %p353
      %p355 = scmp.ne.s32.totalorder %s346, %s347
      %p356 = scmp.eq.s32.totalorder %s46, 0
      %p357 = por %p355, %p356
      %p358 = scmp.ne.s32.totalorder %s346, %s347
      %p359 = scmp.eq.s32.totalorder %s47, 1
      %p360 = por %p358, %p359
      %p362 = scmp.ne.s32.totalorder %s347, %s361
      %p363 = scmp.eq.s32.totalorder %s47, 0
      %p364 = por %p362, %p363
      %s366 = sadd.s32 %s365, 1
      %p369 = scmp.eq.s32.totalorder %s41, 1
      %p370 = scmp.ne.s32.totalorder %s365, %s367
      %p371 = scmp.eq.s32.totalorder %s41, 0
      %p372 = por %p370, %p371
      %p373 = scmp.ne.s32.totalorder %s365, %s367
      %p374 = scmp.eq.s32.totalorder %s46, 1
      %p375 = por %p373, %p374
      %p376 = scmp.ne.s32.totalorder %s367, %s368
      %p377 = scmp.eq.s32.totalorder %s46, 0
      %p378 = por %p376, %p377
      %p379 = scmp.ne.s32.totalorder %s367, %s368
      %p380 = scmp.eq.s32.totalorder %s47, 1
      %p381 = por %p379, %p380
      %p383 = scmp.ne.s32.totalorder %s368, %s382
      %p384 = scmp.eq.s32.totalorder %s47, 0
      %p385 = por %p383, %p384
      %s387 = sadd.s32 %s386, 1
      %p390 = scmp.eq.s32.totalorder %s41, 1
      %p391 = scmp.ne.s32.totalorder %s386, %s388
      %p392 = scmp.eq.s32.totalorder %s41, 0
      %p393 = por %p391, %p392
      %p394 = scmp.ne.s32.totalorder %s386, %s388
      %p395 = scmp.eq.s32.totalorder %s46, 1
      %p396 = por %p394, %p395
      %p397 = scmp.ne.s32.totalorder %s388, %s389
      %p398 = scmp.eq.s32.totalorder %s46, 0
      %p399 = por %p397, %p398
      %p400 = scmp.ne.s32.totalorder %s388, %s389
      %p401 = scmp.eq.s32.totalorder %s47, 1
      %p402 = por %p400, %p401
      %p404 = scmp.ne.s32.totalorder %s389, %s403
      %p405 = scmp.eq.s32.totalorder %s47, 0
      %p406 = por %p404, %p405
      %s408 = sadd.s32 %s407, 1
      %p411 = scmp.eq.s32.totalorder %s41, 1
      %p412 = scmp.ne.s32.totalorder %s407, %s409
      %p413 = scmp.eq.s32.totalorder %s41, 0
      %p414 = por %p412, %p413
      %p415 = scmp.ne.s32.totalorder %s407, %s409
      %p416 = scmp.eq.s32.totalorder %s46, 1
      %p417 = por %p415, %p416
      %p418 = scmp.ne.s32.totalorder %s409, %s410
      %p419 = scmp.eq.s32.totalorder %s46, 0
      %p420 = por %p418, %p419
      %p421 = scmp.ne.s32.totalorder %s409, %s410
      %p422 = scmp.eq.s32.totalorder %s47, 1
      %p423 = por %p421, %p422
      %p425 = scmp.ne.s32.totalorder %s410, %s424
      %p426 = scmp.eq.s32.totalorder %s47, 0
      %p427 = por %p425, %p426
      %s429 = sadd.s32 %s428, 1
      %p432 = scmp.eq.s32.totalorder %s41, 1
      %p433 = scmp.ne.s32.totalorder %s428, %s430
      %p434 = scmp.eq.s32.totalorder %s41, 0
      %p435 = por %p433, %p434
      %p436 = scmp.ne.s32.totalorder %s428, %s430
      %p437 = scmp.eq.s32.totalorder %s46, 1
      %p438 = por %p436, %p437
      %p439 = scmp.ne.s32.totalorder %s430, %s431
      %p440 = scmp.eq.s32.totalorder %s46, 0
      %p441 = por %p439, %p440
      %p442 = scmp.ne.s32.totalorder %s430, %s431
      %p443 = scmp.eq.s32.totalorder %s47, 1
      %p444 = por %p442, %p443
      %p446 = scmp.ne.s32.totalorder %s431, %s445
      %p447 = scmp.eq.s32.totalorder %s47, 0
      %p448 = por %p446, %p447
      %s450 = sadd.s32 %s449, 1
      %p453 = scmp.eq.s32.totalorder %s41, 1
      %p454 = scmp.ne.s32.totalorder %s449, %s451
      %p455 = scmp.eq.s32.totalorder %s41, 0
      %p456 = por %p454, %p455
      %p457 = scmp.ne.s32.totalorder %s449, %s451
      %p458 = scmp.eq.s32.totalorder %s46, 1
      %p459 = por %p457, %p458
      %p460 = scmp.ne.s32.totalorder %s451, %s452
      %p461 = scmp.eq.s32.totalorder %s46, 0
      %p462 = por %p460, %p461
      %p463 = scmp.ne.s32.totalorder %s451, %s452
      %p464 = scmp.eq.s32.totalorder %s47, 1
      %p465 = por %p463, %p464
      %p467 = scmp.ne.s32.totalorder %s452, %s466
      %p468 = scmp.eq.s32.totalorder %s47, 0
      %p469 = por %p467, %p468
      %s471 = sadd.s32 %s470, 1
      %p474 = scmp.eq.s32.totalorder %s41, 1
      %p475 = scmp.ne.s32.totalorder %s470, %s472
      %p476 = scmp.eq.s32.totalorder %s41, 0
      %p477 = por %p475, %p476
      %p478 = scmp.ne.s32.totalorder %s470, %s472
      %p479 = scmp.eq.s32.totalorder %s46, 1
      %p480 = por %p478, %p479
      %p481 = scmp.ne.s32.totalorder %s472, %s473
      %p482 = scmp.eq.s32.totalorder %s46, 0
      %p483 = por %p481, %p482
      %p484 = scmp.ne.s32.totalorder %s472, %s473
      %p485 = scmp.eq.s32.totalorder %s47, 1
      %p486 = por %p484, %p485
      %p488 = scmp.ne.s32.totalorder %s473, %s487
      %p489 = scmp.eq.s32.totalorder %s47, 0
      %p490 = por %p488, %p489
      %s492 = sadd.s32 %s491, 1
      %p495 = scmp.eq.s32.totalorder %s41, 1
      %p496 = scmp.ne.s32.totalorder %s491, %s493
      %p497 = scmp.eq.s32.totalorder %s41, 0
      %p498 = por %p496, %p497
      %p499 = scmp.ne.s32.totalorder %s491, %s493
      %p500 = scmp.eq.s32.totalorder %s46, 1
      %p501 = por %p499, %p500
      %p502 = scmp.ne.s32.totalorder %s493, %s494
      %p503 = scmp.eq.s32.totalorder %s46, 0
      %p504 = por %p502, %p503
      %p505 = scmp.ne.s32.totalorder %s493, %s494
      %p506 = scmp.eq.s32.totalorder %s47, 1
      %p507 = por %p505, %p506
      %p509 = scmp.ne.s32.totalorder %s494, %s508
      %p510 = scmp.eq.s32.totalorder %s47, 0
      %p511 = por %p509, %p510
      %s513 = sadd.s32 %s512, 1
      %p516 = scmp.eq.s32.totalorder %s41, 1
      %p517 = scmp.ne.s32.totalorder %s512, %s514
      %p518 = scmp.eq.s32.totalorder %s41, 0
      %p519 = por %p517, %p518
      %p520 = scmp.ne.s32.totalorder %s512, %s514
      %p521 = scmp.eq.s32.totalorder %s46, 1
      %p522 = por %p520, %p521
      %p523 = scmp.ne.s32.totalorder %s514, %s515
      %p524 = scmp.eq.s32.totalorder %s46, 0
      %p525 = por %p523, %p524
      %p526 = scmp.ne.s32.totalorder %s514, %s515
      %p527 = scmp.eq.s32.totalorder %s47, 1
      %p528 = por %p526, %p527
      %p530 = scmp.ne.s32.totalorder %s515, %s529
      %p531 = scmp.eq.s32.totalorder %s47, 0
      %p532 = por %p530, %p531
      %s533 = ssub.s32 %s48, %s60
      %s534 = ssub.s32 %s49, %s56
      %s535 = sor.u32 %s533, %s534
      %p536 = scmp.eq.s32.totalorder %s535, 0
      %s538 = sadd.s32 %s537, 1
      %s539 = scalar_select %p536, %s537, %s538
      %p542 = pneg %p536
      %p543 = scmp.eq.s32.totalorder %s41, 1
      %p544 = por %p542, %p543
      %p545 = scmp.ne.s32.totalorder %s537, %s540
      %p546 = scmp.eq.s32.totalorder %s41, 0
      %p547 = por %p545, %p546
      %p548 = scmp.ne.s32.totalorder %s537, %s540
      %p549 = scmp.eq.s32.totalorder %s46, 1
      %p550 = por %p548, %p549
      %p551 = scmp.ne.s32.totalorder %s540, %s541
      %p552 = scmp.eq.s32.totalorder %s46, 0
      %p553 = por %p551, %p552
      %p554 = scmp.ne.s32.totalorder %s540, %s541
      %p555 = scmp.eq.s32.totalorder %s47, 1
      %p556 = por %p554, %p555
      %p558 = scmp.ne.s32.totalorder %s541, %s557
      %p559 = scmp.eq.s32.totalorder %s47, 0
      %p560 = por %p558, %p559
      %p561 = scmp.le.s32.totalorder 1, %s41
      %p562 = scmp.lt.s32.totalorder %s41, 3
      %p563 = pnand %p561, %p562
      %p564 = pneg %p563
      // Predicated region
      $region9: #{tpu_custom_call.1} parent=5 // pred_check
        _
      $region10: #{tpu_custom_call.1} parent=5 // pred_check_branch
        %566 = sbr.rel (%p563) target = $region12
      $region11: #{tpu_custom_call.1} parent=5 // pred_region
        %s567 = ssub.s32 %s41, 1
        // Predicated region
        $region13: #{tpu_custom_call.1} parent=11 // pred_check
          %p568 = pneg %p126
        $region14: #{tpu_custom_call.1} parent=11 // pred_check_branch
          %570 = sbr.rel (%p568) target = $region16
        $region15: #{tpu_custom_call.1} parent=11 // pred_region
          %s572 = ssub.s32 16, 16
          %573 = vsyncadd [#allocation7], %s572
          %s575 = sshll.u32 [#allocation8], 4
          %s576 = int_to_ptr.vmem [resolvable:$true] %s575
          %578 = dma.hbm_to_vmem [thread:$0]  %s2, 16, %s576, [#allocation7]
        $region16: #{tpu_custom_call.1} parent=11 // pred_fallthru
          _
        // Predicated region
        $region17: #{tpu_custom_call.1} parent=11 // pred_check
          %p579 = pneg %p147
        $region18: #{tpu_custom_call.1} parent=11 // pred_check_branch
          %581 = sbr.rel (%p579) target = $region20
        $region19: #{tpu_custom_call.1} parent=11 // pred_region
          _
        $region20: #{tpu_custom_call.1} parent=11 // pred_fallthru
          _
        // Predicated region
        $region21: #{tpu_custom_call.1} parent=11 // pred_check
          %p582 = pneg %p168
        $region22: #{tpu_custom_call.1} parent=11 // pred_check_branch
          %584 = sbr.rel (%p582) target = $region24
        $region23: #{tpu_custom_call.1} parent=11 // pred_region
          %s586 = ssub.s32 3072, 3072
          %587 = vsyncadd [#allocation10], %s586
          %s588 = sshll.u32 [#allocation9], 4
          %s589 = int_to_ptr.vmem [resolvable:$true] %s588
          %594 = dma.hbm_to_vmem [thread:$0]  %s4, 3072, %s589, [#allocation10], 192, 192, 12
        $region24: #{tpu_custom_call.1} parent=11 // pred_fallthru
          _
        // Predicated region
        $region25: #{tpu_custom_call.1} parent=11 // pred_check
          %p595 = pneg %p189
        $region26: #{tpu_custom_call.1} parent=11 // pred_check_branch
          %597 = sbr.rel (%p595) target = $region28
        $region27: #{tpu_custom_call.1} parent=11 // pred_region
          _
        $region28: #{tpu_custom_call.1} parent=11 // pred_fallthru
          _
        // Predicated region
        $region29: #{tpu_custom_call.1} parent=11 // pred_check
          %p598 = pneg %p210
        $region30: #{tpu_custom_call.1} parent=11 // pred_check_branch
          %600 = sbr.rel (%p598) target = $region32
        $region31: #{tpu_custom_call.1} parent=11 // pred_region
          %s602 = ssub.s32 1024, 1024
          %603 = vsyncadd [#allocation10], %s602
          %s604 = sshll.u32 [#allocation11], 4
          %s605 = int_to_ptr.vmem [resolvable:$true] %s604
          %610 = dma.hbm_to_vmem [thread:$0]  %s6, 1024, %s605, [#allocation10], 64, 64, 4
        $region32: #{tpu_custom_call.1} parent=11 // pred_fallthru
          _
        // Predicated region
        $region33: #{tpu_custom_call.1} parent=11 // pred_check
          %p611 = pneg %p231
        $region34: #{tpu_custom_call.1} parent=11 // pred_check_branch
          %613 = sbr.rel (%p611) target = $region36
        $region35: #{tpu_custom_call.1} parent=11 // pred_region
          _
        $region36: #{tpu_custom_call.1} parent=11 // pred_fallthru
          _
        // Predicated region
        $region37: #{tpu_custom_call.1} parent=11 // pred_check
          %p614 = pneg %p252
        $region38: #{tpu_custom_call.1} parent=11 // pred_check_branch
          %616 = sbr.rel (%p614) target = $region40
        $region39: #{tpu_custom_call.1} parent=11 // pred_region
          _
        $region40: #{tpu_custom_call.1} parent=11 // pred_fallthru
          _
        // Predicated region
        $region41: #{tpu_custom_call.1} parent=11 // pred_check
          %p617 = pneg %p273
        $region42: #{tpu_custom_call.1} parent=11 // pred_check_branch
          %619 = sbr.rel (%p617) target = $region44
        $region43: #{tpu_custom_call.1} parent=11 // pred_region
          _
        $region44: #{tpu_custom_call.1} parent=11 // pred_fallthru
          _
        // Predicated region
        $region45: #{tpu_custom_call.1} parent=11 // pred_check
          %p620 = pneg %p294
        $region46: #{tpu_custom_call.1} parent=11 // pred_check_branch
          %622 = sbr.rel (%p620) target = $region48
        $region47: #{tpu_custom_call.1} parent=11 // pred_region
          %s624 = ssub.s32 1024, 1024
          %625 = vsyncadd [#allocation13], %s624
          %s626 = sshll.u32 [#allocation12], 4
          %s627 = int_to_ptr.vmem [resolvable:$true] %s626
          %632 = dma.hbm_to_vmem [thread:$0]  %s10, 1024, %s627, [#allocation13], 64, 64, 4
        $region48: #{tpu_custom_call.1} parent=11 // pred_fallthru
          _
        // Predicated region
        $region49: #{tpu_custom_call.1} parent=11 // pred_check
          %p633 = pneg %p315
        $region50: #{tpu_custom_call.1} parent=11 // pred_check_branch
          %635 = sbr.rel (%p633) target = $region52
        $region51: #{tpu_custom_call.1} parent=11 // pred_region
          _
        $region52: #{tpu_custom_call.1} parent=11 // pred_fallthru
          _
        // Predicated region
        $region53: #{tpu_custom_call.1} parent=11 // pred_check
          %p636 = pneg %p336
        $region54: #{tpu_custom_call.1} parent=11 // pred_check_branch
          %638 = sbr.rel (%p636) target = $region56
        $region55: #{tpu_custom_call.1} parent=11 // pred_region
          %s640 = ssub.s32 2048, 2048
          %641 = vsyncadd [#allocation13], %s640
          %s642 = sshll.u32 [#allocation14], 4
          %s643 = int_to_ptr.vmem [resolvable:$true] %s642
          %648 = dma.hbm_to_vmem [thread:$0]  %s12, 2048, %s643, [#allocation13], 128, 128, 8
        $region56: #{tpu_custom_call.1} parent=11 // pred_fallthru
          _
        // Predicated region
        $region57: #{tpu_custom_call.1} parent=11 // pred_check
          %p649 = pneg %p357
        $region58: #{tpu_custom_call.1} parent=11 // pred_check_branch
          %651 = sbr.rel (%p649) target = $region60
        $region59: #{tpu_custom_call.1} parent=11 // pred_region
          _
        $region60: #{tpu_custom_call.1} parent=11 // pred_fallthru
          _
        // Predicated region
        $region61: #{tpu_custom_call.1} parent=11 // pred_check
          %p652 = pneg %p378
        $region62: #{tpu_custom_call.1} parent=11 // pred_check_branch
          %654 = sbr.rel (%p652) target = $region64
        $region63: #{tpu_custom_call.1} parent=11 // pred_region
          %s656 = ssub.s32 1024, 1024
          %657 = vsyncadd [#allocation16], %s656
          %s658 = sshll.u32 [#allocation15], 4
          %s659 = int_to_ptr.vmem [resolvable:$true] %s658
          %664 = dma.hbm_to_vmem [thread:$0]  %s14, 1024, %s659, [#allocation16], 64, 64, 4
        $region64: #{tpu_custom_call.1} parent=11 // pred_fallthru
          _
        // Predicated region
        $region65: #{tpu_custom_call.1} parent=11 // pred_check
          %p665 = pneg %p399
        $region66: #{tpu_custom_call.1} parent=11 // pred_check_branch
          %667 = sbr.rel (%p665) target = $region68
        $region67: #{tpu_custom_call.1} parent=11 // pred_region
          _
        $region68: #{tpu_custom_call.1} parent=11 // pred_fallthru
          _
        // Predicated region
        $region69: #{tpu_custom_call.1} parent=11 // pred_check
          %p668 = pneg %p420
        $region70: #{tpu_custom_call.1} parent=11 // pred_check_branch
          %670 = sbr.rel (%p668) target = $region72
        $region71: #{tpu_custom_call.1} parent=11 // pred_region
          _
        $region72: #{tpu_custom_call.1} parent=11 // pred_fallthru
          _
        // Predicated region
        $region73: #{tpu_custom_call.1} parent=11 // pred_check
          %p671 = pneg %p441
        $region74: #{tpu_custom_call.1} parent=11 // pred_check_branch
          %673 = sbr.rel (%p671) target = $region76
        $region75: #{tpu_custom_call.1} parent=11 // pred_region
          _
        $region76: #{tpu_custom_call.1} parent=11 // pred_fallthru
          _
        // Predicated region
        $region77: #{tpu_custom_call.1} parent=11 // pred_check
          %p674 = pneg %p462
        $region78: #{tpu_custom_call.1} parent=11 // pred_check_branch
          %676 = sbr.rel (%p674) target = $region80
        $region79: #{tpu_custom_call.1} parent=11 // pred_region
          %s678 = ssub.s32 4096, 4096
          %679 = vsyncadd [#allocation16], %s678
          %s680 = sshll.u32 [#allocation17], 4
          %s681 = int_to_ptr.vmem [resolvable:$true] %s680
          %686 = dma.hbm_to_vmem [thread:$0]  %s18, 4096, %s681, [#allocation16], 256, 256, 16
        $region80: #{tpu_custom_call.1} parent=11 // pred_fallthru
          _
        // Predicated region
        $region81: #{tpu_custom_call.1} parent=11 // pred_check
          %p687 = pneg %p483
        $region82: #{tpu_custom_call.1} parent=11 // pred_check_branch
          %689 = sbr.rel (%p687) target = $region84
        $region83: #{tpu_custom_call.1} parent=11 // pred_region
          _
        $region84: #{tpu_custom_call.1} parent=11 // pred_fallthru
          _
        // Predicated region
        $region85: #{tpu_custom_call.1} parent=11 // pred_check
          %p690 = pneg %p504
        $region86: #{tpu_custom_call.1} parent=11 // pred_check_branch
          %692 = sbr.rel (%p690) target = $region88
        $region87: #{tpu_custom_call.1} parent=11 // pred_region
          %s694 = ssub.s32 4096, 4096
          %695 = vsyncadd [#allocation19], %s694
          %s696 = sshll.u32 [#allocation18], 4
          %s697 = int_to_ptr.vmem [resolvable:$true] %s696
          %702 = dma.hbm_to_vmem [thread:$0]  %s20, 4096, %s697, [#allocation19], 64, 64, 4
        $region88: #{tpu_custom_call.1} parent=11 // pred_fallthru
          _
        // Predicated region
        $region89: #{tpu_custom_call.1} parent=11 // pred_check
          %p703 = pneg %p525
        $region90: #{tpu_custom_call.1} parent=11 // pred_check_branch
          %705 = sbr.rel (%p703) target = $region92
        $region91: #{tpu_custom_call.1} parent=11 // pred_region
          _
        $region92: #{tpu_custom_call.1} parent=11 // pred_fallthru
          _
      $region12: #{tpu_custom_call.1} parent=5 // pred_fallthru
        _
      %p706 = scmp.lt.s32.totalorder %s41, 2
      // Predicated region
      $region93: #{tpu_custom_call.1} parent=5 // pred_check
        %p707 = pneg %p706
      $region94: #{tpu_custom_call.1} parent=5 // pred_check_branch
        %709 = sbr.rel (%p707) target = $region96
      $region95: #{tpu_custom_call.1} parent=5 // pred_region
        // Predicated region
        $region97: #{tpu_custom_call.1} parent=95 // pred_check
          %p710 = pneg %p73
        $region98: #{tpu_custom_call.1} parent=95 // pred_check_branch
          %712 = sbr.rel (%p710) target = $region100
        $region99: #{tpu_custom_call.1} parent=95 // pred_region
          %s713 = sand.u32 %s63, 1
          %s714 = scalar_lea.sflag [#allocation4], %s713
          %s715 = sand.u32 %s63, 1
          %s716 = smul.addr %s715, 32
          %s717 = scalar_lea.vmem [#allocation3], %s716
          %s719 = ssub.s32 512, 512
          %720 = vsyncadd %s714, %s719
          %s721 = smul.addr %s48, 4
          %s722 = smul.addr %s721, 128
          %s723 = scalar_lea.hbm %s0, %s722
          %s724 = sshll.u32 %s717, 4
          %s725 = int_to_ptr.vmem [resolvable:$true] %s724
          %730 = dma.hbm_to_vmem [thread:$0]  %s723, 512, %s725, %s714, 128, 128, 8
        $region100: #{tpu_custom_call.1} parent=95 // pred_fallthru
          _
        // Predicated region
        $region101: #{tpu_custom_call.1} parent=95 // pred_check
          %p731 = pneg %p99
        $region102: #{tpu_custom_call.1} parent=95 // pred_check_branch
          %733 = sbr.rel (%p731) target = $region104
        $region103: #{tpu_custom_call.1} parent=95 // pred_region
          %s734 = sand.u32 %s41, 1
          %s735 = scalar_lea.sflag [#allocation7], %s734
          %s736 = sand.u32 %s89, 1
          %s737 = smul.addr %s736, 16
          %s738 = scalar_lea.vmem [#allocation6], %s737
          %s740 = ssub.s32 256, 256
          %741 = vsyncadd %s735, %s740
          %s742 = smul.addr %s48, 2
          %s743 = smul.addr %s742, 128
          %s744 = scalar_lea.hbm %s1, %s743
          %s745 = sshll.u32 %s738, 4
          %s746 = int_to_ptr.vmem [resolvable:$true] %s745
          %751 = dma.hbm_to_vmem [thread:$0]  %s744, 256, %s746, %s735, 128, 128, 8
        $region104: #{tpu_custom_call.1} parent=95 // pred_fallthru
          _
      $region96: #{tpu_custom_call.1} parent=5 // pred_fallthru
        _
      %p752 = scmp.le.s32.totalorder 1, %s41
      %p753 = scmp.lt.s32.totalorder %s41, 3
      %p754 = pnand %p752, %p753
      %p755 = pneg %p754
      // Predicated region
      $region105: #{tpu_custom_call.1} parent=5 // pred_check
        _
      $region106: #{tpu_custom_call.1} parent=5 // pred_check_branch
        %757 = sbr.rel (%p754) target = $region108
      $region107: #{tpu_custom_call.1} parent=5 // pred_region
        %s758 = ssub.s32 %s41, 1
        %s759 = sand.u32 %s66, 1
        %s760 = scalar_lea.sflag [#allocation4], %s759
        %s761 = sand.u32 %s66, 1
        %s762 = smul.addr %s761, 32
        %s763 = scalar_lea.vmem [#allocation3], %s762
        // Predicated region
        $region109: #{tpu_custom_call.1} parent=107 // pred_check
          %p764 = pneg %p79
        $region110: #{tpu_custom_call.1} parent=107 // pred_check_branch
          %766 = sbr.rel (%p764) target = $region112
        $region111: #{tpu_custom_call.1} parent=107 // pred_region
          %767 = dma.done %s760, 512
        $region112: #{tpu_custom_call.1} parent=107 // pred_fallthru
          _
        %s768 = sand.u32 %s46, 1
        %s769 = scalar_lea.sflag [#allocation7], %s768
        %s770 = sand.u32 %s92, 1
        %s771 = smul.addr %s770, 16
        %s772 = scalar_lea.vmem [#allocation6], %s771
        // Predicated region
        $region113: #{tpu_custom_call.1} parent=107 // pred_check
          %p773 = pneg %p105
        $region114: #{tpu_custom_call.1} parent=107 // pred_check_branch
          %775 = sbr.rel (%p773) target = $region116
        $region115: #{tpu_custom_call.1} parent=107 // pred_region
          %776 = dma.done %s769, 256
        $region116: #{tpu_custom_call.1} parent=107 // pred_fallthru
          _
        // Predicated region
        $region117: #{tpu_custom_call.1} parent=107 // pred_check
          %p777 = pneg %p126
        $region118: #{tpu_custom_call.1} parent=107 // pred_check_branch
          %779 = sbr.rel (%p777) target = $region120
        $region119: #{tpu_custom_call.1} parent=107 // pred_region
          %780 = dma.done [#allocation7], 16
        $region120: #{tpu_custom_call.1} parent=107 // pred_fallthru
          _
        // Predicated region
        $region121: #{tpu_custom_call.1} parent=107 // pred_check
          %p781 = pneg %p168
        $region122: #{tpu_custom_call.1} parent=107 // pred_check_branch
          %783 = sbr.rel (%p781) target = $region124
        $region123: #{tpu_custom_call.1} parent=107 // pred_region
          %784 = dma.done [#allocation10], 3072
        $region124: #{tpu_custom_call.1} parent=107 // pred_fallthru
          _
        // Predicated region
        $region125: #{tpu_custom_call.1} parent=107 // pred_check
          %p785 = pneg %p210
        $region126: #{tpu_custom_call.1} parent=107 // pred_check_branch
          %787 = sbr.rel (%p785) target = $region128
        $region127: #{tpu_custom_call.1} parent=107 // pred_region
          %788 = dma.done [#allocation10], 1024
        $region128: #{tpu_custom_call.1} parent=107 // pred_fallthru
          _
        // Predicated region
        $region129: #{tpu_custom_call.1} parent=107 // pred_check
          %p789 = pneg %p294
        $region130: #{tpu_custom_call.1} parent=107 // pred_check_branch
          %791 = sbr.rel (%p789) target = $region132
        $region131: #{tpu_custom_call.1} parent=107 // pred_region
          %792 = dma.done [#allocation13], 1024
        $region132: #{tpu_custom_call.1} parent=107 // pred_fallthru
          _
        // Predicated region
        $region133: #{tpu_custom_call.1} parent=107 // pred_check
          %p793 = pneg %p336
        $region134: #{tpu_custom_call.1} parent=107 // pred_check_branch
          %795 = sbr.rel (%p793) target = $region136
        $region135: #{tpu_custom_call.1} parent=107 // pred_region
          %796 = dma.done [#allocation13], 2048
        $region136: #{tpu_custom_call.1} parent=107 // pred_fallthru
          _
        // Predicated region
        $region137: #{tpu_custom_call.1} parent=107 // pred_check
          %p797 = pneg %p378
        $region138: #{tpu_custom_call.1} parent=107 // pred_check_branch
          %799 = sbr.rel (%p797) target = $region140
        $region139: #{tpu_custom_call.1} parent=107 // pred_region
          %800 = dma.done [#allocation16], 1024
        $region140: #{tpu_custom_call.1} parent=107 // pred_fallthru
          _
        // Predicated region
        $region141: #{tpu_custom_call.1} parent=107 // pred_check
          %p801 = pneg %p462
        $region142: #{tpu_custom_call.1} parent=107 // pred_check_branch
          %803 = sbr.rel (%p801) target = $region144
        $region143: #{tpu_custom_call.1} parent=107 // pred_region
          %804 = dma.done [#allocation16], 4096
        $region144: #{tpu_custom_call.1} parent=107 // pred_fallthru
          _
        // Predicated region
        $region145: #{tpu_custom_call.1} parent=107 // pred_check
          %p805 = pneg %p504
        $region146: #{tpu_custom_call.1} parent=107 // pred_check_branch
          %807 = sbr.rel (%p805) target = $region148
        $region147: #{tpu_custom_call.1} parent=107 // pred_region
          %808 = dma.done [#allocation19], 4096
        $region148: #{tpu_custom_call.1} parent=107 // pred_fallthru
          _
        %s809 = sand.u32 %s66, 1
        %s810 = scalar_lea.sflag [#allocation4], %s809
        %s811 = sand.u32 %s66, 1
        %s812 = smul.addr %s811, 32
        %s813 = scalar_lea.vmem [#allocation3], %s812
        %p814 = pneg %p79
        %p815 = pneg %p76
        %s816 = sand.u32 %s46, 1
        %s817 = scalar_lea.sflag [#allocation7], %s816
        %s818 = sand.u32 %s92, 1
        %s819 = smul.addr %s818, 16
        %s820 = scalar_lea.vmem [#allocation6], %s819
        %p821 = pneg %p105
        %p822 = pneg %p102
        %p823 = pneg %p126
        %p824 = pneg %p123
        %p825 = pneg %p147
        %p826 = pneg %p144
        %p827 = pneg %p168
        %p828 = pneg %p165
        %p829 = pneg %p189
        %p830 = pneg %p186
        %p831 = pneg %p210
        %p832 = pneg %p207
        %p833 = pneg %p231
        %p834 = pneg %p228
        %p835 = pneg %p252
        %p836 = pneg %p249
        %p837 = pneg %p273
        %p838 = pneg %p270
        %p839 = pneg %p294
        %p840 = pneg %p291
        %p841 = pneg %p315
        %p842 = pneg %p312
        %p843 = pneg %p336
        %p844 = pneg %p333
        %p845 = pneg %p357
        %p846 = pneg %p354
        %p847 = pneg %p378
        %p848 = pneg %p375
        %p849 = pneg %p399
        %p850 = pneg %p396
        %p851 = pneg %p420
        %p852 = pneg %p417
        %p853 = pneg %p441
        %p854 = pneg %p438
        %p855 = pneg %p462
        %p856 = pneg %p459
        %p857 = pneg %p483
        %p858 = pneg %p480
        %p859 = pneg %p504
        %p860 = pneg %p501
        %p861 = pneg %p525
        %p862 = pneg %p522
        %p863 = pneg %p553
        %p864 = pneg %p550
        %s865 = sand.u32 %s540, 1
        %s866 = scalar_lea.sflag [#allocation5], %s865
        %s867 = sand.u32 %s540, 1
        %s868 = smul.addr %s867, 32
        %s869 = scalar_lea.vmem [#allocation20], %s868
        %s870 = smul.u32 4, %s51
        %s872 = smul.u32 %s51, 32
        %v873 = vld [vmem:[%s763] sm:$0xff]
        %v874 = vld [vmem:[%s763 + $0x8] sm:$0xff]
        %v875 = vld [vmem:[%s763 + $0x10] sm:$0xff]
        %v876 = vld [vmem:[%s763 + $0x18] sm:$0xff]
        %s877 = scalar_lea.vmem %s763, %s872 [#allocation3]
        %v878 = vld [vmem:[%s877] sm:$0xff]
        %v879 = vld [vmem:[%s877 + $0x8] sm:$0xff]
        %v880 = vld [vmem:[%s877 + $0x10] sm:$0xff]
        %v881 = vld [vmem:[%s877 + $0x18] sm:$0xff]
        %v882 = vld [vmem:[%s772] sm:$0xff]
        %v883 = vld [vmem:[%s772 + $0x8] sm:$0xff]
        %v884 = vld [vmem:[#allocation8] sm:$0x1]
        %v885 = vld [vmem:[%s3] sm:$0x1]
        %886 = vadd.xlane.f32.xlu0 %v873
        %v887 = vpop.xlane.xlu0 %886
        %888 = vadd.xlane.f32.xlu0 %v874
        %v889 = vpop.xlane.xlu0 %888
        %890 = vadd.xlane.f32.xlu0 %v875
        %v891 = vpop.xlane.xlu0 %890
        %892 = vadd.xlane.f32.xlu0 %v876
        %v893 = vpop.xlane.xlu0 %892
        %v894 = vrcp.pop 128.0
        %v895 = vmul.f32 %v887, %v894
        %v896 = vmul.f32 %v889, %v894
        %v897 = vmul.f32 %v891, %v894
        %v898 = vmul.f32 %v893, %v894
        %v899 = vsub.f32 %v873, %v895
        %v900 = vsub.f32 %v874, %v896
        %v901 = vsub.f32 %v875, %v897
        %v902 = vsub.f32 %v876, %v898
        %v903 = vmul.f32 %v899, %v899
        %v904 = vmul.f32 %v900, %v900
        %v905 = vmul.f32 %v901, %v901
        %v906 = vmul.f32 %v902, %v902
        %907 = vadd.xlane.f32.xlu0 %v903
        %v908 = vpop.xlane.xlu0 %907
        %909 = vadd.xlane.f32.xlu0 %v904
        %v910 = vpop.xlane.xlu0 %909
        %911 = vadd.xlane.f32.xlu0 %v905
        %v912 = vpop.xlane.xlu0 %911
        %913 = vadd.xlane.f32.xlu0 %v906
        %v914 = vpop.xlane.xlu0 %913
        %v915 = vmul.f32 %v908, %v894
        %v916 = vmul.f32 %v910, %v894
        %v917 = vmul.f32 %v912, %v894
        %v918 = vmul.f32 %v914, %v894
        %v919 = vadd.f32 %v915, 1e-05
        %v920 = vadd.f32 %v916, 1e-05
        %v921 = vadd.f32 %v917, 1e-05
        %v922 = vadd.f32 %v918, 1e-05
        %v923 = vrsqrt.pop %v919
        %v924 = vrsqrt.pop %v920
        %v925 = vrsqrt.pop %v921
        %v926 = vrsqrt.pop %v922
        %v927 = vmul.f32 %v899, %v923
        %v928 = vmul.f32 %v900, %v924
        %v929 = vmul.f32 %v901, %v925
        %v930 = vmul.f32 %v902, %v926
        %v932 = vlaneseq
        %v933 = vshrl.u32 %v932, 7
        %v934 = vsub.s32 0, %v933
        %v935 = vrot.slane %v884, %v934
        %v937 = vmul.f32 %v927, %v935
        %v938 = vmul.f32 %v928, %v935
        %v939 = vmul.f32 %v929, %v935
        %v940 = vmul.f32 %v930, %v935
        %v942 = vlaneseq
        %v943 = vshrl.u32 %v942, 7
        %v944 = vsub.s32 0, %v943
        %v945 = vrot.slane %v885, %v944
        %v947 = vadd.f32 %v937, %v945
        %v948 = vadd.f32 %v938, %v945
        %v949 = vadd.f32 %v939, %v945
        %v950 = vadd.f32 %v940, %v945
        %951 = vadd.xlane.f32.xlu0 %v878
        %v952 = vpop.xlane.xlu0 %951
        %953 = vadd.xlane.f32.xlu0 %v879
        %v954 = vpop.xlane.xlu0 %953
        %955 = vadd.xlane.f32.xlu0 %v880
        %v956 = vpop.xlane.xlu0 %955
        %957 = vadd.xlane.f32.xlu0 %v881
        %v958 = vpop.xlane.xlu0 %957
        %v959 = vmul.f32 %v952, %v894
        %v960 = vmul.f32 %v954, %v894
        %v961 = vmul.f32 %v956, %v894
        %v962 = vmul.f32 %v958, %v894
        %v963 = vsub.f32 %v878, %v959
        %v964 = vsub.f32 %v879, %v960
        %v965 = vsub.f32 %v880, %v961
        %v966 = vsub.f32 %v881, %v962
        %v967 = vmul.f32 %v963, %v963
        %v968 = vmul.f32 %v964, %v964
        %v969 = vmul.f32 %v965, %v965
        %v970 = vmul.f32 %v966, %v966
        %971 = vadd.xlane.f32.xlu0 %v967
        %v972 = vpop.xlane.xlu0 %971
        %973 = vadd.xlane.f32.xlu0 %v968
        %v974 = vpop.xlane.xlu0 %973
        %975 = vadd.xlane.f32.xlu0 %v969
        %v976 = vpop.xlane.xlu0 %975
        %977 = vadd.xlane.f32.xlu0 %v970
        %v978 = vpop.xlane.xlu0 %977
        %v979 = vmul.f32 %v972, %v894
        %v980 = vmul.f32 %v974, %v894
        %v981 = vmul.f32 %v976, %v894
        %v982 = vmul.f32 %v978, %v894
        %v983 = vadd.f32 %v979, 1e-05
        %v984 = vadd.f32 %v980, 1e-05
        %v985 = vadd.f32 %v981, 1e-05
        %v986 = vadd.f32 %v982, 1e-05
        %v987 = vrsqrt.pop %v983
        %v988 = vrsqrt.pop %v984
        %v989 = vrsqrt.pop %v985
        %v990 = vrsqrt.pop %v986
        %v991 = vmul.f32 %v963, %v987
        %v992 = vmul.f32 %v964, %v988
        %v993 = vmul.f32 %v965, %v989
        %v994 = vmul.f32 %v966, %v990
        %v995 = vmul.f32 %v991, %v935
        %v996 = vmul.f32 %v992, %v935
        %v997 = vmul.f32 %v993, %v935
        %v998 = vmul.f32 %v994, %v935
        %v999 = vadd.f32 %v995, %v945
        %v1000 = vadd.f32 %v996, %v945
        %v1001 = vadd.f32 %v997, %v945
        %v1002 = vadd.f32 %v998, %v945
        %v1003 = vld [vmem:[#allocation9] sm:$0xf]
        %v1004 = vld [vmem:[#allocation9 + $0xc] sm:$0xf]
        %v1005 = vld [vmem:[#allocation9 + $0x18] sm:$0xf]
        %v1006 = vld [vmem:[#allocation9 + $0x24] sm:$0xf]
        %v1007 = vld [vmem:[#allocation9 + $0x30] sm:$0xf]
        %v1008 = vld [vmem:[#allocation9 + $0x3c] sm:$0xf]
        %v1009 = vld [vmem:[#allocation9 + $0x48] sm:$0xf]
        %v1010 = vld [vmem:[#allocation9 + $0x54] sm:$0xf]
        %v1011 = vld [vmem:[#allocation9 + $0x60] sm:$0xf]
        %v1012 = vld [vmem:[#allocation9 + $0x6c] sm:$0xf]
        %v1013 = vld [vmem:[#allocation9 + $0x78] sm:$0xf]
        %v1014 = vld [vmem:[#allocation9 + $0x84] sm:$0xf]
        %v1015 = vld [vmem:[#allocation9 + $0x90] sm:$0xf]
        %v1016 = vld [vmem:[#allocation9 + $0x9c] sm:$0xf]
        %v1017 = vld [vmem:[#allocation9 + $0xa8] sm:$0xf]
        %v1018 = vld [vmem:[#allocation9 + $0xb4] sm:$0xf]
        %v1019 = vpack.c.bf16 %v1000, %v999
        %v1020 = vpack.c.bf16 %v1002, %v1001
        %v1021 = vld [vmem:[%s5] sm:$0x1]
        %v1023 = vlaneseq
        %v1024 = vshrl.u32 %v1023, 7
        %v1025 = vsub.s32 0, %v1024
        %v1026 = vrot.slane %v1021, %v1025
        %v1044 = vunpack.c.l.b16 %v1003
        %v1045 = vunpack.c.l.b16 %v1004
        %v1046 = vunpack.c.l.b16 %v1005
        %v1047 = vunpack.c.l.b16 %v1006
        %v1048 = vunpack.c.l.b16 %v1007
        %v1049 = vunpack.c.l.b16 %v1008
        %v1050 = vunpack.c.l.b16 %v1009
        %v1051 = vunpack.c.l.b16 %v1010
        %v1052 = vunpack.c.l.b16 %v1011
        %v1053 = vunpack.c.l.b16 %v1012
        %v1054 = vunpack.c.l.b16 %v1013
        %v1055 = vunpack.c.l.b16 %v1014
        %v1056 = vunpack.c.l.b16 %v1015
        %v1057 = vunpack.c.l.b16 %v1016
        %v1058 = vunpack.c.l.b16 %v1017
        %v1059 = vunpack.c.l.b16 %v1018
        %v1060 = vpack.c.b16 %v1045, %v1044
        %v1061 = vpack.c.b16 %v1047, %v1046
        %v1062 = vpack.c.b16 %v1049, %v1048
        %v1063 = vpack.c.b16 %v1051, %v1050
        %v1064 = vpack.c.b16 %v1053, %v1052
        %v1065 = vpack.c.b16 %v1055, %v1054
        %v1066 = vpack.c.b16 %v1057, %v1056
        %v1067 = vpack.c.b16 %v1059, %v1058
        %1076 = vmatprep.subr.bf16.mxu0 0
        %1077 = vmatpush1.bf16.msra.mxu0 %v1060
        %1078 = vmatprep.subr.bf16.mxu0 0
        %1079 = vmatpush1.bf16.msra.mxu0 %v1061
        %1080 = vmatprep.subr.bf16.mxu0 0
        %1081 = vmatpush1.bf16.msra.mxu0 %v1062
        %1082 = vmatprep.subr.bf16.mxu0 0
        %1083 = vmatpush1.bf16.msra.mxu0 %v1063
        %1084 = vmatprep.subr.bf16.mxu0 0
        %1085 = vmatpush1.bf16.msra.mxu0 %v1064
        %1086 = vmatprep.subr.bf16.mxu0 0
        %1087 = vmatpush1.bf16.msra.mxu0 %v1065
        %1088 = vmatprep.subr.bf16.mxu0 0
        %1089 = vmatpush1.bf16.msra.mxu0 %v1066
        %1090 = vmatprep.subr.bf16.mxu0 0
        %1091 = vmatpush1.bf16.msra.mxu0 %v1067
        %1092 = vmatprep.subr.bf16.mxu0 0
        %1093 = vmatpush1.bf16.msra.mxu0 0
        %1094 = vmatprep.subr.bf16.mxu0 0
        %1095 = vmatpush1.bf16.msra.mxu0 0
        %1096 = vmatprep.subr.bf16.mxu0 0
        %1097 = vmatpush1.bf16.msra.mxu0 0
        %1098 = vmatprep.subr.bf16.mxu0 0
        %1099 = vmatpush1.bf16.msra.mxu0 0
        %1100 = vmatprep.subr.bf16.mxu0 0
        %1101 = vmatpush1.bf16.msra.mxu0 0
        %1102 = vmatprep.subr.bf16.mxu0 0
        %1103 = vmatpush1.bf16.msra.mxu0 0
        %1104 = vmatprep.subr.bf16.mxu0 0
        %1105 = vmatpush1.bf16.msra.mxu0 0
        %1106 = vmatprep.subr.bf16.mxu0 0
        %1107 = vmatpush1.bf16.msra.mxu0 0
        %1108 = vmatprep.mubr.bf16.mxu0 0
        %1109 = vmatmul.mubr.bf16.gmra.mrb[0].mxu0 %v1019
        %v1110 = vpop.f32.mrb[0].mxu0
        %v1111 = vadd.f32 %v1026, %v1110
        %v1112 = vpop.f32.mrb[0].mxu0
        %v1113 = vpop.f32.mrb[0].mxu0
        %v1114 = vadd.f32 %v1026, %v1113
        %v1115 = vpop.f32.mrb[0].mxu0
        %1116 = vmatprep.mubr.bf16.mxu0 0
        %1117 = vmatmul.mubr.bf16.gmra.mrb[0].mxu0 %v1020
        %v1118 = vpop.f32.mrb[0].mxu0
        %v1119 = vadd.f32 %v1026, %v1118
        %v1120 = vpop.f32.mrb[0].mxu0
        %v1121 = vpop.f32.mrb[0].mxu0
        %v1122 = vadd.f32 %v1026, %v1121
        %v1123 = vpop.f32.mrb[0].mxu0
        %1124 = vdwg.mxu0
        %v1125 = vmul.f32 %v1111, 0.17677669
        %v1126 = vmul.f32 %v1114, 0.17677669
        %v1127 = vmul.f32 %v1119, 0.17677669
        %v1128 = vmul.f32 %v1122, 0.17677669
        %v1129 = vld [vmem:[#allocation9 + $0x4] sm:$0xff]
        %v1130 = vld [vmem:[#allocation9 + $0x10] sm:$0xff]
        %v1131 = vld [vmem:[#allocation9 + $0x1c] sm:$0xff]
        %v1132 = vld [vmem:[#allocation9 + $0x28] sm:$0xff]
        %v1133 = vld [vmem:[#allocation9 + $0x34] sm:$0xff]
        %v1134 = vld [vmem:[#allocation9 + $0x40] sm:$0xff]
        %v1135 = vld [vmem:[#allocation9 + $0x4c] sm:$0xff]
        %v1136 = vld [vmem:[#allocation9 + $0x58] sm:$0xff]
        %v1137 = vld [vmem:[#allocation9 + $0x64] sm:$0xff]
        %v1138 = vld [vmem:[#allocation9 + $0x70] sm:$0xff]
        %v1139 = vld [vmem:[#allocation9 + $0x7c] sm:$0xff]
        %v1140 = vld [vmem:[#allocation9 + $0x88] sm:$0xff]
        %v1141 = vld [vmem:[#allocation9 + $0x94] sm:$0xff]
        %v1142 = vld [vmem:[#allocation9 + $0xa0] sm:$0xff]
        %v1143 = vld [vmem:[#allocation9 + $0xac] sm:$0xff]
        %v1144 = vld [vmem:[#allocation9 + $0xb8] sm:$0xff]
        %v1145 = vpack.c.bf16 %v948, %v947
        %v1146 = vpack.c.bf16 %v950, %v949
        %v1147 = vld [vmem:[%s5 + $0x1] sm:$0x3]
        %v1149 = vlaneseq
        %v1150 = vshrl.u32 %v1149, 7
        %v1151 = vsub.s32 0, %v1150
        %v1152 = vrot.slane %v1147, %v1151
        %v1153 = vlaneseq
        %v1154 = vshrl.u32 %v1153, 7
        %v1155 = vsub.s32 1, %v1154
        %v1156 = vrot.slane %v1147, %v1155
        %v1175 = vunpack.c.l.b16 %v1129
        %v1176 = vunpack.c.h.b16 %v1129
        %v1177 = vunpack.c.l.b16 %v1130
        %v1178 = vunpack.c.h.b16 %v1130
        %v1179 = vunpack.c.l.b16 %v1131
        %v1180 = vunpack.c.h.b16 %v1131
        %v1181 = vunpack.c.l.b16 %v1132
        %v1182 = vunpack.c.h.b16 %v1132
        %v1183 = vunpack.c.l.b16 %v1133
        %v1184 = vunpack.c.h.b16 %v1133
        %v1185 = vunpack.c.l.b16 %v1134
        %v1186 = vunpack.c.h.b16 %v1134
        %v1187 = vunpack.c.l.b16 %v1135
        %v1188 = vunpack.c.h.b16 %v1135
        %v1189 = vunpack.c.l.b16 %v1136
        %v1190 = vunpack.c.h.b16 %v1136
        %v1191 = vunpack.c.l.b16 %v1137
        %v1192 = vunpack.c.h.b16 %v1137
        %v1193 = vunpack.c.l.b16 %v1138
        %v1194 = vunpack.c.h.b16 %v1138
        %v1195 = vunpack.c.l.b16 %v1139
        %v1196 = vunpack.c.h.b16 %v1139
        %v1197 = vunpack.c.l.b16 %v1140
        %v1198 = vunpack.c.h.b16 %v1140
        %v1199 = vunpack.c.l.b16 %v1141
        %v1200 = vunpack.c.h.b16 %v1141
        %v1201 = vunpack.c.l.b16 %v1142
        %v1202 = vunpack.c.h.b16 %v1142
        %v1203 = vunpack.c.l.b16 %v1143
        %v1204 = vunpack.c.h.b16 %v1143
        %v1205 = vunpack.c.l.b16 %v1144
        %v1206 = vunpack.c.h.b16 %v1144
        %v1207 = vpack.c.b16 %v1177, %v1175
        %v1208 = vpack.c.b16 %v1178, %v1176
        %v1209 = vpack.c.b16 %v1181, %v1179
        %v1210 = vpack.c.b16 %v1182, %v1180
        %v1211 = vpack.c.b16 %v1185, %v1183
        %v1212 = vpack.c.b16 %v1186, %v1184
        %v1213 = vpack.c.b16 %v1189, %v1187
        %v1214 = vpack.c.b16 %v1190, %v1188
        %v1215 = vpack.c.b16 %v1193, %v1191
        %v1216 = vpack.c.b16 %v1194, %v1192
        %v1217 = vpack.c.b16 %v1197, %v1195
        %v1218 = vpack.c.b16 %v1198, %v1196
        %v1219 = vpack.c.b16 %v1201, %v1199
        %v1220 = vpack.c.b16 %v1202, %v1200
        %v1221 = vpack.c.b16 %v1205, %v1203
        %v1222 = vpack.c.b16 %v1206, %v1204
        %1239 = vmatprep.subr.bf16.mxu0 %v1208
        %1240 = vmatpush1.bf16.msra.mxu0 %v1207
        %1241 = vmatprep.subr.bf16.mxu0 %v1210
        %1242 = vmatpush1.bf16.msra.mxu0 %v1209
        %1243 = vmatprep.subr.bf16.mxu0 %v1212
        %1244 = vmatpush1.bf16.msra.mxu0 %v1211
        %1245 = vmatprep.subr.bf16.mxu0 %v1214
        %1246 = vmatpush1.bf16.msra.mxu0 %v1213
        %1247 = vmatprep.subr.bf16.mxu0 %v1216
        %1248 = vmatpush1.bf16.msra.mxu0 %v1215
        %1249 = vmatprep.subr.bf16.mxu0 %v1218
        %1250 = vmatpush1.bf16.msra.mxu0 %v1217
        %1251 = vmatprep.subr.bf16.mxu0 %v1220
        %1252 = vmatpush1.bf16.msra.mxu0 %v1219
        %1253 = vmatprep.subr.bf16.mxu0 %v1222
        %1254 = vmatpush1.bf16.msra.mxu0 %v1221
        %1255 = vmatprep.subr.bf16.mxu0 0
        %1256 = vmatpush1.bf16.msra.mxu0 0
        %1257 = vmatprep.subr.bf16.mxu0 0
        %1258 = vmatpush1.bf16.msra.mxu0 0
        %1259 = vmatprep.subr.bf16.mxu0 0
        %1260 = vmatpush1.bf16.msra.mxu0 0
        %1261 = vmatprep.subr.bf16.mxu0 0
        %1262 = vmatpush1.bf16.msra.mxu0 0
        %1263 = vmatprep.subr.bf16.mxu0 0
        %1264 = vmatpush1.bf16.msra.mxu0 0
        %1265 = vmatprep.subr.bf16.mxu0 0
        %1266 = vmatpush1.bf16.msra.mxu0 0
        %1267 = vmatprep.subr.bf16.mxu0 0
        %1268 = vmatpush1.bf16.msra.mxu0 0
        %1269 = vmatprep.subr.bf16.mxu0 0
        %1270 = vmatpush1.bf16.msra.mxu0 0
        %1271 = vmatprep.mubr.bf16.mxu0 0
        %1272 = vmatmul.mubr.bf16.gmra.mrb[0].mxu0 %v1145
        %v1273 = vpop.f32.mrb[0].mxu0
        %v1274 = vadd.f32 %v1152, %v1273
        %v1275 = vpop.f32.mrb[0].mxu0
        %v1276 = vadd.f32 %v1156, %v1275
        %v1277 = vpop.f32.mrb[0].mxu0
        %v1278 = vadd.f32 %v1152, %v1277
        %v1279 = vpop.f32.mrb[0].mxu0
        %v1280 = vadd.f32 %v1156, %v1279
        %1281 = vmatprep.mubr.bf16.mxu0 0
        %1282 = vmatmul.mubr.bf16.gmra.mrb[0].mxu0 %v1146
        %v1283 = vpop.f32.mrb[0].mxu0
        %v1284 = vadd.f32 %v1152, %v1283
        %v1285 = vpop.f32.mrb[0].mxu0
        %v1286 = vadd.f32 %v1156, %v1285
        %v1287 = vpop.f32.mrb[0].mxu0
        %v1288 = vadd.f32 %v1152, %v1287
        %v1289 = vpop.f32.mrb[0].mxu0
        %v1290 = vadd.f32 %v1156, %v1289
        %1291 = vdwg.mxu0
        %v1292 = vlaneseq
        %v1293 = vshrl.u32 %v1292, 7
        %v1294 = vadd.s32 %v1293, 8
        %v1295 = vadd.s32 %v1293, 16
        %v1296 = vadd.s32 %v1293, 24
        %v1297 = vstv %s872
        %v1298 = vadd.s32 %v1293, %v1297
        %v1299 = vadd.s32 %v1294, %v1297
        %v1300 = vadd.s32 %v1295, %v1297
        %v1301 = vadd.s32 %v1296, %v1297
        %v1302 = vlaneseq
        %v1303 = vand.u32 %v1302, 127
        %vm1304 = vcmp.gt.s32.totalorder %v1303, %v1298
        %vm1305 = vcmp.gt.s32.totalorder %v1303, %v1299
        %vm1306 = vcmp.gt.s32.totalorder %v1303, %v1300
        %vm1307 = vcmp.gt.s32.totalorder %v1303, %v1301
        %v1308 = vsel %vm1304, -inf, 0.0
        %v1309 = vsel %vm1305, -inf, 0.0
        %v1310 = vsel %vm1306, -inf, 0.0
        %v1311 = vsel %vm1307, -inf, 0.0
        %v1312 = vld [vmem:[#allocation11] sm:$0xf]
        %v1313 = vld [vmem:[#allocation11 + $0x4] sm:$0xf]
        %v1314 = vld [vmem:[#allocation11 + $0x8] sm:$0xf]
        %v1315 = vld [vmem:[#allocation11 + $0xc] sm:$0xf]
        %v1316 = vld [vmem:[#allocation11 + $0x10] sm:$0xf]
        %v1317 = vld [vmem:[#allocation11 + $0x14] sm:$0xf]
        %v1318 = vld [vmem:[#allocation11 + $0x18] sm:$0xf]
        %v1319 = vld [vmem:[#allocation11 + $0x1c] sm:$0xf]
        %v1320 = vld [vmem:[#allocation11 + $0x20] sm:$0xf]
        %v1321 = vld [vmem:[#allocation11 + $0x24] sm:$0xf]
        %v1322 = vld [vmem:[#allocation11 + $0x28] sm:$0xf]
        %v1323 = vld [vmem:[#allocation11 + $0x2c] sm:$0xf]
        %v1324 = vld [vmem:[#allocation11 + $0x30] sm:$0xf]
        %v1325 = vld [vmem:[#allocation11 + $0x34] sm:$0xf]
        %v1326 = vld [vmem:[#allocation11 + $0x38] sm:$0xf]
        %v1327 = vld [vmem:[#allocation11 + $0x3c] sm:$0xf]
        %v1328 = vld [vmem:[%s7] sm:$0x1]
        %v1329 = vpack.c.bf16 %v1126, %v1125
        %v1330 = vpack.c.bf16 %v1128, %v1127
        %v1331 = vpack.c.bf16 %v1278, %v1274
        %v1332 = vpack.c.bf16 %v1288, %v1284
        %v1333 = vpack.c.bf16 %v1280, %v1276
        %v1334 = vpack.c.bf16 %v1290, %v1286
        %vm1335 = vcmask 261120
        %v1337 = vsel %vm1335, %v1329, 0
        %v1340 = vsel %vm1335, %v1330, 0
        %v1343 = vsel %vm1335, %v1331, 0
        %v1346 = vsel %vm1335, %v1332, 0
        %1348 = vmatprep.subr.bf16.mxu0 0
        %1349 = vmatpush1.bf16.xpose.msra.mxu0 %v1343
        %1350 = vmatprep.subr.bf16.mxu0 0
        %1351 = vmatpush1.bf16.xpose.msra.mxu0 %v1346
        %1352 = vmatprep.subr.bf16.mxu0 0
        %1353 = vmatpush1.bf16.xpose.msra.mxu0 0
        %1354 = vmatprep.subr.bf16.mxu0 0
        %1355 = vmatpush1.bf16.xpose.msra.mxu0 0
        %1356 = vmatprep.subr.bf16.mxu0 0
        %1357 = vmatpush1.bf16.xpose.msra.mxu0 0
        %1358 = vmatprep.subr.bf16.mxu0 0
        %1359 = vmatpush1.bf16.xpose.msra.mxu0 0
        %1360 = vmatprep.subr.bf16.mxu0 0
        %1361 = vmatpush1.bf16.xpose.msra.mxu0 0
        %1362 = vmatprep.subr.bf16.mxu0 0
        %1363 = vmatpush1.bf16.xpose.msra.mxu0 0
        %1364 = vmatprep.subr.bf16.mxu0 0
        %1365 = vmatpush1.bf16.xpose.msra.mxu0 0
        %1366 = vmatprep.subr.bf16.mxu0 0
        %1367 = vmatpush1.bf16.xpose.msra.mxu0 0
        %1368 = vmatprep.subr.bf16.mxu0 0
        %1369 = vmatpush1.bf16.xpose.msra.mxu0 0
        %1370 = vmatprep.subr.bf16.mxu0 0
        %1371 = vmatpush1.bf16.xpose.msra.mxu0 0
        %1372 = vmatprep.subr.bf16.mxu0 0
        %1373 = vmatpush1.bf16.xpose.msra.mxu0 0
        %1374 = vmatprep.subr.bf16.mxu0 0
        %1375 = vmatpush1.bf16.xpose.msra.mxu0 0
        %1376 = vmatprep.subr.bf16.mxu0 0
        %1377 = vmatpush1.bf16.xpose.msra.mxu0 0
        %1378 = vmatprep.subr.bf16.mxu0 0
        %1379 = vmatpush1.bf16.xpose.msra.mxu0 0
        %1380 = vmatprep.mubr.bf16.mxu0 0
        %1381 = vmatmul.mubr.bf16.gmra.mrb[0].mxu0 %v1337
        %v1382 = vpop.f32.mrb[0].mxu0
        %v1383 = vadd.f32 %v1308, %v1382
        %v1384 = vpop.f32.mrb[0].mxu0
        %v1385 = vpop.f32.mrb[0].mxu0
        %v1386 = vadd.f32 %v1309, %v1385
        %v1387 = vpop.f32.mrb[0].mxu0
        %1388 = vmatprep.mubr.bf16.mxu0 0
        %1389 = vmatmul.mubr.bf16.gmra.mrb[0].mxu0 %v1340
        %v1390 = vpop.f32.mrb[0].mxu0
        %v1391 = vadd.f32 %v1310, %v1390
        %v1392 = vpop.f32.mrb[0].mxu0
        %v1393 = vpop.f32.mrb[0].mxu0
        %v1394 = vadd.f32 %v1311, %v1393
        %v1395 = vpop.f32.mrb[0].mxu0
        %1396 = vdwg.mxu0
        %v1397 = vsel %vm1335, %v1383, -inf
        %1398 = vmax.xlane.f32.xlu0 %v1397
        %v1399 = vpop.xlane.xlu0 %1398
        %v1400 = vsel %vm1335, %v1386, -inf
        %1401 = vmax.xlane.f32.xlu0 %v1400
        %v1402 = vpop.xlane.xlu0 %1401
        %v1403 = vsel %vm1335, %v1391, -inf
        %1404 = vmax.xlane.f32.xlu0 %v1403
        %v1405 = vpop.xlane.xlu0 %1404
        %v1406 = vsel %vm1335, %v1394, -inf
        %1407 = vmax.xlane.f32.xlu0 %v1406
        %v1408 = vpop.xlane.xlu0 %1407
        %v1409 = vsub.f32 %v1383, %v1399
        %v1410 = vsub.f32 %v1386, %v1402
        %v1411 = vsub.f32 %v1391, %v1405
        %v1412 = vsub.f32 %v1394, %v1408
        %v1413 = vmul.f32 %v1409, 1.442695
        %v1414 = vpow.pop %v1413
        %v1415 = vmul.f32 %v1410, 1.442695
        %v1416 = vpow.pop %v1415
        %v1417 = vmul.f32 %v1411, 1.442695
        %v1418 = vpow.pop %v1417
        %v1419 = vmul.f32 %v1412, 1.442695
        %v1420 = vpow.pop %v1419
        %v1421 = vsel %vm1335, %v1414, 0.0
        %1422 = vadd.xlane.f32.xlu0 %v1421
        %v1423 = vpop.xlane.xlu0 %1422
        %v1424 = vsel %vm1335, %v1416, 0.0
        %1425 = vadd.xlane.f32.xlu0 %v1424
        %v1426 = vpop.xlane.xlu0 %1425
        %v1427 = vsel %vm1335, %v1418, 0.0
        %1428 = vadd.xlane.f32.xlu0 %v1427
        %v1429 = vpop.xlane.xlu0 %1428
        %v1430 = vsel %vm1335, %v1420, 0.0
        %1431 = vadd.xlane.f32.xlu0 %v1430
        %v1432 = vpop.xlane.xlu0 %1431
        %v1433 = vrcp.pop %v1423
        %v1434 = vrcp.pop %v1426
        %v1435 = vrcp.pop %v1429
        %v1436 = vrcp.pop %v1432
        %v1437 = vmul.f32 %v1414, %v1433
        %v1438 = vmul.f32 %v1416, %v1434
        %v1439 = vmul.f32 %v1418, %v1435
        %v1440 = vmul.f32 %v1420, %v1436
        %v1441 = vpack.c.bf16 %v1438, %v1437
        %v1442 = vpack.c.bf16 %v1440, %v1439
        %v1444 = vsel %vm1335, %v1441, 0
        %v1447 = vsel %vm1335, %v1442, 0
        %1449 = vmatprep.subr.bf16.mxu0 0
        %1450 = vmatpush1.bf16.msra.mxu0 %v1333
        %1451 = vmatprep.subr.bf16.mxu0 0
        %1452 = vmatpush1.bf16.msra.mxu0 %v1334
        %1453 = vmatprep.subr.bf16.mxu0 0
        %1454 = vmatpush1.bf16.msra.mxu0 0
        %1455 = vmatprep.subr.bf16.mxu0 0
        %1456 = vmatpush1.bf16.msra.mxu0 0
        %1457 = vmatprep.subr.bf16.mxu0 0
        %1458 = vmatpush1.bf16.msra.mxu0 0
        %1459 = vmatprep.subr.bf16.mxu0 0
        %1460 = vmatpush1.bf16.msra.mxu0 0
        %1461 = vmatprep.subr.bf16.mxu0 0
        %1462 = vmatpush1.bf16.msra.mxu0 0
        %1463 = vmatprep.subr.bf16.mxu0 0
        %1464 = vmatpush1.bf16.msra.mxu0 0
        %1465 = vmatprep.subr.bf16.mxu0 0
        %1466 = vmatpush1.bf16.msra.mxu0 0
        %1467 = vmatprep.subr.bf16.mxu0 0
        %1468 = vmatpush1.bf16.msra.mxu0 0
        %1469 = vmatprep.subr.bf16.mxu0 0
        %1470 = vmatpush1.bf16.msra.mxu0 0
        %1471 = vmatprep.subr.bf16.mxu0 0
        %1472 = vmatpush1.bf16.msra.mxu0 0
        %1473 = vmatprep.subr.bf16.mxu0 0
        %1474 = vmatpush1.bf16.msra.mxu0 0
        %1475 = vmatprep.subr.bf16.mxu0 0
        %1476 = vmatpush1.bf16.msra.mxu0 0
        %1477 = vmatprep.subr.bf16.mxu0 0
        %1478 = vmatpush1.bf16.msra.mxu0 0
        %1479 = vmatprep.subr.bf16.mxu0 0
        %1480 = vmatpush1.bf16.msra.mxu0 0
        %1481 = vmatprep.mubr.bf16.mxu0 0
        %1482 = vmatmul.mubr.bf16.gmra.mrb[0].mxu0 %v1444
        %v1483 = vpop.f32.mrb[0].mxu0
        %v1484 = vadd.f32 0.0, %v1483
        %v1485 = vpop.f32.mrb[0].mxu0
        %v1486 = vpop.f32.mrb[0].mxu0
        %v1487 = vadd.f32 0.0, %v1486
        %v1488 = vpop.f32.mrb[0].mxu0
        %1489 = vmatprep.mubr.bf16.mxu0 0
        %1490 = vmatmul.mubr.bf16.gmra.mrb[0].mxu0 %v1447
        %v1491 = vpop.f32.mrb[0].mxu0
        %v1492 = vadd.f32 0.0, %v1491
        %v1493 = vpop.f32.mrb[0].mxu0
        %v1494 = vpop.f32.mrb[0].mxu0
        %v1495 = vadd.f32 0.0, %v1494
        %v1496 = vpop.f32.mrb[0].mxu0
        %1497 = vdwg.mxu0
        %1498 = vst.msk [vmem:[#allocation2] sm:$0xff] %vm1335, %v1484
        %1499 = vst.msk [vmem:[#allocation2 + $0x8] sm:$0xff] %vm1335, %v1487
        %1500 = vst.msk [vmem:[#allocation2 + $0x10] sm:$0xff] %vm1335, %v1492
        %1501 = vst.msk [vmem:[#allocation2 + $0x18] sm:$0xff] %vm1335, %v1495
        %1504 = vrot.lane.b32.xlu0 %v1329, 96
        %v1505 = vpop.permute.xlu0 %1504
        %1506 = vrot.lane.b32.xlu0 %v1330, 96
        %v1507 = vpop.permute.xlu0 %1506
        %1510 = vrot.lane.b32.xlu0 %v1331, 96
        %v1511 = vpop.permute.xlu0 %1510
        %1512 = vrot.lane.b32.xlu0 %v1332, 96
        %v1513 = vpop.permute.xlu0 %1512
        %v1515 = vsel %vm1335, %v1505, 0
        %v1518 = vsel %vm1335, %v1507, 0
        %v1521 = vsel %vm1335, %v1511, 0
        %v1524 = vsel %vm1335, %v1513, 0
        %1526 = vmatprep.subr.bf16.mxu0 0
        %1527 = vmatpush1.bf16.xpose.msra.mxu0 %v1521
        %1528 = vmatprep.subr.bf16.mxu0 0
        %1529 = vmatpush1.bf16.xpose.msra.mxu0 %v1524
        %1530 = vmatprep.subr.bf16.mxu0 0
        %1531 = vmatpush1.bf16.xpose.msra.mxu0 0
        %1532 = vmatprep.subr.bf16.mxu0 0
        %1533 = vmatpush1.bf16.xpose.msra.mxu0 0
        %1534 = vmatprep.subr.bf16.mxu0 0
        %1535 = vmatpush1.bf16.xpose.msra.mxu0 0
        %1536 = vmatprep.subr.bf16.mxu0 0
        %1537 = vmatpush1.bf16.xpose.msra.mxu0 0
        %1538 = vmatprep.subr.bf16.mxu0 0
        %1539 = vmatpush1.bf16.xpose.msra.mxu0 0
        %1540 = vmatprep.subr.bf16.mxu0 0
        %1541 = vmatpush1.bf16.xpose.msra.mxu0 0
        %1542 = vmatprep.subr.bf16.mxu0 0
        %1543 = vmatpush1.bf16.xpose.msra.mxu0 0
        %1544 = vmatprep.subr.bf16.mxu0 0
        %1545 = vmatpush1.bf16.xpose.msra.mxu0 0
        %1546 = vmatprep.subr.bf16.mxu0 0
        %1547 = vmatpush1.bf16.xpose.msra.mxu0 0
        %1548 = vmatprep.subr.bf16.mxu0 0
        %1549 = vmatpush1.bf16.xpose.msra.mxu0 0
        %1550 = vmatprep.subr.bf16.mxu0 0
        %1551 = vmatpush1.bf16.xpose.msra.mxu0 0
        %1552 = vmatprep.subr.bf16.mxu0 0
        %1553 = vmatpush1.bf16.xpose.msra.mxu0 0
        %1554 = vmatprep.subr.bf16.mxu0 0
        %1555 = vmatpush1.bf16.xpose.msra.mxu0 0
        %1556 = vmatprep.subr.bf16.mxu0 0
        %1557 = vmatpush1.bf16.xpose.msra.mxu0 0
        %1558 = vmatprep.mubr.bf16.mxu0 0
        %1559 = vmatmul.mubr.bf16.gmra.mrb[0].mxu0 %v1515
        %v1560 = vpop.f32.mrb[0].mxu0
        %v1561 = vadd.f32 %v1308, %v1560
        %v1562 = vpop.f32.mrb[0].mxu0
        %v1563 = vpop.f32.mrb[0].mxu0
        %v1564 = vadd.f32 %v1309, %v1563
        %v1565 = vpop.f32.mrb[0].mxu0
        %1566 = vmatprep.mubr.bf16.mxu0 0
        %1567 = vmatmul.mubr.bf16.gmra.mrb[0].mxu0 %v1518
        %v1568 = vpop.f32.mrb[0].mxu0
        %v1569 = vadd.f32 %v1310, %v1568
        %v1570 = vpop.f32.mrb[0].mxu0
        %v1571 = vpop.f32.mrb[0].mxu0
        %v1572 = vadd.f32 %v1311, %v1571
        %v1573 = vpop.f32.mrb[0].mxu0
        %1574 = vdwg.mxu0
        %v1575 = vsel %vm1335, %v1561, -inf
        %1576 = vmax.xlane.f32.xlu0 %v1575
        %v1577 = vpop.xlane.xlu0 %1576
        %v1578 = vsel %vm1335, %v1564, -inf
        %1579 = vmax.xlane.f32.xlu0 %v1578
        %v1580 = vpop.xlane.xlu0 %1579
        %v1581 = vsel %vm1335, %v1569, -inf
        %1582 = vmax.xlane.f32.xlu0 %v1581
        %v1583 = vpop.xlane.xlu0 %1582
        %v1584 = vsel %vm1335, %v1572, -inf
        %1585 = vmax.xlane.f32.xlu0 %v1584
        %v1586 = vpop.xlane.xlu0 %1585
        %v1587 = vsub.f32 %v1561, %v1577
        %v1588 = vsub.f32 %v1564, %v1580
        %v1589 = vsub.f32 %v1569, %v1583
        %v1590 = vsub.f32 %v1572, %v1586
        %v1591 = vmul.f32 %v1587, 1.442695
        %v1592 = vpow.pop %v1591
        %v1593 = vmul.f32 %v1588, 1.442695
        %v1594 = vpow.pop %v1593
        %v1595 = vmul.f32 %v1589, 1.442695
        %v1596 = vpow.pop %v1595
        %v1597 = vmul.f32 %v1590, 1.442695
        %v1598 = vpow.pop %v1597
        %v1599 = vsel %vm1335, %v1592, 0.0
        %1600 = vadd.xlane.f32.xlu0 %v1599
        %v1601 = vpop.xlane.xlu0 %1600
        %v1602 = vsel %vm1335, %v1594, 0.0
        %1603 = vadd.xlane.f32.xlu0 %v1602
        %v1604 = vpop.xlane.xlu0 %1603
        %v1605 = vsel %vm1335, %v1596, 0.0
        %1606 = vadd.xlane.f32.xlu0 %v1605
        %v1607 = vpop.xlane.xlu0 %1606
        %v1608 = vsel %vm1335, %v1598, 0.0
        %1609 = vadd.xlane.f32.xlu0 %v1608
        %v1610 = vpop.xlane.xlu0 %1609
        %v1611 = vrcp.pop %v1601
        %v1612 = vrcp.pop %v1604
        %v1613 = vrcp.pop %v1607
        %v1614 = vrcp.pop %v1610
        %v1615 = vmul.f32 %v1592, %v1611
        %v1616 = vmul.f32 %v1594, %v1612
        %v1617 = vmul.f32 %v1596, %v1613
        %v1618 = vmul.f32 %v1598, %v1614
        %v1619 = vpack.c.bf16 %v1616, %v1615
        %v1620 = vpack.c.bf16 %v1618, %v1617
        %1623 = vrot.lane.b32.xlu0 %v1333, 96
        %v1624 = vpop.permute.xlu0 %1623
        %1625 = vrot.lane.b32.xlu0 %v1334, 96
        %v1626 = vpop.permute.xlu0 %1625
        %v1630 = vsel %vm1335, %v1619, 0
        %v1633 = vsel %vm1335, %v1620, 0
        %1635 = vmatprep.subr.bf16.mxu0 0
        %1636 = vmatpush1.bf16.msra.mxu0 %v1624
        %1637 = vmatprep.subr.bf16.mxu0 0
        %1638 = vmatpush1.bf16.msra.mxu0 %v1626
        %1639 = vmatprep.subr.bf16.mxu0 0
        %1640 = vmatpush1.bf16.msra.mxu0 0
        %1641 = vmatprep.subr.bf16.mxu0 0
        %1642 = vmatpush1.bf16.msra.mxu0 0
        %1643 = vmatprep.subr.bf16.mxu0 0
        %1644 = vmatpush1.bf16.msra.mxu0 0
        %1645 = vmatprep.subr.bf16.mxu0 0
        %1646 = vmatpush1.bf16.msra.mxu0 0
        %1647 = vmatprep.subr.bf16.mxu0 0
        %1648 = vmatpush1.bf16.msra.mxu0 0
        %1649 = vmatprep.subr.bf16.mxu0 0
        %1650 = vmatpush1.bf16.msra.mxu0 0
        %1651 = vmatprep.subr.bf16.mxu0 0
        %1652 = vmatpush1.bf16.msra.mxu0 0
        %1653 = vmatprep.subr.bf16.mxu0 0
        %1654 = vmatpush1.bf16.msra.mxu0 0
        %1655 = vmatprep.subr.bf16.mxu0 0
        %1656 = vmatpush1.bf16.msra.mxu0 0
        %1657 = vmatprep.subr.bf16.mxu0 0
        %1658 = vmatpush1.bf16.msra.mxu0 0
        %1659 = vmatprep.subr.bf16.mxu0 0
        %1660 = vmatpush1.bf16.msra.mxu0 0
        %1661 = vmatprep.subr.bf16.mxu0 0
        %1662 = vmatpush1.bf16.msra.mxu0 0
        %1663 = vmatprep.subr.bf16.mxu0 0
        %1664 = vmatpush1.bf16.msra.mxu0 0
        %1665 = vmatprep.subr.bf16.mxu0 0
        %1666 = vmatpush1.bf16.msra.mxu0 0
        %1667 = vmatprep.mubr.bf16.mxu0 0
        %1668 = vmatmul.mubr.bf16.gmra.mrb[0].mxu0 %v1630
        %v1669 = vpop.f32.mrb[0].mxu0
        %v1670 = vadd.f32 0.0, %v1669
        %v1671 = vpop.f32.mrb[0].mxu0
        %v1672 = vpop.f32.mrb[0].mxu0
        %v1673 = vadd.f32 0.0, %v1672
        %v1674 = vpop.f32.mrb[0].mxu0
        %1675 = vmatprep.mubr.bf16.mxu0 0
        %1676 = vmatmul.mubr.bf16.gmra.mrb[0].mxu0 %v1633
        %v1677 = vpop.f32.mrb[0].mxu0
        %v1678 = vadd.f32 0.0, %v1677
        %v1679 = vpop.f32.mrb[0].mxu0
        %v1680 = vpop.f32.mrb[0].mxu0
        %v1681 = vadd.f32 0.0, %v1680
        %v1682 = vpop.f32.mrb[0].mxu0
        %1683 = vdwg.mxu0
        %1688 = vrot.lane.b32.xlu0 %v1670, 32
        %v1689 = vpop.permute.xlu0 %1688
        %1690 = vrot.lane.b32.xlu0 %v1673, 32
        %v1691 = vpop.permute.xlu0 %1690
        %1692 = vrot.lane.b32.xlu0 %v1678, 32
        %v1693 = vpop.permute.xlu0 %1692
        %1694 = vrot.lane.b32.xlu0 %v1681, 32
        %v1695 = vpop.permute.xlu0 %1694
        %vm1700 = vcmask 523520
        %1701 = vst.msk [vmem:[#allocation2] sm:$0xff] %vm1700, %v1689
        %1702 = vst.msk [vmem:[#allocation2 + $0x8] sm:$0xff] %vm1700, %v1691
        %1703 = vst.msk [vmem:[#allocation2 + $0x10] sm:$0xff] %vm1700, %v1693
        %1704 = vst.msk [vmem:[#allocation2 + $0x18] sm:$0xff] %vm1700, %v1695
        %1705 = vrot.lane.b32.xlu0 %v1329, 64
        %v1706 = vpop.permute.xlu0 %1705
        %1707 = vrot.lane.b32.xlu0 %v1330, 64
        %v1708 = vpop.permute.xlu0 %1707
        %1709 = vrot.lane.b32.xlu0 %v1331, 64
        %v1710 = vpop.permute.xlu0 %1709
        %1711 = vrot.lane.b32.xlu0 %v1332, 64
        %v1712 = vpop.permute.xlu0 %1711
        %v1714 = vsel %vm1335, %v1706, 0
        %v1717 = vsel %vm1335, %v1708, 0
        %v1720 = vsel %vm1335, %v1710, 0
        %v1723 = vsel %vm1335, %v1712, 0
        %1725 = vmatprep.subr.bf16.mxu0 0
        %1726 = vmatpush1.bf16.xpose.msra.mxu0 %v1720
        %1727 = vmatprep.subr.bf16.mxu0 0
        %1728 = vmatpush1.bf16.xpose.msra.mxu0 %v1723
        %1729 = vmatprep.subr.bf16.mxu0 0
        %1730 = vmatpush1.bf16.xpose.msra.mxu0 0
        %1731 = vmatprep.subr.bf16.mxu0 0
        %1732 = vmatpush1.bf16.xpose.msra.mxu0 0
        %1733 = vmatprep.subr.bf16.mxu0 0
        %1734 = vmatpush1.bf16.xpose.msra.mxu0 0
        %1735 = vmatprep.subr.bf16.mxu0 0
        %1736 = vmatpush1.bf16.xpose.msra.mxu0 0
        %1737 = vmatprep.subr.bf16.mxu0 0
        %1738 = vmatpush1.bf16.xpose.msra.mxu0 0
        %1739 = vmatprep.subr.bf16.mxu0 0
        %1740 = vmatpush1.bf16.xpose.msra.mxu0 0
        %1741 = vmatprep.subr.bf16.mxu0 0
        %1742 = vmatpush1.bf16.xpose.msra.mxu0 0
        %1743 = vmatprep.subr.bf16.mxu0 0
        %1744 = vmatpush1.bf16.xpose.msra.mxu0 0
        %1745 = vmatprep.subr.bf16.mxu0 0
        %1746 = vmatpush1.bf16.xpose.msra.mxu0 0
        %1747 = vmatprep.subr.bf16.mxu0 0
        %1748 = vmatpush1.bf16.xpose.msra.mxu0 0
        %1749 = vmatprep.subr.bf16.mxu0 0
        %1750 = vmatpush1.bf16.xpose.msra.mxu0 0
        %1751 = vmatprep.subr.bf16.mxu0 0
        %1752 = vmatpush1.bf16.xpose.msra.mxu0 0
        %1753 = vmatprep.subr.bf16.mxu0 0
        %1754 = vmatpush1.bf16.xpose.msra.mxu0 0
        %1755 = vmatprep.subr.bf16.mxu0 0
        %1756 = vmatpush1.bf16.xpose.msra.mxu0 0
        %1757 = vmatprep.mubr.bf16.mxu0 0
        %1758 = vmatmul.mubr.bf16.gmra.mrb[0].mxu0 %v1714
        %v1759 = vpop.f32.mrb[0].mxu0
        %v1760 = vadd.f32 %v1308, %v1759
        %v1761 = vpop.f32.mrb[0].mxu0
        %v1762 = vpop.f32.mrb[0].mxu0
        %v1763 = vadd.f32 %v1309, %v1762
        %v1764 = vpop.f32.mrb[0].mxu0
        %1765 = vmatprep.mubr.bf16.mxu0 0
        %1766 = vmatmul.mubr.bf16.gmra.mrb[0].mxu0 %v1717
        %v1767 = vpop.f32.mrb[0].mxu0
        %v1768 = vadd.f32 %v1310, %v1767
        %v1769 = vpop.f32.mrb[0].mxu0
        %v1770 = vpop.f32.mrb[0].mxu0
        %v1771 = vadd.f32 %v1311, %v1770
        %v1772 = vpop.f32.mrb[0].mxu0
        %1773 = vdwg.mxu0
        %v1774 = vsel %vm1335, %v1760, -inf
        %1775 = vmax.xlane.f32.xlu0 %v1774
        %v1776 = vpop.xlane.xlu0 %1775
        %v1777 = vsel %vm1335, %v1763, -inf
        %1778 = vmax.xlane.f32.xlu0 %v1777
        %v1779 = vpop.xlane.xlu0 %1778
        %v1780 = vsel %vm1335, %v1768, -inf
        %1781 = vmax.xlane.f32.xlu0 %v1780
        %v1782 = vpop.xlane.xlu0 %1781
        %v1783 = vsel %vm1335, %v1771, -inf
        %1784 = vmax.xlane.f32.xlu0 %v1783
        %v1785 = vpop.xlane.xlu0 %1784
        %v1786 = vsub.f32 %v1760, %v1776
        %v1787 = vsub.f32 %v1763, %v1779
        %v1788 = vsub.f32 %v1768, %v1782
        %v1789 = vsub.f32 %v1771, %v1785
        %v1790 = vmul.f32 %v1786, 1.442695
        %v1791 = vpow.pop %v1790
        %v1792 = vmul.f32 %v1787, 1.442695
        %v1793 = vpow.pop %v1792
        %v1794 = vmul.f32 %v1788, 1.442695
        %v1795 = vpow.pop %v1794
        %v1796 = vmul.f32 %v1789, 1.442695
        %v1797 = vpow.pop %v1796
        %v1798 = vsel %vm1335, %v1791, 0.0
        %1799 = vadd.xlane.f32.xlu0 %v1798
        %v1800 = vpop.xlane.xlu0 %1799
        %v1801 = vsel %vm1335, %v1793, 0.0
        %1802 = vadd.xlane.f32.xlu0 %v1801
        %v1803 = vpop.xlane.xlu0 %1802
        %v1804 = vsel %vm1335, %v1795, 0.0
        %1805 = vadd.xlane.f32.xlu0 %v1804
        %v1806 = vpop.xlane.xlu0 %1805
        %v1807 = vsel %vm1335, %v1797, 0.0
        %1808 = vadd.xlane.f32.xlu0 %v1807
        %v1809 = vpop.xlane.xlu0 %1808
        %v1810 = vrcp.pop %v1800
        %v1811 = vrcp.pop %v1803
        %v1812 = vrcp.pop %v1806
        %v1813 = vrcp.pop %v1809
        %v1814 = vmul.f32 %v1791, %v1810
        %v1815 = vmul.f32 %v1793, %v1811
        %v1816 = vmul.f32 %v1795, %v1812
        %v1817 = vmul.f32 %v1797, %v1813
        %v1818 = vpack.c.bf16 %v1815, %v1814
        %v1819 = vpack.c.bf16 %v1817, %v1816
        %1820 = vrot.lane.b32.xlu0 %v1333, 64
        %v1821 = vpop.permute.xlu0 %1820
        %1822 = vrot.lane.b32.xlu0 %v1334, 64
        %v1823 = vpop.permute.xlu0 %1822
        %v1827 = vsel %vm1335, %v1818, 0
        %v1830 = vsel %vm1335, %v1819, 0
        %1832 = vmatprep.subr.bf16.mxu0 0
        %1833 = vmatpush1.bf16.msra.mxu0 %v1821
        %1834 = vmatprep.subr.bf16.mxu0 0
        %1835 = vmatpush1.bf16.msra.mxu0 %v1823
        %1836 = vmatprep.subr.bf16.mxu0 0
        %1837 = vmatpush1.bf16.msra.mxu0 0
        %1838 = vmatprep.subr.bf16.mxu0 0
        %1839 = vmatpush1.bf16.msra.mxu0 0
        %1840 = vmatprep.subr.bf16.mxu0 0
        %1841 = vmatpush1.bf16.msra.mxu0 0
        %1842 = vmatprep.subr.bf16.mxu0 0
        %1843 = vmatpush1.bf16.msra.mxu0 0
        %1844 = vmatprep.subr.bf16.mxu0 0
        %1845 = vmatpush1.bf16.msra.mxu0 0
        %1846 = vmatprep.subr.bf16.mxu0 0
        %1847 = vmatpush1.bf16.msra.mxu0 0
        %1848 = vmatprep.subr.bf16.mxu0 0
        %1849 = vmatpush1.bf16.msra.mxu0 0
        %1850 = vmatprep.subr.bf16.mxu0 0
        %1851 = vmatpush1.bf16.msra.mxu0 0
        %1852 = vmatprep.subr.bf16.mxu0 0
        %1853 = vmatpush1.bf16.msra.mxu0 0
        %1854 = vmatprep.subr.bf16.mxu0 0
        %1855 = vmatpush1.bf16.msra.mxu0 0
        %1856 = vmatprep.subr.bf16.mxu0 0
        %1857 = vmatpush1.bf16.msra.mxu0 0
        %1858 = vmatprep.subr.bf16.mxu0 0
        %1859 = vmatpush1.bf16.msra.mxu0 0
        %1860 = vmatprep.subr.bf16.mxu0 0
        %1861 = vmatpush1.bf16.msra.mxu0 0
        %1862 = vmatprep.subr.bf16.mxu0 0
        %1863 = vmatpush1.bf16.msra.mxu0 0
        %1864 = vmatprep.mubr.bf16.mxu0 0
        %1865 = vmatmul.mubr.bf16.gmra.mrb[0].mxu0 %v1827
        %v1866 = vpop.f32.mrb[0].mxu0
        %v1867 = vadd.f32 0.0, %v1866
        %v1868 = vpop.f32.mrb[0].mxu0
        %v1869 = vpop.f32.mrb[0].mxu0
        %v1870 = vadd.f32 0.0, %v1869
        %v1871 = vpop.f32.mrb[0].mxu0
        %1872 = vmatprep.mubr.bf16.mxu0 0
        %1873 = vmatmul.mubr.bf16.gmra.mrb[0].mxu0 %v1830
        %v1874 = vpop.f32.mrb[0].mxu0
        %v1875 = vadd.f32 0.0, %v1874
        %v1876 = vpop.f32.mrb[0].mxu0
        %v1877 = vpop.f32.mrb[0].mxu0
        %v1878 = vadd.f32 0.0, %v1877
        %v1879 = vpop.f32.mrb[0].mxu0
        %1880 = vdwg.mxu0
        %1885 = vrot.lane.b32.xlu0 %v1867, 64
        %v1886 = vpop.permute.xlu0 %1885
        %1887 = vrot.lane.b32.xlu0 %v1870, 64
        %v1888 = vpop.permute.xlu0 %1887
        %1889 = vrot.lane.b32.xlu0 %v1875, 64
        %v1890 = vpop.permute.xlu0 %1889
        %1891 = vrot.lane.b32.xlu0 %v1878, 64
        %v1892 = vpop.permute.xlu0 %1891
        %vm1897 = vcmask 785920
        %1898 = vst.msk [vmem:[#allocation2] sm:$0xff] %vm1897, %v1886
        %1899 = vst.msk [vmem:[#allocation2 + $0x8] sm:$0xff] %vm1897, %v1888
        %1900 = vst.msk [vmem:[#allocation2 + $0x10] sm:$0xff] %vm1897, %v1890
        %1901 = vst.msk [vmem:[#allocation2 + $0x18] sm:$0xff] %vm1897, %v1892
        %1902 = vrot.lane.b32.xlu0 %v1329, 32
        %v1903 = vpop.permute.xlu0 %1902
        %1904 = vrot.lane.b32.xlu0 %v1330, 32
        %v1905 = vpop.permute.xlu0 %1904
        %1906 = vrot.lane.b32.xlu0 %v1331, 32
        %v1907 = vpop.permute.xlu0 %1906
        %1908 = vrot.lane.b32.xlu0 %v1332, 32
        %v1909 = vpop.permute.xlu0 %1908
        %v1911 = vsel %vm1335, %v1903, 0
        %v1914 = vsel %vm1335, %v1905, 0
        %v1917 = vsel %vm1335, %v1907, 0
        %v1920 = vsel %vm1335, %v1909, 0
        %1922 = vmatprep.subr.bf16.mxu0 0
        %1923 = vmatpush1.bf16.xpose.msra.mxu0 %v1917
        %1924 = vmatprep.subr.bf16.mxu0 0
        %1925 = vmatpush1.bf16.xpose.msra.mxu0 %v1920
        %1926 = vmatprep.subr.bf16.mxu0 0
        %1927 = vmatpush1.bf16.xpose.msra.mxu0 0
        %1928 = vmatprep.subr.bf16.mxu0 0
        %1929 = vmatpush1.bf16.xpose.msra.mxu0 0
        %1930 = vmatprep.subr.bf16.mxu0 0
        %1931 = vmatpush1.bf16.xpose.msra.mxu0 0
        %1932 = vmatprep.subr.bf16.mxu0 0
        %1933 = vmatpush1.bf16.xpose.msra.mxu0 0
        %1934 = vmatprep.subr.bf16.mxu0 0
        %1935 = vmatpush1.bf16.xpose.msra.mxu0 0
        %1936 = vmatprep.subr.bf16.mxu0 0
        %1937 = vmatpush1.bf16.xpose.msra.mxu0 0
        %1938 = vmatprep.subr.bf16.mxu0 0
        %1939 = vmatpush1.bf16.xpose.msra.mxu0 0
        %1940 = vmatprep.subr.bf16.mxu0 0
        %1941 = vmatpush1.bf16.xpose.msra.mxu0 0
        %1942 = vmatprep.subr.bf16.mxu0 0
        %1943 = vmatpush1.bf16.xpose.msra.mxu0 0
        %1944 = vmatprep.subr.bf16.mxu0 0
        %1945 = vmatpush1.bf16.xpose.msra.mxu0 0
        %1946 = vmatprep.subr.bf16.mxu0 0
        %1947 = vmatpush1.bf16.xpose.msra.mxu0 0
        %1948 = vmatprep.subr.bf16.mxu0 0
        %1949 = vmatpush1.bf16.xpose.msra.mxu0 0
        %1950 = vmatprep.subr.bf16.mxu0 0
        %1951 = vmatpush1.bf16.xpose.msra.mxu0 0
        %1952 = vmatprep.subr.bf16.mxu0 0
        %1953 = vmatpush1.bf16.xpose.msra.mxu0 0
        %1954 = vmatprep.mubr.bf16.mxu0 0
        %1955 = vmatmul.mubr.bf16.gmra.mrb[0].mxu0 %v1911
        %v1956 = vpop.f32.mrb[0].mxu0
        %v1957 = vadd.f32 %v1308, %v1956
        %v1958 = vpop.f32.mrb[0].mxu0
        %v1959 = vpop.f32.mrb[0].mxu0
        %v1960 = vadd.f32 %v1309, %v1959
        %v1961 = vpop.f32.mrb[0].mxu0
        %1962 = vmatprep.mubr.bf16.mxu0 0
        %1963 = vmatmul.mubr.bf16.gmra.mrb[0].mxu0 %v1914
        %v1964 = vpop.f32.mrb[0].mxu0
        %v1965 = vadd.f32 %v1310, %v1964
        %v1966 = vpop.f32.mrb[0].mxu0
        %v1967 = vpop.f32.mrb[0].mxu0
        %v1968 = vadd.f32 %v1311, %v1967
        %v1969 = vpop.f32.mrb[0].mxu0
        %1970 = vdwg.mxu0
        %v1971 = vsel %vm1335, %v1957, -inf
        %1972 = vmax.xlane.f32.xlu0 %v1971
        %v1973 = vpop.xlane.xlu0 %1972
        %v1974 = vsel %vm1335, %v1960, -inf
        %1975 = vmax.xlane.f32.xlu0 %v1974
        %v1976 = vpop.xlane.xlu0 %1975
        %v1977 = vsel %vm1335, %v1965, -inf
        %1978 = vmax.xlane.f32.xlu0 %v1977
        %v1979 = vpop.xlane.xlu0 %1978
        %v1980 = vsel %vm1335, %v1968, -inf
        %1981 = vmax.xlane.f32.xlu0 %v1980
        %v1982 = vpop.xlane.xlu0 %1981
        %v1983 = vsub.f32 %v1957, %v1973
        %v1984 = vsub.f32 %v1960, %v1976
        %v1985 = vsub.f32 %v1965, %v1979
        %v1986 = vsub.f32 %v1968, %v1982
        %v1987 = vmul.f32 %v1983, 1.442695
        %v1988 = vpow.pop %v1987
        %v1989 = vmul.f32 %v1984, 1.442695
        %v1990 = vpow.pop %v1989
        %v1991 = vmul.f32 %v1985, 1.442695
        %v1992 = vpow.pop %v1991
        %v1993 = vmul.f32 %v1986, 1.442695
        %v1994 = vpow.pop %v1993
        %v1995 = vsel %vm1335, %v1988, 0.0
        %1996 = vadd.xlane.f32.xlu0 %v1995
        %v1997 = vpop.xlane.xlu0 %1996
        %v1998 = vsel %vm1335, %v1990, 0.0
        %1999 = vadd.xlane.f32.xlu0 %v1998
        %v2000 = vpop.xlane.xlu0 %1999
        %v2001 = vsel %vm1335, %v1992, 0.0
        %2002 = vadd.xlane.f32.xlu0 %v2001
        %v2003 = vpop.xlane.xlu0 %2002
        %v2004 = vsel %vm1335, %v1994, 0.0
        %2005 = vadd.xlane.f32.xlu0 %v2004
        %v2006 = vpop.xlane.xlu0 %2005
        %v2007 = vrcp.pop %v1997
        %v2008 = vrcp.pop %v2000
        %v2009 = vrcp.pop %v2003
        %v2010 = vrcp.pop %v2006
        %v2011 = vmul.f32 %v1988, %v2007
        %v2012 = vmul.f32 %v1990, %v2008
        %v2013 = vmul.f32 %v1992, %v2009
        %v2014 = vmul.f32 %v1994, %v2010
        %v2015 = vpack.c.bf16 %v2012, %v2011
        %v2016 = vpack.c.bf16 %v2014, %v2013
        %2017 = vrot.lane.b32.xlu0 %v1333, 32
        %v2018 = vpop.permute.xlu0 %2017
        %2019 = vrot.lane.b32.xlu0 %v1334, 32
        %v2020 = vpop.permute.xlu0 %2019
        %v2024 = vsel %vm1335, %v2015, 0
        %v2027 = vsel %vm1335, %v2016, 0
        %2029 = vmatprep.subr.bf16.mxu0 0
        %2030 = vmatpush1.bf16.msra.mxu0 %v2018
        %2031 = vmatprep.subr.bf16.mxu0 0
        %2032 = vmatpush1.bf16.msra.mxu0 %v2020
        %2033 = vmatprep.subr.bf16.mxu0 0
        %2034 = vmatpush1.bf16.msra.mxu0 0
        %2035 = vmatprep.subr.bf16.mxu0 0
        %2036 = vmatpush1.bf16.msra.mxu0 0
        %2037 = vmatprep.subr.bf16.mxu0 0
        %2038 = vmatpush1.bf16.msra.mxu0 0
        %2039 = vmatprep.subr.bf16.mxu0 0
        %2040 = vmatpush1.bf16.msra.mxu0 0
        %2041 = vmatprep.subr.bf16.mxu0 0
        %2042 = vmatpush1.bf16.msra.mxu0 0
        %2043 = vmatprep.subr.bf16.mxu0 0
        %2044 = vmatpush1.bf16.msra.mxu0 0
        %2045 = vmatprep.subr.bf16.mxu0 0
        %2046 = vmatpush1.bf16.msra.mxu0 0
        %2047 = vmatprep.subr.bf16.mxu0 0
        %2048 = vmatpush1.bf16.msra.mxu0 0
        %2049 = vmatprep.subr.bf16.mxu0 0
        %2050 = vmatpush1.bf16.msra.mxu0 0
        %2051 = vmatprep.subr.bf16.mxu0 0
        %2052 = vmatpush1.bf16.msra.mxu0 0
        %2053 = vmatprep.subr.bf16.mxu0 0
        %2054 = vmatpush1.bf16.msra.mxu0 0
        %2055 = vmatprep.subr.bf16.mxu0 0
        %2056 = vmatpush1.bf16.msra.mxu0 0
        %2057 = vmatprep.subr.bf16.mxu0 0
        %2058 = vmatpush1.bf16.msra.mxu0 0
        %2059 = vmatprep.subr.bf16.mxu0 0
        %2060 = vmatpush1.bf16.msra.mxu0 0
        %2061 = vmatprep.mubr.bf16.mxu0 0
        %2062 = vmatmul.mubr.bf16.gmra.mrb[0].mxu0 %v2024
        %v2063 = vpop.f32.mrb[0].mxu0
        %v2064 = vadd.f32 0.0, %v2063
        %v2065 = vpop.f32.mrb[0].mxu0
        %v2066 = vpop.f32.mrb[0].mxu0
        %v2067 = vadd.f32 0.0, %v2066
        %v2068 = vpop.f32.mrb[0].mxu0
        %2069 = vmatprep.mubr.bf16.mxu0 0
        %2070 = vmatmul.mubr.bf16.gmra.mrb[0].mxu0 %v2027
        %v2071 = vpop.f32.mrb[0].mxu0
        %v2072 = vadd.f32 0.0, %v2071
        %v2073 = vpop.f32.mrb[0].mxu0
        %v2074 = vpop.f32.mrb[0].mxu0
        %v2075 = vadd.f32 0.0, %v2074
        %v2076 = vpop.f32.mrb[0].mxu0
        %2077 = vdwg.mxu0
        %2082 = vrot.lane.b32.xlu0 %v2064, 96
        %v2083 = vpop.permute.xlu0 %2082
        %2084 = vrot.lane.b32.xlu0 %v2067, 96
        %v2085 = vpop.permute.xlu0 %2084
        %2086 = vrot.lane.b32.xlu0 %v2072, 96
        %v2087 = vpop.permute.xlu0 %2086
        %2088 = vrot.lane.b32.xlu0 %v2075, 96
        %v2089 = vpop.permute.xlu0 %2088
        %vm2094 = vcmask 1048320
        %2095 = vst.msk [vmem:[#allocation2] sm:$0xff] %vm2094, %v2083
        %2096 = vst.msk [vmem:[#allocation2 + $0x8] sm:$0xff] %vm2094, %v2085
        %2097 = vst.msk [vmem:[#allocation2 + $0x10] sm:$0xff] %vm2094, %v2087
        %2098 = vst.msk [vmem:[#allocation2 + $0x18] sm:$0xff] %vm2094, %v2089
        %v2099 = vld [vmem:[#allocation2] sm:$0xff]
        %v2100 = vld [vmem:[#allocation2 + $0x8] sm:$0xff]
        %v2101 = vld [vmem:[#allocation2 + $0x10] sm:$0xff]
        %v2102 = vld [vmem:[#allocation2 + $0x18] sm:$0xff]
        %v2103 = vpack.c.bf16 %v2100, %v2099
        %v2104 = vpack.c.bf16 %v2102, %v2101
        %v2106 = vlaneseq
        %v2107 = vshrl.u32 %v2106, 7
        %v2108 = vsub.s32 0, %v2107
        %v2109 = vrot.slane %v1328, %v2108
        %v2127 = vunpack.c.l.b16 %v1312
        %v2128 = vunpack.c.l.b16 %v1313
        %v2129 = vunpack.c.l.b16 %v1314
        %v2130 = vunpack.c.l.b16 %v1315
        %v2131 = vunpack.c.l.b16 %v1316
        %v2132 = vunpack.c.l.b16 %v1317
        %v2133 = vunpack.c.l.b16 %v1318
        %v2134 = vunpack.c.l.b16 %v1319
        %v2135 = vunpack.c.l.b16 %v1320
        %v2136 = vunpack.c.l.b16 %v1321
        %v2137 = vunpack.c.l.b16 %v1322
        %v2138 = vunpack.c.l.b16 %v1323
        %v2139 = vunpack.c.l.b16 %v1324
        %v2140 = vunpack.c.l.b16 %v1325
        %v2141 = vunpack.c.l.b16 %v1326
        %v2142 = vunpack.c.l.b16 %v1327
        %v2143 = vpack.c.b16 %v2128, %v2127
        %v2144 = vpack.c.b16 %v2130, %v2129
        %v2145 = vpack.c.b16 %v2132, %v2131
        %v2146 = vpack.c.b16 %v2134, %v2133
        %v2147 = vpack.c.b16 %v2136, %v2135
        %v2148 = vpack.c.b16 %v2138, %v2137
        %v2149 = vpack.c.b16 %v2140, %v2139
        %v2150 = vpack.c.b16 %v2142, %v2141
        %2159 = vmatprep.subr.bf16.mxu0 0
        %2160 = vmatpush1.bf16.msra.mxu0 %v2143
        %2161 = vmatprep.subr.bf16.mxu0 0
        %2162 = vmatpush1.bf16.msra.mxu0 %v2144
        %2163 = vmatprep.subr.bf16.mxu0 0
        %2164 = vmatpush1.bf16.msra.mxu0 %v2145
        %2165 = vmatprep.subr.bf16.mxu0 0
        %2166 = vmatpush1.bf16.msra.mxu0 %v2146
        %2167 = vmatprep.subr.bf16.mxu0 0
        %2168 = vmatpush1.bf16.msra.mxu0 %v2147
        %2169 = vmatprep.subr.bf16.mxu0 0
        %2170 = vmatpush1.bf16.msra.mxu0 %v2148
        %2171 = vmatprep.subr.bf16.mxu0 0
        %2172 = vmatpush1.bf16.msra.mxu0 %v2149
        %2173 = vmatprep.subr.bf16.mxu0 0
        %2174 = vmatpush1.bf16.msra.mxu0 %v2150
        %2175 = vmatprep.subr.bf16.mxu0 0
        %2176 = vmatpush1.bf16.msra.mxu0 0
        %2177 = vmatprep.subr.bf16.mxu0 0
        %2178 = vmatpush1.bf16.msra.mxu0 0
        %2179 = vmatprep.subr.bf16.mxu0 0
        %2180 = vmatpush1.bf16.msra.mxu0 0
        %2181 = vmatprep.subr.bf16.mxu0 0
        %2182 = vmatpush1.bf16.msra.mxu0 0
        %2183 = vmatprep.subr.bf16.mxu0 0
        %2184 = vmatpush1.bf16.msra.mxu0 0
        %2185 = vmatprep.subr.bf16.mxu0 0
        %2186 = vmatpush1.bf16.msra.mxu0 0
        %2187 = vmatprep.subr.bf16.mxu0 0
        %2188 = vmatpush1.bf16.msra.mxu0 0
        %2189 = vmatprep.subr.bf16.mxu0 0
        %2190 = vmatpush1.bf16.msra.mxu0 0
        %2191 = vmatprep.mubr.bf16.mxu0 0
        %2192 = vmatmul.mubr.bf16.gmra.mrb[0].mxu0 %v2103
        %v2193 = vpop.f32.mrb[0].mxu0
        %v2194 = vadd.f32 %v2109, %v2193
        %v2195 = vpop.f32.mrb[0].mxu0
        %v2196 = vpop.f32.mrb[0].mxu0
        %v2197 = vadd.f32 %v2109, %v2196
        %v2198 = vpop.f32.mrb[0].mxu0
        %2199 = vmatprep.mubr.bf16.mxu0 0
        %2200 = vmatmul.mubr.bf16.gmra.mrb[0].mxu0 %v2104
        %v2201 = vpop.f32.mrb[0].mxu0
        %v2202 = vadd.f32 %v2109, %v2201
        %v2203 = vpop.f32.mrb[0].mxu0
        %v2204 = vpop.f32.mrb[0].mxu0
        %v2205 = vadd.f32 %v2109, %v2204
        %v2206 = vpop.f32.mrb[0].mxu0
        %2207 = vdwg.mxu0
        %v2208 = vadd.f32 %v999, %v2194
        %v2209 = vadd.f32 %v1000, %v2197
        %v2210 = vadd.f32 %v1001, %v2202
        %v2211 = vadd.f32 %v1002, %v2205
        %v2212 = vld [vmem:[%s8] sm:$0x1]
        %v2213 = vld [vmem:[%s9] sm:$0x1]
        %2214 = vadd.xlane.f32.xlu0 %v2208
        %v2215 = vpop.xlane.xlu0 %2214
        %2216 = vadd.xlane.f32.xlu0 %v2209
        %v2217 = vpop.xlane.xlu0 %2216
        %2218 = vadd.xlane.f32.xlu0 %v2210
        %v2219 = vpop.xlane.xlu0 %2218
        %2220 = vadd.xlane.f32.xlu0 %v2211
        %v2221 = vpop.xlane.xlu0 %2220
        %v2222 = vmul.f32 %v2215, %v894
        %v2223 = vmul.f32 %v2217, %v894
        %v2224 = vmul.f32 %v2219, %v894
        %v2225 = vmul.f32 %v2221, %v894
        %v2226 = vsub.f32 %v2208, %v2222
        %v2227 = vsub.f32 %v2209, %v2223
        %v2228 = vsub.f32 %v2210, %v2224
        %v2229 = vsub.f32 %v2211, %v2225
        %v2230 = vmul.f32 %v2226, %v2226
        %v2231 = vmul.f32 %v2227, %v2227
        %v2232 = vmul.f32 %v2228, %v2228
        %v2233 = vmul.f32 %v2229, %v2229
        %2234 = vadd.xlane.f32.xlu0 %v2230
        %v2235 = vpop.xlane.xlu0 %2234
        %2236 = vadd.xlane.f32.xlu0 %v2231
        %v2237 = vpop.xlane.xlu0 %2236
        %2238 = vadd.xlane.f32.xlu0 %v2232
        %v2239 = vpop.xlane.xlu0 %2238
        %2240 = vadd.xlane.f32.xlu0 %v2233
        %v2241 = vpop.xlane.xlu0 %2240
        %v2242 = vmul.f32 %v2235, %v894
        %v2243 = vmul.f32 %v2237, %v894
        %v2244 = vmul.f32 %v2239, %v894
        %v2245 = vmul.f32 %v2241, %v894
        %v2246 = vadd.f32 %v2242, 1e-05
        %v2247 = vadd.f32 %v2243, 1e-05
        %v2248 = vadd.f32 %v2244, 1e-05
        %v2249 = vadd.f32 %v2245, 1e-05
        %v2250 = vrsqrt.pop %v2246
        %v2251 = vrsqrt.pop %v2247
        %v2252 = vrsqrt.pop %v2248
        %v2253 = vrsqrt.pop %v2249
        %v2254 = vmul.f32 %v2226, %v2250
        %v2255 = vmul.f32 %v2227, %v2251
        %v2256 = vmul.f32 %v2228, %v2252
        %v2257 = vmul.f32 %v2229, %v2253
        %v2259 = vlaneseq
        %v2260 = vshrl.u32 %v2259, 7
        %v2261 = vsub.s32 0, %v2260
        %v2262 = vrot.slane %v2212, %v2261
        %v2264 = vmul.f32 %v2254, %v2262
        %v2265 = vmul.f32 %v2255, %v2262
        %v2266 = vmul.f32 %v2256, %v2262
        %v2267 = vmul.f32 %v2257, %v2262
        %v2269 = vlaneseq
        %v2270 = vshrl.u32 %v2269, 7
        %v2271 = vsub.s32 0, %v2270
        %v2272 = vrot.slane %v2213, %v2271
        %v2274 = vadd.f32 %v2264, %v2272
        %v2275 = vadd.f32 %v2265, %v2272
        %v2276 = vadd.f32 %v2266, %v2272
        %v2277 = vadd.f32 %v2267, %v2272
        %v2278 = vld [vmem:[#allocation12] sm:$0xf]
        %v2279 = vld [vmem:[#allocation12 + $0x4] sm:$0xf]
        %v2280 = vld [vmem:[#allocation12 + $0x8] sm:$0xf]
        %v2281 = vld [vmem:[#allocation12 + $0xc] sm:$0xf]
        %v2282 = vld [vmem:[#allocation12 + $0x10] sm:$0xf]
        %v2283 = vld [vmem:[#allocation12 + $0x14] sm:$0xf]
        %v2284 = vld [vmem:[#allocation12 + $0x18] sm:$0xf]
        %v2285 = vld [vmem:[#allocation12 + $0x1c] sm:$0xf]
        %v2286 = vld [vmem:[#allocation12 + $0x20] sm:$0xf]
        %v2287 = vld [vmem:[#allocation12 + $0x24] sm:$0xf]
        %v2288 = vld [vmem:[#allocation12 + $0x28] sm:$0xf]
        %v2289 = vld [vmem:[#allocation12 + $0x2c] sm:$0xf]
        %v2290 = vld [vmem:[#allocation12 + $0x30] sm:$0xf]
        %v2291 = vld [vmem:[#allocation12 + $0x34] sm:$0xf]
        %v2292 = vld [vmem:[#allocation12 + $0x38] sm:$0xf]
        %v2293 = vld [vmem:[#allocation12 + $0x3c] sm:$0xf]
        %v2294 = vpack.c.bf16 %v2275, %v2274
        %v2295 = vpack.c.bf16 %v2277, %v2276
        %v2296 = vld [vmem:[%s11] sm:$0x1]
        %v2298 = vlaneseq
        %v2299 = vshrl.u32 %v2298, 7
        %v2300 = vsub.s32 0, %v2299
        %v2301 = vrot.slane %v2296, %v2300
        %v2319 = vunpack.c.l.b16 %v2278
        %v2320 = vunpack.c.l.b16 %v2279
        %v2321 = vunpack.c.l.b16 %v2280
        %v2322 = vunpack.c.l.b16 %v2281
        %v2323 = vunpack.c.l.b16 %v2282
        %v2324 = vunpack.c.l.b16 %v2283
        %v2325 = vunpack.c.l.b16 %v2284
        %v2326 = vunpack.c.l.b16 %v2285
        %v2327 = vunpack.c.l.b16 %v2286
        %v2328 = vunpack.c.l.b16 %v2287
        %v2329 = vunpack.c.l.b16 %v2288
        %v2330 = vunpack.c.l.b16 %v2289
        %v2331 = vunpack.c.l.b16 %v2290
        %v2332 = vunpack.c.l.b16 %v2291
        %v2333 = vunpack.c.l.b16 %v2292
        %v2334 = vunpack.c.l.b16 %v2293
        %v2335 = vpack.c.b16 %v2320, %v2319
        %v2336 = vpack.c.b16 %v2322, %v2321
        %v2337 = vpack.c.b16 %v2324, %v2323
        %v2338 = vpack.c.b16 %v2326, %v2325
        %v2339 = vpack.c.b16 %v2328, %v2327
        %v2340 = vpack.c.b16 %v2330, %v2329
        %v2341 = vpack.c.b16 %v2332, %v2331
        %v2342 = vpack.c.b16 %v2334, %v2333
        %2351 = vmatprep.subr.bf16.mxu0 0
        %2352 = vmatpush1.bf16.msra.mxu0 %v2335
        %2353 = vmatprep.subr.bf16.mxu0 0
        %2354 = vmatpush1.bf16.msra.mxu0 %v2336
        %2355 = vmatprep.subr.bf16.mxu0 0
        %2356 = vmatpush1.bf16.msra.mxu0 %v2337
        %2357 = vmatprep.subr.bf16.mxu0 0
        %2358 = vmatpush1.bf16.msra.mxu0 %v2338
        %2359 = vmatprep.subr.bf16.mxu0 0
        %2360 = vmatpush1.bf16.msra.mxu0 %v2339
        %2361 = vmatprep.subr.bf16.mxu0 0
        %2362 = vmatpush1.bf16.msra.mxu0 %v2340
        %2363 = vmatprep.subr.bf16.mxu0 0
        %2364 = vmatpush1.bf16.msra.mxu0 %v2341
        %2365 = vmatprep.subr.bf16.mxu0 0
        %2366 = vmatpush1.bf16.msra.mxu0 %v2342
        %2367 = vmatprep.subr.bf16.mxu0 0
        %2368 = vmatpush1.bf16.msra.mxu0 0
        %2369 = vmatprep.subr.bf16.mxu0 0
        %2370 = vmatpush1.bf16.msra.mxu0 0
        %2371 = vmatprep.subr.bf16.mxu0 0
        %2372 = vmatpush1.bf16.msra.mxu0 0
        %2373 = vmatprep.subr.bf16.mxu0 0
        %2374 = vmatpush1.bf16.msra.mxu0 0
        %2375 = vmatprep.subr.bf16.mxu0 0
        %2376 = vmatpush1.bf16.msra.mxu0 0
        %2377 = vmatprep.subr.bf16.mxu0 0
        %2378 = vmatpush1.bf16.msra.mxu0 0
        %2379 = vmatprep.subr.bf16.mxu0 0
        %2380 = vmatpush1.bf16.msra.mxu0 0
        %2381 = vmatprep.subr.bf16.mxu0 0
        %2382 = vmatpush1.bf16.msra.mxu0 0
        %2383 = vmatprep.mubr.bf16.mxu0 0
        %2384 = vmatmul.mubr.bf16.gmra.mrb[0].mxu0 %v2294
        %v2385 = vpop.f32.mrb[0].mxu0
        %v2386 = vadd.f32 %v2301, %v2385
        %v2387 = vpop.f32.mrb[0].mxu0
        %v2388 = vpop.f32.mrb[0].mxu0
        %v2389 = vadd.f32 %v2301, %v2388
        %v2390 = vpop.f32.mrb[0].mxu0
        %2391 = vmatprep.mubr.bf16.mxu0 0
        %2392 = vmatmul.mubr.bf16.gmra.mrb[0].mxu0 %v2295
        %v2393 = vpop.f32.mrb[0].mxu0
        %v2394 = vadd.f32 %v2301, %v2393
        %v2395 = vpop.f32.mrb[0].mxu0
        %v2396 = vpop.f32.mrb[0].mxu0
        %v2397 = vadd.f32 %v2301, %v2396
        %v2398 = vpop.f32.mrb[0].mxu0
        %2399 = vdwg.mxu0
        %v2400 = vmul.f32 %v2386, 0.17677669
        %v2401 = vmul.f32 %v2389, 0.17677669
        %v2402 = vmul.f32 %v2394, 0.17677669
        %v2403 = vmul.f32 %v2397, 0.17677669
        %v2404 = vld [vmem:[#allocation14] sm:$0xff]
        %v2405 = vld [vmem:[#allocation14 + $0x8] sm:$0xff]
        %v2406 = vld [vmem:[#allocation14 + $0x10] sm:$0xff]
        %v2407 = vld [vmem:[#allocation14 + $0x18] sm:$0xff]
        %v2408 = vld [vmem:[#allocation14 + $0x20] sm:$0xff]
        %v2409 = vld [vmem:[#allocation14 + $0x28] sm:$0xff]
        %v2410 = vld [vmem:[#allocation14 + $0x30] sm:$0xff]
        %v2411 = vld [vmem:[#allocation14 + $0x38] sm:$0xff]
        %v2412 = vld [vmem:[#allocation14 + $0x40] sm:$0xff]
        %v2413 = vld [vmem:[#allocation14 + $0x48] sm:$0xff]
        %v2414 = vld [vmem:[#allocation14 + $0x50] sm:$0xff]
        %v2415 = vld [vmem:[#allocation14 + $0x58] sm:$0xff]
        %v2416 = vld [vmem:[#allocation14 + $0x60] sm:$0xff]
        %v2417 = vld [vmem:[#allocation14 + $0x68] sm:$0xff]
        %v2418 = vld [vmem:[#allocation14 + $0x70] sm:$0xff]
        %v2419 = vld [vmem:[#allocation14 + $0x78] sm:$0xff]
        %v2420 = vpack.c.bf16 %v883, %v882
        %v2421 = vld [vmem:[%s13] sm:$0x3]
        %v2423 = vlaneseq
        %v2424 = vshrl.u32 %v2423, 7
        %v2425 = vsub.s32 0, %v2424
        %v2426 = vrot.slane %v2421, %v2425
        %v2427 = vlaneseq
        %v2428 = vshrl.u32 %v2427, 7
        %v2429 = vsub.s32 1, %v2428
        %v2430 = vrot.slane %v2421, %v2429
        %v2449 = vunpack.c.l.b16 %v2404
        %v2450 = vunpack.c.h.b16 %v2404
        %v2451 = vunpack.c.l.b16 %v2405
        %v2452 = vunpack.c.h.b16 %v2405
        %v2453 = vunpack.c.l.b16 %v2406
        %v2454 = vunpack.c.h.b16 %v2406
        %v2455 = vunpack.c.l.b16 %v2407
        %v2456 = vunpack.c.h.b16 %v2407
        %v2457 = vunpack.c.l.b16 %v2408
        %v2458 = vunpack.c.h.b16 %v2408
        %v2459 = vunpack.c.l.b16 %v2409
        %v2460 = vunpack.c.h.b16 %v2409
        %v2461 = vunpack.c.l.b16 %v2410
        %v2462 = vunpack.c.h.b16 %v2410
        %v2463 = vunpack.c.l.b16 %v2411
        %v2464 = vunpack.c.h.b16 %v2411
        %v2465 = vunpack.c.l.b16 %v2412
        %v2466 = vunpack.c.h.b16 %v2412
        %v2467 = vunpack.c.l.b16 %v2413
        %v2468 = vunpack.c.h.b16 %v2413
        %v2469 = vunpack.c.l.b16 %v2414
        %v2470 = vunpack.c.h.b16 %v2414
        %v2471 = vunpack.c.l.b16 %v2415
        %v2472 = vunpack.c.h.b16 %v2415
        %v2473 = vunpack.c.l.b16 %v2416
        %v2474 = vunpack.c.h.b16 %v2416
        %v2475 = vunpack.c.l.b16 %v2417
        %v2476 = vunpack.c.h.b16 %v2417
        %v2477 = vunpack.c.l.b16 %v2418
        %v2478 = vunpack.c.h.b16 %v2418
        %v2479 = vunpack.c.l.b16 %v2419
        %v2480 = vunpack.c.h.b16 %v2419
        %v2481 = vpack.c.b16 %v2451, %v2449
        %v2482 = vpack.c.b16 %v2452, %v2450
        %v2483 = vpack.c.b16 %v2455, %v2453
        %v2484 = vpack.c.b16 %v2456, %v2454
        %v2485 = vpack.c.b16 %v2459, %v2457
        %v2486 = vpack.c.b16 %v2460, %v2458
        %v2487 = vpack.c.b16 %v2463, %v2461
        %v2488 = vpack.c.b16 %v2464, %v2462
        %v2489 = vpack.c.b16 %v2467, %v2465
        %v2490 = vpack.c.b16 %v2468, %v2466
        %v2491 = vpack.c.b16 %v2471, %v2469
        %v2492 = vpack.c.b16 %v2472, %v2470
        %v2493 = vpack.c.b16 %v2475, %v2473
        %v2494 = vpack.c.b16 %v2476, %v2474
        %v2495 = vpack.c.b16 %v2479, %v2477
        %v2496 = vpack.c.b16 %v2480, %v2478
        %2513 = vmatprep.subr.bf16.mxu0 %v2482
        %2514 = vmatpush1.bf16.msra.mxu0 %v2481
        %2515 = vmatprep.subr.bf16.mxu0 %v2484
        %2516 = vmatpush1.bf16.msra.mxu0 %v2483
        %2517 = vmatprep.subr.bf16.mxu0 %v2486
        %2518 = vmatpush1.bf16.msra.mxu0 %v2485
        %2519 = vmatprep.subr.bf16.mxu0 %v2488
        %2520 = vmatpush1.bf16.msra.mxu0 %v2487
        %2521 = vmatprep.subr.bf16.mxu0 %v2490
        %2522 = vmatpush1.bf16.msra.mxu0 %v2489
        %2523 = vmatprep.subr.bf16.mxu0 %v2492
        %2524 = vmatpush1.bf16.msra.mxu0 %v2491
        %2525 = vmatprep.subr.bf16.mxu0 %v2494
        %2526 = vmatpush1.bf16.msra.mxu0 %v2493
        %2527 = vmatprep.subr.bf16.mxu0 %v2496
        %2528 = vmatpush1.bf16.msra.mxu0 %v2495
        %2529 = vmatprep.subr.bf16.mxu0 0
        %2530 = vmatpush1.bf16.msra.mxu0 0
        %2531 = vmatprep.subr.bf16.mxu0 0
        %2532 = vmatpush1.bf16.msra.mxu0 0
        %2533 = vmatprep.subr.bf16.mxu0 0
        %2534 = vmatpush1.bf16.msra.mxu0 0
        %2535 = vmatprep.subr.bf16.mxu0 0
        %2536 = vmatpush1.bf16.msra.mxu0 0
        %2537 = vmatprep.subr.bf16.mxu0 0
        %2538 = vmatpush1.bf16.msra.mxu0 0
        %2539 = vmatprep.subr.bf16.mxu0 0
        %2540 = vmatpush1.bf16.msra.mxu0 0
        %2541 = vmatprep.subr.bf16.mxu0 0
        %2542 = vmatpush1.bf16.msra.mxu0 0
        %2543 = vmatprep.subr.bf16.mxu0 0
        %2544 = vmatpush1.bf16.msra.mxu0 0
        %2545 = vmatprep.mubr.bf16.mxu0 0
        %2546 = vmatmul.mubr.bf16.gmra.mrb[0].mxu0 %v2420
        %v2547 = vpop.f32.mrb[0].mxu0
        %v2548 = vadd.f32 %v2426, %v2547
        %v2549 = vpop.f32.mrb[0].mxu0
        %v2550 = vadd.f32 %v2430, %v2549
        %v2551 = vpop.f32.mrb[0].mxu0
        %v2552 = vadd.f32 %v2426, %v2551
        %v2553 = vpop.f32.mrb[0].mxu0
        %v2554 = vadd.f32 %v2430, %v2553
        %2555 = vdwg.mxu0
        %v2556 = vld [vmem:[#allocation15] sm:$0xf]
        %v2557 = vld [vmem:[#allocation15 + $0x4] sm:$0xf]
        %v2558 = vld [vmem:[#allocation15 + $0x8] sm:$0xf]
        %v2559 = vld [vmem:[#allocation15 + $0xc] sm:$0xf]
        %v2560 = vld [vmem:[#allocation15 + $0x10] sm:$0xf]
        %v2561 = vld [vmem:[#allocation15 + $0x14] sm:$0xf]
        %v2562 = vld [vmem:[#allocation15 + $0x18] sm:$0xf]
        %v2563 = vld [vmem:[#allocation15 + $0x1c] sm:$0xf]
        %v2564 = vld [vmem:[#allocation15 + $0x20] sm:$0xf]
        %v2565 = vld [vmem:[#allocation15 + $0x24] sm:$0xf]
        %v2566 = vld [vmem:[#allocation15 + $0x28] sm:$0xf]
        %v2567 = vld [vmem:[#allocation15 + $0x2c] sm:$0xf]
        %v2568 = vld [vmem:[#allocation15 + $0x30] sm:$0xf]
        %v2569 = vld [vmem:[#allocation15 + $0x34] sm:$0xf]
        %v2570 = vld [vmem:[#allocation15 + $0x38] sm:$0xf]
        %v2571 = vld [vmem:[#allocation15 + $0x3c] sm:$0xf]
        %v2572 = vld [vmem:[%s15] sm:$0x1]
        %v2573 = vpack.c.bf16 %v2401, %v2400
        %v2574 = vpack.c.bf16 %v2403, %v2402
        %v2575 = vpack.c.bf16 %v2552, %v2548
        %v2576 = vpack.c.bf16 %v2554, %v2550
        %v2578 = vsel %vm1335, %v2573, 0
        %v2581 = vsel %vm1335, %v2574, 0
        %v2584 = vsel %vm1335, %v2575, 0
        %2586 = vmatprep.subr.bf16.mxu0 0
        %2587 = vmatpush1.bf16.xpose.msra.mxu0 %v2584
        %2588 = vmatprep.subr.bf16.mxu0 0
        %2589 = vmatpush1.bf16.xpose.msra.mxu0 0
        %2590 = vmatprep.subr.bf16.mxu0 0
        %2591 = vmatpush1.bf16.xpose.msra.mxu0 0
        %2592 = vmatprep.subr.bf16.mxu0 0
        %2593 = vmatpush1.bf16.xpose.msra.mxu0 0
        %2594 = vmatprep.subr.bf16.mxu0 0
        %2595 = vmatpush1.bf16.xpose.msra.mxu0 0
        %2596 = vmatprep.subr.bf16.mxu0 0
        %2597 = vmatpush1.bf16.xpose.msra.mxu0 0
        %2598 = vmatprep.subr.bf16.mxu0 0
        %2599 = vmatpush1.bf16.xpose.msra.mxu0 0
        %2600 = vmatprep.subr.bf16.mxu0 0
        %2601 = vmatpush1.bf16.xpose.msra.mxu0 0
        %2602 = vmatprep.subr.bf16.mxu0 0
        %2603 = vmatpush1.bf16.xpose.msra.mxu0 0
        %2604 = vmatprep.subr.bf16.mxu0 0
        %2605 = vmatpush1.bf16.xpose.msra.mxu0 0
        %2606 = vmatprep.subr.bf16.mxu0 0
        %2607 = vmatpush1.bf16.xpose.msra.mxu0 0
        %2608 = vmatprep.subr.bf16.mxu0 0
        %2609 = vmatpush1.bf16.xpose.msra.mxu0 0
        %2610 = vmatprep.subr.bf16.mxu0 0
        %2611 = vmatpush1.bf16.xpose.msra.mxu0 0
        %2612 = vmatprep.subr.bf16.mxu0 0
        %2613 = vmatpush1.bf16.xpose.msra.mxu0 0
        %2614 = vmatprep.subr.bf16.mxu0 0
        %2615 = vmatpush1.bf16.xpose.msra.mxu0 0
        %2616 = vmatprep.subr.bf16.mxu0 0
        %2617 = vmatpush1.bf16.xpose.msra.mxu0 0
        %2618 = vmatprep.mubr.bf16.mxu0 0
        %2619 = vmatmul.mubr.bf16.gmra.mrb[0].mxu0 %v2578
        %v2620 = vpop.f32.mrb[0].mxu0
        %v2621 = vadd.f32 0.0, %v2620
        %v2622 = vpop.f32.mrb[0].mxu0
        %v2623 = vpop.f32.mrb[0].mxu0
        %v2624 = vadd.f32 0.0, %v2623
        %v2625 = vpop.f32.mrb[0].mxu0
        %2626 = vmatprep.mubr.bf16.mxu0 0
        %2627 = vmatmul.mubr.bf16.gmra.mrb[0].mxu0 %v2581
        %v2628 = vpop.f32.mrb[0].mxu0
        %v2629 = vadd.f32 0.0, %v2628
        %v2630 = vpop.f32.mrb[0].mxu0
        %v2631 = vpop.f32.mrb[0].mxu0
        %v2632 = vadd.f32 0.0, %v2631
        %v2633 = vpop.f32.mrb[0].mxu0
        %2634 = vdwg.mxu0
        %vm2635 = vcmask 130048
        %v2636 = vsel %vm2635, %v2621, -inf
        %2637 = vmax.xlane.f32.xlu0 %v2636
        %v2638 = vpop.xlane.xlu0 %2637
        %v2639 = vsel %vm2635, %v2624, -inf
        %2640 = vmax.xlane.f32.xlu0 %v2639
        %v2641 = vpop.xlane.xlu0 %2640
        %v2642 = vsel %vm2635, %v2629, -inf
        %2643 = vmax.xlane.f32.xlu0 %v2642
        %v2644 = vpop.xlane.xlu0 %2643
        %v2645 = vsel %vm2635, %v2632, -inf
        %2646 = vmax.xlane.f32.xlu0 %v2645
        %v2647 = vpop.xlane.xlu0 %2646
        %v2648 = vsub.f32 %v2621, %v2638
        %v2649 = vsub.f32 %v2624, %v2641
        %v2650 = vsub.f32 %v2629, %v2644
        %v2651 = vsub.f32 %v2632, %v2647
        %v2652 = vmul.f32 %v2648, 1.442695
        %v2653 = vpow.pop %v2652
        %v2654 = vmul.f32 %v2649, 1.442695
        %v2655 = vpow.pop %v2654
        %v2656 = vmul.f32 %v2650, 1.442695
        %v2657 = vpow.pop %v2656
        %v2658 = vmul.f32 %v2651, 1.442695
        %v2659 = vpow.pop %v2658
        %v2660 = vsel %vm2635, %v2653, 0.0
        %2661 = vadd.xlane.f32.xlu0 %v2660
        %v2662 = vpop.xlane.xlu0 %2661
        %v2663 = vsel %vm2635, %v2655, 0.0
        %2664 = vadd.xlane.f32.xlu0 %v2663
        %v2665 = vpop.xlane.xlu0 %2664
        %v2666 = vsel %vm2635, %v2657, 0.0
        %2667 = vadd.xlane.f32.xlu0 %v2666
        %v2668 = vpop.xlane.xlu0 %2667
        %v2669 = vsel %vm2635, %v2659, 0.0
        %2670 = vadd.xlane.f32.xlu0 %v2669
        %v2671 = vpop.xlane.xlu0 %2670
        %v2672 = vrcp.pop %v2662
        %v2673 = vrcp.pop %v2665
        %v2674 = vrcp.pop %v2668
        %v2675 = vrcp.pop %v2671
        %v2676 = vmul.f32 %v2653, %v2672
        %v2677 = vmul.f32 %v2655, %v2673
        %v2678 = vmul.f32 %v2657, %v2674
        %v2679 = vmul.f32 %v2659, %v2675
        %v2680 = vpack.c.bf16 %v2677, %v2676
        %v2681 = vpack.c.bf16 %v2679, %v2678
        %v2683 = vsel %vm2635, %v2680, 0
        %v2686 = vsel %vm2635, %v2681, 0
        %2688 = vmatprep.subr.bf16.mxu0 0
        %2689 = vmatpush1.bf16.msra.mxu0 %v2576
        %2690 = vmatprep.subr.bf16.mxu0 0
        %2691 = vmatpush1.bf16.msra.mxu0 0
        %2692 = vmatprep.subr.bf16.mxu0 0
        %2693 = vmatpush1.bf16.msra.mxu0 0
        %2694 = vmatprep.subr.bf16.mxu0 0
        %2695 = vmatpush1.bf16.msra.mxu0 0
        %2696 = vmatprep.subr.bf16.mxu0 0
        %2697 = vmatpush1.bf16.msra.mxu0 0
        %2698 = vmatprep.subr.bf16.mxu0 0
        %2699 = vmatpush1.bf16.msra.mxu0 0
        %2700 = vmatprep.subr.bf16.mxu0 0
        %2701 = vmatpush1.bf16.msra.mxu0 0
        %2702 = vmatprep.subr.bf16.mxu0 0
        %2703 = vmatpush1.bf16.msra.mxu0 0
        %2704 = vmatprep.subr.bf16.mxu0 0
        %2705 = vmatpush1.bf16.msra.mxu0 0
        %2706 = vmatprep.subr.bf16.mxu0 0
        %2707 = vmatpush1.bf16.msra.mxu0 0
        %2708 = vmatprep.subr.bf16.mxu0 0
        %2709 = vmatpush1.bf16.msra.mxu0 0
        %2710 = vmatprep.subr.bf16.mxu0 0
        %2711 = vmatpush1.bf16.msra.mxu0 0
        %2712 = vmatprep.subr.bf16.mxu0 0
        %2713 = vmatpush1.bf16.msra.mxu0 0
        %2714 = vmatprep.subr.bf16.mxu0 0
        %2715 = vmatpush1.bf16.msra.mxu0 0
        %2716 = vmatprep.subr.bf16.mxu0 0
        %2717 = vmatpush1.bf16.msra.mxu0 0
        %2718 = vmatprep.subr.bf16.mxu0 0
        %2719 = vmatpush1.bf16.msra.mxu0 0
        %2720 = vmatprep.mubr.bf16.mxu0 0
        %2721 = vmatmul.mubr.bf16.gmra.mrb[0].mxu0 %v2683
        %v2722 = vpop.f32.mrb[0].mxu0
        %v2723 = vadd.f32 0.0, %v2722
        %v2724 = vpop.f32.mrb[0].mxu0
        %v2725 = vpop.f32.mrb[0].mxu0
        %v2726 = vadd.f32 0.0, %v2725
        %v2727 = vpop.f32.mrb[0].mxu0
        %2728 = vmatprep.mubr.bf16.mxu0 0
        %2729 = vmatmul.mubr.bf16.gmra.mrb[0].mxu0 %v2686
        %v2730 = vpop.f32.mrb[0].mxu0
        %v2731 = vadd.f32 0.0, %v2730
        %v2732 = vpop.f32.mrb[0].mxu0
        %v2733 = vpop.f32.mrb[0].mxu0
        %v2734 = vadd.f32 0.0, %v2733
        %v2735 = vpop.f32.mrb[0].mxu0
        %2736 = vdwg.mxu0
        %2737 = vst.msk [vmem:[#allocation2] sm:$0xff] %vm1335, %v2723
        %2738 = vst.msk [vmem:[#allocation2 + $0x8] sm:$0xff] %vm1335, %v2726
        %2739 = vst.msk [vmem:[#allocation2 + $0x10] sm:$0xff] %vm1335, %v2731
        %2740 = vst.msk [vmem:[#allocation2 + $0x18] sm:$0xff] %vm1335, %v2734
        %2743 = vrot.lane.b32.xlu0 %v2573, 96
        %v2744 = vpop.permute.xlu0 %2743
        %2745 = vrot.lane.b32.xlu0 %v2574, 96
        %v2746 = vpop.permute.xlu0 %2745
        %2748 = vrot.lane.b32.xlu0 %v2575, 96
        %v2749 = vpop.permute.xlu0 %2748
        %v2751 = vsel %vm1335, %v2744, 0
        %v2754 = vsel %vm1335, %v2746, 0
        %v2757 = vsel %vm1335, %v2749, 0
        %2759 = vmatprep.subr.bf16.mxu0 0
        %2760 = vmatpush1.bf16.xpose.msra.mxu0 %v2757
        %2761 = vmatprep.subr.bf16.mxu0 0
        %2762 = vmatpush1.bf16.xpose.msra.mxu0 0
        %2763 = vmatprep.subr.bf16.mxu0 0
        %2764 = vmatpush1.bf16.xpose.msra.mxu0 0
        %2765 = vmatprep.subr.bf16.mxu0 0
        %2766 = vmatpush1.bf16.xpose.msra.mxu0 0
        %2767 = vmatprep.subr.bf16.mxu0 0
        %2768 = vmatpush1.bf16.xpose.msra.mxu0 0
        %2769 = vmatprep.subr.bf16.mxu0 0
        %2770 = vmatpush1.bf16.xpose.msra.mxu0 0
        %2771 = vmatprep.subr.bf16.mxu0 0
        %2772 = vmatpush1.bf16.xpose.msra.mxu0 0
        %2773 = vmatprep.subr.bf16.mxu0 0
        %2774 = vmatpush1.bf16.xpose.msra.mxu0 0
        %2775 = vmatprep.subr.bf16.mxu0 0
        %2776 = vmatpush1.bf16.xpose.msra.mxu0 0
        %2777 = vmatprep.subr.bf16.mxu0 0
        %2778 = vmatpush1.bf16.xpose.msra.mxu0 0
        %2779 = vmatprep.subr.bf16.mxu0 0
        %2780 = vmatpush1.bf16.xpose.msra.mxu0 0
        %2781 = vmatprep.subr.bf16.mxu0 0
        %2782 = vmatpush1.bf16.xpose.msra.mxu0 0
        %2783 = vmatprep.subr.bf16.mxu0 0
        %2784 = vmatpush1.bf16.xpose.msra.mxu0 0
        %2785 = vmatprep.subr.bf16.mxu0 0
        %2786 = vmatpush1.bf16.xpose.msra.mxu0 0
        %2787 = vmatprep.subr.bf16.mxu0 0
        %2788 = vmatpush1.bf16.xpose.msra.mxu0 0
        %2789 = vmatprep.subr.bf16.mxu0 0
        %2790 = vmatpush1.bf16.xpose.msra.mxu0 0
        %2791 = vmatprep.mubr.bf16.mxu0 0
        %2792 = vmatmul.mubr.bf16.gmra.mrb[0].mxu0 %v2751
        %v2793 = vpop.f32.mrb[0].mxu0
        %v2794 = vadd.f32 0.0, %v2793
        %v2795 = vpop.f32.mrb[0].mxu0
        %v2796 = vpop.f32.mrb[0].mxu0
        %v2797 = vadd.f32 0.0, %v2796
        %v2798 = vpop.f32.mrb[0].mxu0
        %2799 = vmatprep.mubr.bf16.mxu0 0
        %2800 = vmatmul.mubr.bf16.gmra.mrb[0].mxu0 %v2754
        %v2801 = vpop.f32.mrb[0].mxu0
        %v2802 = vadd.f32 0.0, %v2801
        %v2803 = vpop.f32.mrb[0].mxu0
        %v2804 = vpop.f32.mrb[0].mxu0
        %v2805 = vadd.f32 0.0, %v2804
        %v2806 = vpop.f32.mrb[0].mxu0
        %2807 = vdwg.mxu0
        %v2808 = vsel %vm2635, %v2794, -inf
        %2809 = vmax.xlane.f32.xlu0 %v2808
        %v2810 = vpop.xlane.xlu0 %2809
        %v2811 = vsel %vm2635, %v2797, -inf
        %2812 = vmax.xlane.f32.xlu0 %v2811
        %v2813 = vpop.xlane.xlu0 %2812
        %v2814 = vsel %vm2635, %v2802, -inf
        %2815 = vmax.xlane.f32.xlu0 %v2814
        %v2816 = vpop.xlane.xlu0 %2815
        %v2817 = vsel %vm2635, %v2805, -inf
        %2818 = vmax.xlane.f32.xlu0 %v2817
        %v2819 = vpop.xlane.xlu0 %2818
        %v2820 = vsub.f32 %v2794, %v2810
        %v2821 = vsub.f32 %v2797, %v2813
        %v2822 = vsub.f32 %v2802, %v2816
        %v2823 = vsub.f32 %v2805, %v2819
        %v2824 = vmul.f32 %v2820, 1.442695
        %v2825 = vpow.pop %v2824
        %v2826 = vmul.f32 %v2821, 1.442695
        %v2827 = vpow.pop %v2826
        %v2828 = vmul.f32 %v2822, 1.442695
        %v2829 = vpow.pop %v2828
        %v2830 = vmul.f32 %v2823, 1.442695
        %v2831 = vpow.pop %v2830
        %v2832 = vsel %vm2635, %v2825, 0.0
        %2833 = vadd.xlane.f32.xlu0 %v2832
        %v2834 = vpop.xlane.xlu0 %2833
        %v2835 = vsel %vm2635, %v2827, 0.0
        %2836 = vadd.xlane.f32.xlu0 %v2835
        %v2837 = vpop.xlane.xlu0 %2836
        %v2838 = vsel %vm2635, %v2829, 0.0
        %2839 = vadd.xlane.f32.xlu0 %v2838
        %v2840 = vpop.xlane.xlu0 %2839
        %v2841 = vsel %vm2635, %v2831, 0.0
        %2842 = vadd.xlane.f32.xlu0 %v2841
        %v2843 = vpop.xlane.xlu0 %2842
        %v2844 = vrcp.pop %v2834
        %v2845 = vrcp.pop %v2837
        %v2846 = vrcp.pop %v2840
        %v2847 = vrcp.pop %v2843
        %v2848 = vmul.f32 %v2825, %v2844
        %v2849 = vmul.f32 %v2827, %v2845
        %v2850 = vmul.f32 %v2829, %v2846
        %v2851 = vmul.f32 %v2831, %v2847
        %v2852 = vpack.c.bf16 %v2849, %v2848
        %v2853 = vpack.c.bf16 %v2851, %v2850
        %2855 = vrot.lane.b32.xlu0 %v2576, 96
        %v2856 = vpop.permute.xlu0 %2855
        %v2859 = vsel %vm2635, %v2852, 0
        %v2862 = vsel %vm2635, %v2853, 0
        %2864 = vmatprep.subr.bf16.mxu0 0
        %2865 = vmatpush1.bf16.msra.mxu0 %v2856
        %2866 = vmatprep.subr.bf16.mxu0 0
        %2867 = vmatpush1.bf16.msra.mxu0 0
        %2868 = vmatprep.subr.bf16.mxu0 0
        %2869 = vmatpush1.bf16.msra.mxu0 0
        %2870 = vmatprep.subr.bf16.mxu0 0
        %2871 = vmatpush1.bf16.msra.mxu0 0
        %2872 = vmatprep.subr.bf16.mxu0 0
        %2873 = vmatpush1.bf16.msra.mxu0 0
        %2874 = vmatprep.subr.bf16.mxu0 0
        %2875 = vmatpush1.bf16.msra.mxu0 0
        %2876 = vmatprep.subr.bf16.mxu0 0
        %2877 = vmatpush1.bf16.msra.mxu0 0
        %2878 = vmatprep.subr.bf16.mxu0 0
        %2879 = vmatpush1.bf16.msra.mxu0 0
        %2880 = vmatprep.subr.bf16.mxu0 0
        %2881 = vmatpush1.bf16.msra.mxu0 0
        %2882 = vmatprep.subr.bf16.mxu0 0
        %2883 = vmatpush1.bf16.msra.mxu0 0
        %2884 = vmatprep.subr.bf16.mxu0 0
        %2885 = vmatpush1.bf16.msra.mxu0 0
        %2886 = vmatprep.subr.bf16.mxu0 0
        %2887 = vmatpush1.bf16.msra.mxu0 0
        %2888 = vmatprep.subr.bf16.mxu0 0
        %2889 = vmatpush1.bf16.msra.mxu0 0
        %2890 = vmatprep.subr.bf16.mxu0 0
        %2891 = vmatpush1.bf16.msra.mxu0 0
        %2892 = vmatprep.subr.bf16.mxu0 0
        %2893 = vmatpush1.bf16.msra.mxu0 0
        %2894 = vmatprep.subr.bf16.mxu0 0
        %2895 = vmatpush1.bf16.msra.mxu0 0
        %2896 = vmatprep.mubr.bf16.mxu0 0
        %2897 = vmatmul.mubr.bf16.gmra.mrb[0].mxu0 %v2859
        %v2898 = vpop.f32.mrb[0].mxu0
        %v2899 = vadd.f32 0.0, %v2898
        %v2900 = vpop.f32.mrb[0].mxu0
        %v2901 = vpop.f32.mrb[0].mxu0
        %v2902 = vadd.f32 0.0, %v2901
        %v2903 = vpop.f32.mrb[0].mxu0
        %2904 = vmatprep.mubr.bf16.mxu0 0
        %2905 = vmatmul.mubr.bf16.gmra.mrb[0].mxu0 %v2862
        %v2906 = vpop.f32.mrb[0].mxu0
        %v2907 = vadd.f32 0.0, %v2906
        %v2908 = vpop.f32.mrb[0].mxu0
        %v2909 = vpop.f32.mrb[0].mxu0
        %v2910 = vadd.f32 0.0, %v2909
        %v2911 = vpop.f32.mrb[0].mxu0
        %2912 = vdwg.mxu0
        %2917 = vrot.lane.b32.xlu0 %v2899, 32
        %v2918 = vpop.permute.xlu0 %2917
        %2919 = vrot.lane.b32.xlu0 %v2902, 32
        %v2920 = vpop.permute.xlu0 %2919
        %2921 = vrot.lane.b32.xlu0 %v2907, 32
        %v2922 = vpop.permute.xlu0 %2921
        %2923 = vrot.lane.b32.xlu0 %v2910, 32
        %v2924 = vpop.permute.xlu0 %2923
        %2929 = vst.msk [vmem:[#allocation2] sm:$0xff] %vm1700, %v2918
        %2930 = vst.msk [vmem:[#allocation2 + $0x8] sm:$0xff] %vm1700, %v2920
        %2931 = vst.msk [vmem:[#allocation2 + $0x10] sm:$0xff] %vm1700, %v2922
        %2932 = vst.msk [vmem:[#allocation2 + $0x18] sm:$0xff] %vm1700, %v2924
        %2933 = vrot.lane.b32.xlu0 %v2573, 64
        %v2934 = vpop.permute.xlu0 %2933
        %2935 = vrot.lane.b32.xlu0 %v2574, 64
        %v2936 = vpop.permute.xlu0 %2935
        %2937 = vrot.lane.b32.xlu0 %v2575, 64
        %v2938 = vpop.permute.xlu0 %2937
        %v2940 = vsel %vm1335, %v2934, 0
        %v2943 = vsel %vm1335, %v2936, 0
        %v2946 = vsel %vm1335, %v2938, 0
        %2948 = vmatprep.subr.bf16.mxu0 0
        %2949 = vmatpush1.bf16.xpose.msra.mxu0 %v2946
        %2950 = vmatprep.subr.bf16.mxu0 0
        %2951 = vmatpush1.bf16.xpose.msra.mxu0 0
        %2952 = vmatprep.subr.bf16.mxu0 0
        %2953 = vmatpush1.bf16.xpose.msra.mxu0 0
        %2954 = vmatprep.subr.bf16.mxu0 0
        %2955 = vmatpush1.bf16.xpose.msra.mxu0 0
        %2956 = vmatprep.subr.bf16.mxu0 0
        %2957 = vmatpush1.bf16.xpose.msra.mxu0 0
        %2958 = vmatprep.subr.bf16.mxu0 0
        %2959 = vmatpush1.bf16.xpose.msra.mxu0 0
        %2960 = vmatprep.subr.bf16.mxu0 0
        %2961 = vmatpush1.bf16.xpose.msra.mxu0 0
        %2962 = vmatprep.subr.bf16.mxu0 0
        %2963 = vmatpush1.bf16.xpose.msra.mxu0 0
        %2964 = vmatprep.subr.bf16.mxu0 0
        %2965 = vmatpush1.bf16.xpose.msra.mxu0 0
        %2966 = vmatprep.subr.bf16.mxu0 0
        %2967 = vmatpush1.bf16.xpose.msra.mxu0 0
        %2968 = vmatprep.subr.bf16.mxu0 0
        %2969 = vmatpush1.bf16.xpose.msra.mxu0 0
        %2970 = vmatprep.subr.bf16.mxu0 0
        %2971 = vmatpush1.bf16.xpose.msra.mxu0 0
        %2972 = vmatprep.subr.bf16.mxu0 0
        %2973 = vmatpush1.bf16.xpose.msra.mxu0 0
        %2974 = vmatprep.subr.bf16.mxu0 0
        %2975 = vmatpush1.bf16.xpose.msra.mxu0 0
        %2976 = vmatprep.subr.bf16.mxu0 0
        %2977 = vmatpush1.bf16.xpose.msra.mxu0 0
        %2978 = vmatprep.subr.bf16.mxu0 0
        %2979 = vmatpush1.bf16.xpose.msra.mxu0 0
        %2980 = vmatprep.mubr.bf16.mxu0 0
        %2981 = vmatmul.mubr.bf16.gmra.mrb[0].mxu0 %v2940
        %v2982 = vpop.f32.mrb[0].mxu0
        %v2983 = vadd.f32 0.0, %v2982
        %v2984 = vpop.f32.mrb[0].mxu0
        %v2985 = vpop.f32.mrb[0].mxu0
        %v2986 = vadd.f32 0.0, %v2985
        %v2987 = vpop.f32.mrb[0].mxu0
        %2988 = vmatprep.mubr.bf16.mxu0 0
        %2989 = vmatmul.mubr.bf16.gmra.mrb[0].mxu0 %v2943
        %v2990 = vpop.f32.mrb[0].mxu0
        %v2991 = vadd.f32 0.0, %v2990
        %v2992 = vpop.f32.mrb[0].mxu0
        %v2993 = vpop.f32.mrb[0].mxu0
        %v2994 = vadd.f32 0.0, %v2993
        %v2995 = vpop.f32.mrb[0].mxu0
        %2996 = vdwg.mxu0
        %v2997 = vsel %vm2635, %v2983, -inf
        %2998 = vmax.xlane.f32.xlu0 %v2997
        %v2999 = vpop.xlane.xlu0 %2998
        %v3000 = vsel %vm2635, %v2986, -inf
        %3001 = vmax.xlane.f32.xlu0 %v3000
        %v3002 = vpop.xlane.xlu0 %3001
        %v3003 = vsel %vm2635, %v2991, -inf
        %3004 = vmax.xlane.f32.xlu0 %v3003
        %v3005 = vpop.xlane.xlu0 %3004
        %v3006 = vsel %vm2635, %v2994, -inf
        %3007 = vmax.xlane.f32.xlu0 %v3006
        %v3008 = vpop.xlane.xlu0 %3007
        %v3009 = vsub.f32 %v2983, %v2999
        %v3010 = vsub.f32 %v2986, %v3002
        %v3011 = vsub.f32 %v2991, %v3005
        %v3012 = vsub.f32 %v2994, %v3008
        %v3013 = vmul.f32 %v3009, 1.442695
        %v3014 = vpow.pop %v3013
        %v3015 = vmul.f32 %v3010, 1.442695
        %v3016 = vpow.pop %v3015
        %v3017 = vmul.f32 %v3011, 1.442695
        %v3018 = vpow.pop %v3017
        %v3019 = vmul.f32 %v3012, 1.442695
        %v3020 = vpow.pop %v3019
        %v3021 = vsel %vm2635, %v3014, 0.0
        %3022 = vadd.xlane.f32.xlu0 %v3021
        %v3023 = vpop.xlane.xlu0 %3022
        %v3024 = vsel %vm2635, %v3016, 0.0
        %3025 = vadd.xlane.f32.xlu0 %v3024
        %v3026 = vpop.xlane.xlu0 %3025
        %v3027 = vsel %vm2635, %v3018, 0.0
        %3028 = vadd.xlane.f32.xlu0 %v3027
        %v3029 = vpop.xlane.xlu0 %3028
        %v3030 = vsel %vm2635, %v3020, 0.0
        %3031 = vadd.xlane.f32.xlu0 %v3030
        %v3032 = vpop.xlane.xlu0 %3031
        %v3033 = vrcp.pop %v3023
        %v3034 = vrcp.pop %v3026
        %v3035 = vrcp.pop %v3029
        %v3036 = vrcp.pop %v3032
        %v3037 = vmul.f32 %v3014, %v3033
        %v3038 = vmul.f32 %v3016, %v3034
        %v3039 = vmul.f32 %v3018, %v3035
        %v3040 = vmul.f32 %v3020, %v3036
        %v3041 = vpack.c.bf16 %v3038, %v3037
        %v3042 = vpack.c.bf16 %v3040, %v3039
        %3043 = vrot.lane.b32.xlu0 %v2576, 64
        %v3044 = vpop.permute.xlu0 %3043
        %v3047 = vsel %vm2635, %v3041, 0
        %v3050 = vsel %vm2635, %v3042, 0
        %3052 = vmatprep.subr.bf16.mxu0 0
        %3053 = vmatpush1.bf16.msra.mxu0 %v3044
        %3054 = vmatprep.subr.bf16.mxu0 0
        %3055 = vmatpush1.bf16.msra.mxu0 0
        %3056 = vmatprep.subr.bf16.mxu0 0
        %3057 = vmatpush1.bf16.msra.mxu0 0
        %3058 = vmatprep.subr.bf16.mxu0 0
        %3059 = vmatpush1.bf16.msra.mxu0 0
        %3060 = vmatprep.subr.bf16.mxu0 0
        %3061 = vmatpush1.bf16.msra.mxu0 0
        %3062 = vmatprep.subr.bf16.mxu0 0
        %3063 = vmatpush1.bf16.msra.mxu0 0
        %3064 = vmatprep.subr.bf16.mxu0 0
        %3065 = vmatpush1.bf16.msra.mxu0 0
        %3066 = vmatprep.subr.bf16.mxu0 0
        %3067 = vmatpush1.bf16.msra.mxu0 0
        %3068 = vmatprep.subr.bf16.mxu0 0
        %3069 = vmatpush1.bf16.msra.mxu0 0
        %3070 = vmatprep.subr.bf16.mxu0 0
        %3071 = vmatpush1.bf16.msra.mxu0 0
        %3072 = vmatprep.subr.bf16.mxu0 0
        %3073 = vmatpush1.bf16.msra.mxu0 0
        %3074 = vmatprep.subr.bf16.mxu0 0
        %3075 = vmatpush1.bf16.msra.mxu0 0
        %3076 = vmatprep.subr.bf16.mxu0 0
        %3077 = vmatpush1.bf16.msra.mxu0 0
        %3078 = vmatprep.subr.bf16.mxu0 0
        %3079 = vmatpush1.bf16.msra.mxu0 0
        %3080 = vmatprep.subr.bf16.mxu0 0
        %3081 = vmatpush1.bf16.msra.mxu0 0
        %3082 = vmatprep.subr.bf16.mxu0 0
        %3083 = vmatpush1.bf16.msra.mxu0 0
        %3084 = vmatprep.mubr.bf16.mxu0 0
        %3085 = vmatmul.mubr.bf16.gmra.mrb[0].mxu0 %v3047
        %v3086 = vpop.f32.mrb[0].mxu0
        %v3087 = vadd.f32 0.0, %v3086
        %v3088 = vpop.f32.mrb[0].mxu0
        %v3089 = vpop.f32.mrb[0].mxu0
        %v3090 = vadd.f32 0.0, %v3089
        %v3091 = vpop.f32.mrb[0].mxu0
        %3092 = vmatprep.mubr.bf16.mxu0 0
        %3093 = vmatmul.mubr.bf16.gmra.mrb[0].mxu0 %v3050
        %v3094 = vpop.f32.mrb[0].mxu0
        %v3095 = vadd.f32 0.0, %v3094
        %v3096 = vpop.f32.mrb[0].mxu0
        %v3097 = vpop.f32.mrb[0].mxu0
        %v3098 = vadd.f32 0.0, %v3097
        %v3099 = vpop.f32.mrb[0].mxu0
        %3100 = vdwg.mxu0
        %3105 = vrot.lane.b32.xlu0 %v3087, 64
        %v3106 = vpop.permute.xlu0 %3105
        %3107 = vrot.lane.b32.xlu0 %v3090, 64
        %v3108 = vpop.permute.xlu0 %3107
        %3109 = vrot.lane.b32.xlu0 %v3095, 64
        %v3110 = vpop.permute.xlu0 %3109
        %3111 = vrot.lane.b32.xlu0 %v3098, 64
        %v3112 = vpop.permute.xlu0 %3111
        %3117 = vst.msk [vmem:[#allocation2] sm:$0xff] %vm1897, %v3106
        %3118 = vst.msk [vmem:[#allocation2 + $0x8] sm:$0xff] %vm1897, %v3108
        %3119 = vst.msk [vmem:[#allocation2 + $0x10] sm:$0xff] %vm1897, %v3110
        %3120 = vst.msk [vmem:[#allocation2 + $0x18] sm:$0xff] %vm1897, %v3112
        %3121 = vrot.lane.b32.xlu0 %v2573, 32
        %v3122 = vpop.permute.xlu0 %3121
        %3123 = vrot.lane.b32.xlu0 %v2574, 32
        %v3124 = vpop.permute.xlu0 %3123
        %3125 = vrot.lane.b32.xlu0 %v2575, 32
        %v3126 = vpop.permute.xlu0 %3125
        %v3128 = vsel %vm1335, %v3122, 0
        %v3131 = vsel %vm1335, %v3124, 0
        %v3134 = vsel %vm1335, %v3126, 0
        %3136 = vmatprep.subr.bf16.mxu0 0
        %3137 = vmatpush1.bf16.xpose.msra.mxu0 %v3134
        %3138 = vmatprep.subr.bf16.mxu0 0
        %3139 = vmatpush1.bf16.xpose.msra.mxu0 0
        %3140 = vmatprep.subr.bf16.mxu0 0
        %3141 = vmatpush1.bf16.xpose.msra.mxu0 0
        %3142 = vmatprep.subr.bf16.mxu0 0
        %3143 = vmatpush1.bf16.xpose.msra.mxu0 0
        %3144 = vmatprep.subr.bf16.mxu0 0
        %3145 = vmatpush1.bf16.xpose.msra.mxu0 0
        %3146 = vmatprep.subr.bf16.mxu0 0
        %3147 = vmatpush1.bf16.xpose.msra.mxu0 0
        %3148 = vmatprep.subr.bf16.mxu0 0
        %3149 = vmatpush1.bf16.xpose.msra.mxu0 0
        %3150 = vmatprep.subr.bf16.mxu0 0
        %3151 = vmatpush1.bf16.xpose.msra.mxu0 0
        %3152 = vmatprep.subr.bf16.mxu0 0
        %3153 = vmatpush1.bf16.xpose.msra.mxu0 0
        %3154 = vmatprep.subr.bf16.mxu0 0
        %3155 = vmatpush1.bf16.xpose.msra.mxu0 0
        %3156 = vmatprep.subr.bf16.mxu0 0
        %3157 = vmatpush1.bf16.xpose.msra.mxu0 0
        %3158 = vmatprep.subr.bf16.mxu0 0
        %3159 = vmatpush1.bf16.xpose.msra.mxu0 0
        %3160 = vmatprep.subr.bf16.mxu0 0
        %3161 = vmatpush1.bf16.xpose.msra.mxu0 0
        %3162 = vmatprep.subr.bf16.mxu0 0
        %3163 = vmatpush1.bf16.xpose.msra.mxu0 0
        %3164 = vmatprep.subr.bf16.mxu0 0
        %3165 = vmatpush1.bf16.xpose.msra.mxu0 0
        %3166 = vmatprep.subr.bf16.mxu0 0
        %3167 = vmatpush1.bf16.xpose.msra.mxu0 0
        %3168 = vmatprep.mubr.bf16.mxu0 0
        %3169 = vmatmul.mubr.bf16.gmra.mrb[0].mxu0 %v3128
        %v3170 = vpop.f32.mrb[0].mxu0
        %v3171 = vadd.f32 0.0, %v3170
        %v3172 = vpop.f32.mrb[0].mxu0
        %v3173 = vpop.f32.mrb[0].mxu0
        %v3174 = vadd.f32 0.0, %v3173
        %v3175 = vpop.f32.mrb[0].mxu0
        %3176 = vmatprep.mubr.bf16.mxu0 0
        %3177 = vmatmul.mubr.bf16.gmra.mrb[0].mxu0 %v3131
        %v3178 = vpop.f32.mrb[0].mxu0
        %v3179 = vadd.f32 0.0, %v3178
        %v3180 = vpop.f32.mrb[0].mxu0
        %v3181 = vpop.f32.mrb[0].mxu0
        %v3182 = vadd.f32 0.0, %v3181
        %v3183 = vpop.f32.mrb[0].mxu0
        %3184 = vdwg.mxu0
        %v3185 = vsel %vm2635, %v3171, -inf
        %3186 = vmax.xlane.f32.xlu0 %v3185
        %v3187 = vpop.xlane.xlu0 %3186
        %v3188 = vsel %vm2635, %v3174, -inf
        %3189 = vmax.xlane.f32.xlu0 %v3188
        %v3190 = vpop.xlane.xlu0 %3189
        %v3191 = vsel %vm2635, %v3179, -inf
        %3192 = vmax.xlane.f32.xlu0 %v3191
        %v3193 = vpop.xlane.xlu0 %3192
        %v3194 = vsel %vm2635, %v3182, -inf
        %3195 = vmax.xlane.f32.xlu0 %v3194
        %v3196 = vpop.xlane.xlu0 %3195
        %v3197 = vsub.f32 %v3171, %v3187
        %v3198 = vsub.f32 %v3174, %v3190
        %v3199 = vsub.f32 %v3179, %v3193
        %v3200 = vsub.f32 %v3182, %v3196
        %v3201 = vmul.f32 %v3197, 1.442695
        %v3202 = vpow.pop %v3201
        %v3203 = vmul.f32 %v3198, 1.442695
        %v3204 = vpow.pop %v3203
        %v3205 = vmul.f32 %v3199, 1.442695
        %v3206 = vpow.pop %v3205
        %v3207 = vmul.f32 %v3200, 1.442695
        %v3208 = vpow.pop %v3207
        %v3209 = vsel %vm2635, %v3202, 0.0
        %3210 = vadd.xlane.f32.xlu0 %v3209
        %v3211 = vpop.xlane.xlu0 %3210
        %v3212 = vsel %vm2635, %v3204, 0.0
        %3213 = vadd.xlane.f32.xlu0 %v3212
        %v3214 = vpop.xlane.xlu0 %3213
        %v3215 = vsel %vm2635, %v3206, 0.0
        %3216 = vadd.xlane.f32.xlu0 %v3215
        %v3217 = vpop.xlane.xlu0 %3216
        %v3218 = vsel %vm2635, %v3208, 0.0
        %3219 = vadd.xlane.f32.xlu0 %v3218
        %v3220 = vpop.xlane.xlu0 %3219
        %v3221 = vrcp.pop %v3211
        %v3222 = vrcp.pop %v3214
        %v3223 = vrcp.pop %v3217
        %v3224 = vrcp.pop %v3220
        %v3225 = vmul.f32 %v3202, %v3221
        %v3226 = vmul.f32 %v3204, %v3222
        %v3227 = vmul.f32 %v3206, %v3223
        %v3228 = vmul.f32 %v3208, %v3224
        %v3229 = vpack.c.bf16 %v3226, %v3225
        %v3230 = vpack.c.bf16 %v3228, %v3227
        %3231 = vrot.lane.b32.xlu0 %v2576, 32
        %v3232 = vpop.permute.xlu0 %3231
        %v3235 = vsel %vm2635, %v3229, 0
        %v3238 = vsel %vm2635, %v3230, 0
        %3240 = vmatprep.subr.bf16.mxu0 0
        %3241 = vmatpush1.bf16.msra.mxu0 %v3232
        %3242 = vmatprep.subr.bf16.mxu0 0
        %3243 = vmatpush1.bf16.msra.mxu0 0
        %3244 = vmatprep.subr.bf16.mxu0 0
        %3245 = vmatpush1.bf16.msra.mxu0 0
        %3246 = vmatprep.subr.bf16.mxu0 0
        %3247 = vmatpush1.bf16.msra.mxu0 0
        %3248 = vmatprep.subr.bf16.mxu0 0
        %3249 = vmatpush1.bf16.msra.mxu0 0
        %3250 = vmatprep.subr.bf16.mxu0 0
        %3251 = vmatpush1.bf16.msra.mxu0 0
        %3252 = vmatprep.subr.bf16.mxu0 0
        %3253 = vmatpush1.bf16.msra.mxu0 0
        %3254 = vmatprep.subr.bf16.mxu0 0
        %3255 = vmatpush1.bf16.msra.mxu0 0
        %3256 = vmatprep.subr.bf16.mxu0 0
        %3257 = vmatpush1.bf16.msra.mxu0 0
        %3258 = vmatprep.subr.bf16.mxu0 0
        %3259 = vmatpush1.bf16.msra.mxu0 0
        %3260 = vmatprep.subr.bf16.mxu0 0
        %3261 = vmatpush1.bf16.msra.mxu0 0
        %3262 = vmatprep.subr.bf16.mxu0 0
        %3263 = vmatpush1.bf16.msra.mxu0 0
        %3264 = vmatprep.subr.bf16.mxu0 0
        %3265 = vmatpush1.bf16.msra.mxu0 0
        %3266 = vmatprep.subr.bf16.mxu0 0
        %3267 = vmatpush1.bf16.msra.mxu0 0
        %3268 = vmatprep.subr.bf16.mxu0 0
        %3269 = vmatpush1.bf16.msra.mxu0 0
        %3270 = vmatprep.subr.bf16.mxu0 0
        %3271 = vmatpush1.bf16.msra.mxu0 0
        %3272 = vmatprep.mubr.bf16.mxu0 0
        %3273 = vmatmul.mubr.bf16.gmra.mrb[0].mxu0 %v3235
        %v3274 = vpop.f32.mrb[0].mxu0
        %v3275 = vadd.f32 0.0, %v3274
        %v3276 = vpop.f32.mrb[0].mxu0
        %v3277 = vpop.f32.mrb[0].mxu0
        %v3278 = vadd.f32 0.0, %v3277
        %v3279 = vpop.f32.mrb[0].mxu0
        %3280 = vmatprep.mubr.bf16.mxu0 0
        %3281 = vmatmul.mubr.bf16.gmra.mrb[0].mxu0 %v3238
        %v3282 = vpop.f32.mrb[0].mxu0
        %v3283 = vadd.f32 0.0, %v3282
        %v3284 = vpop.f32.mrb[0].mxu0
        %v3285 = vpop.f32.mrb[0].mxu0
        %v3286 = vadd.f32 0.0, %v3285
        %v3287 = vpop.f32.mrb[0].mxu0
        %3288 = vdwg.mxu0
        %3293 = vrot.lane.b32.xlu0 %v3275, 96
        %v3294 = vpop.permute.xlu0 %3293
        %3295 = vrot.lane.b32.xlu0 %v3278, 96
        %v3296 = vpop.permute.xlu0 %3295
        %3297 = vrot.lane.b32.xlu0 %v3283, 96
        %v3298 = vpop.permute.xlu0 %3297
        %3299 = vrot.lane.b32.xlu0 %v3286, 96
        %v3300 = vpop.permute.xlu0 %3299
        %3305 = vst.msk [vmem:[#allocation2] sm:$0xff] %vm2094, %v3294
        %3306 = vst.msk [vmem:[#allocation2 + $0x8] sm:$0xff] %vm2094, %v3296
        %3307 = vst.msk [vmem:[#allocation2 + $0x10] sm:$0xff] %vm2094, %v3298
        %3308 = vst.msk [vmem:[#allocation2 + $0x18] sm:$0xff] %vm2094, %v3300
        %v3309 = vld [vmem:[#allocation2] sm:$0xff]
        %v3310 = vld [vmem:[#allocation2 + $0x8] sm:$0xff]
        %v3311 = vld [vmem:[#allocation2 + $0x10] sm:$0xff]
        %v3312 = vld [vmem:[#allocation2 + $0x18] sm:$0xff]
        %v3313 = vpack.c.bf16 %v3310, %v3309
        %v3314 = vpack.c.bf16 %v3312, %v3311
        %v3316 = vlaneseq
        %v3317 = vshrl.u32 %v3316, 7
        %v3318 = vsub.s32 0, %v3317
        %v3319 = vrot.slane %v2572, %v3318
        %v3337 = vunpack.c.l.b16 %v2556
        %v3338 = vunpack.c.l.b16 %v2557
        %v3339 = vunpack.c.l.b16 %v2558
        %v3340 = vunpack.c.l.b16 %v2559
        %v3341 = vunpack.c.l.b16 %v2560
        %v3342 = vunpack.c.l.b16 %v2561
        %v3343 = vunpack.c.l.b16 %v2562
        %v3344 = vunpack.c.l.b16 %v2563
        %v3345 = vunpack.c.l.b16 %v2564
        %v3346 = vunpack.c.l.b16 %v2565
        %v3347 = vunpack.c.l.b16 %v2566
        %v3348 = vunpack.c.l.b16 %v2567
        %v3349 = vunpack.c.l.b16 %v2568
        %v3350 = vunpack.c.l.b16 %v2569
        %v3351 = vunpack.c.l.b16 %v2570
        %v3352 = vunpack.c.l.b16 %v2571
        %v3353 = vpack.c.b16 %v3338, %v3337
        %v3354 = vpack.c.b16 %v3340, %v3339
        %v3355 = vpack.c.b16 %v3342, %v3341
        %v3356 = vpack.c.b16 %v3344, %v3343
        %v3357 = vpack.c.b16 %v3346, %v3345
        %v3358 = vpack.c.b16 %v3348, %v3347
        %v3359 = vpack.c.b16 %v3350, %v3349
        %v3360 = vpack.c.b16 %v3352, %v3351
        %3369 = vmatprep.subr.bf16.mxu0 0
        %3370 = vmatpush1.bf16.msra.mxu0 %v3353
        %3371 = vmatprep.subr.bf16.mxu0 0
        %3372 = vmatpush1.bf16.msra.mxu0 %v3354
        %3373 = vmatprep.subr.bf16.mxu0 0
        %3374 = vmatpush1.bf16.msra.mxu0 %v3355
        %3375 = vmatprep.subr.bf16.mxu0 0
        %3376 = vmatpush1.bf16.msra.mxu0 %v3356
        %3377 = vmatprep.subr.bf16.mxu0 0
        %3378 = vmatpush1.bf16.msra.mxu0 %v3357
        %3379 = vmatprep.subr.bf16.mxu0 0
        %3380 = vmatpush1.bf16.msra.mxu0 %v3358
        %3381 = vmatprep.subr.bf16.mxu0 0
        %3382 = vmatpush1.bf16.msra.mxu0 %v3359
        %3383 = vmatprep.subr.bf16.mxu0 0
        %3384 = vmatpush1.bf16.msra.mxu0 %v3360
        %3385 = vmatprep.subr.bf16.mxu0 0
        %3386 = vmatpush1.bf16.msra.mxu0 0
        %3387 = vmatprep.subr.bf16.mxu0 0
        %3388 = vmatpush1.bf16.msra.mxu0 0
        %3389 = vmatprep.subr.bf16.mxu0 0
        %3390 = vmatpush1.bf16.msra.mxu0 0
        %3391 = vmatprep.subr.bf16.mxu0 0
        %3392 = vmatpush1.bf16.msra.mxu0 0
        %3393 = vmatprep.subr.bf16.mxu0 0
        %3394 = vmatpush1.bf16.msra.mxu0 0
        %3395 = vmatprep.subr.bf16.mxu0 0
        %3396 = vmatpush1.bf16.msra.mxu0 0
        %3397 = vmatprep.subr.bf16.mxu0 0
        %3398 = vmatpush1.bf16.msra.mxu0 0
        %3399 = vmatprep.subr.bf16.mxu0 0
        %3400 = vmatpush1.bf16.msra.mxu0 0
        %3401 = vmatprep.mubr.bf16.mxu0 0
        %3402 = vmatmul.mubr.bf16.gmra.mrb[0].mxu0 %v3313
        %v3403 = vpop.f32.mrb[0].mxu0
        %v3404 = vadd.f32 %v3319, %v3403
        %v3405 = vpop.f32.mrb[0].mxu0
        %v3406 = vpop.f32.mrb[0].mxu0
        %v3407 = vadd.f32 %v3319, %v3406
        %v3408 = vpop.f32.mrb[0].mxu0
        %3409 = vmatprep.mubr.bf16.mxu0 0
        %3410 = vmatmul.mubr.bf16.gmra.mrb[0].mxu0 %v3314
        %v3411 = vpop.f32.mrb[0].mxu0
        %v3412 = vadd.f32 %v3319, %v3411
        %v3413 = vpop.f32.mrb[0].mxu0
        %v3414 = vpop.f32.mrb[0].mxu0
        %v3415 = vadd.f32 %v3319, %v3414
        %v3416 = vpop.f32.mrb[0].mxu0
        %3417 = vdwg.mxu0
        %v3418 = vadd.f32 %v2274, %v3404
        %v3419 = vadd.f32 %v2275, %v3407
        %v3420 = vadd.f32 %v2276, %v3412
        %v3421 = vadd.f32 %v2277, %v3415
        %v3422 = vld [vmem:[%s16] sm:$0x1]
        %v3423 = vld [vmem:[%s17] sm:$0x1]
        %3424 = vadd.xlane.f32.xlu0 %v3418
        %v3425 = vpop.xlane.xlu0 %3424
        %3426 = vadd.xlane.f32.xlu0 %v3419
        %v3427 = vpop.xlane.xlu0 %3426
        %3428 = vadd.xlane.f32.xlu0 %v3420
        %v3429 = vpop.xlane.xlu0 %3428
        %3430 = vadd.xlane.f32.xlu0 %v3421
        %v3431 = vpop.xlane.xlu0 %3430
        %v3432 = vmul.f32 %v3425, %v894
        %v3433 = vmul.f32 %v3427, %v894
        %v3434 = vmul.f32 %v3429, %v894
        %v3435 = vmul.f32 %v3431, %v894
        %v3436 = vsub.f32 %v3418, %v3432
        %v3437 = vsub.f32 %v3419, %v3433
        %v3438 = vsub.f32 %v3420, %v3434
        %v3439 = vsub.f32 %v3421, %v3435
        %v3440 = vmul.f32 %v3436, %v3436
        %v3441 = vmul.f32 %v3437, %v3437
        %v3442 = vmul.f32 %v3438, %v3438
        %v3443 = vmul.f32 %v3439, %v3439
        %3444 = vadd.xlane.f32.xlu0 %v3440
        %v3445 = vpop.xlane.xlu0 %3444
        %3446 = vadd.xlane.f32.xlu0 %v3441
        %v3447 = vpop.xlane.xlu0 %3446
        %3448 = vadd.xlane.f32.xlu0 %v3442
        %v3449 = vpop.xlane.xlu0 %3448
        %3450 = vadd.xlane.f32.xlu0 %v3443
        %v3451 = vpop.xlane.xlu0 %3450
        %v3452 = vmul.f32 %v3445, %v894
        %v3453 = vmul.f32 %v3447, %v894
        %v3454 = vmul.f32 %v3449, %v894
        %v3455 = vmul.f32 %v3451, %v894
        %v3456 = vadd.f32 %v3452, 1e-05
        %v3457 = vadd.f32 %v3453, 1e-05
        %v3458 = vadd.f32 %v3454, 1e-05
        %v3459 = vadd.f32 %v3455, 1e-05
        %v3460 = vrsqrt.pop %v3456
        %v3461 = vrsqrt.pop %v3457
        %v3462 = vrsqrt.pop %v3458
        %v3463 = vrsqrt.pop %v3459
        %v3464 = vmul.f32 %v3436, %v3460
        %v3465 = vmul.f32 %v3437, %v3461
        %v3466 = vmul.f32 %v3438, %v3462
        %v3467 = vmul.f32 %v3439, %v3463
        %v3469 = vlaneseq
        %v3470 = vshrl.u32 %v3469, 7
        %v3471 = vsub.s32 0, %v3470
        %v3472 = vrot.slane %v3422, %v3471
        %v3474 = vmul.f32 %v3464, %v3472
        %v3475 = vmul.f32 %v3465, %v3472
        %v3476 = vmul.f32 %v3466, %v3472
        %v3477 = vmul.f32 %v3467, %v3472
        %v3479 = vlaneseq
        %v3480 = vshrl.u32 %v3479, 7
        %v3481 = vsub.s32 0, %v3480
        %v3482 = vrot.slane %v3423, %v3481
        %v3484 = vadd.f32 %v3474, %v3482
        %v3485 = vadd.f32 %v3475, %v3482
        %v3486 = vadd.f32 %v3476, %v3482
        %v3487 = vadd.f32 %v3477, %v3482
        %v3488 = vld [vmem:[#allocation17] sm:$0xff]
        %v3489 = vld [vmem:[#allocation17 + $0x8] sm:$0xff]
        %v3490 = vld [vmem:[#allocation17 + $0x10] sm:$0xff]
        %v3491 = vld [vmem:[#allocation17 + $0x18] sm:$0xff]
        %v3492 = vld [vmem:[#allocation17 + $0x20] sm:$0xff]
        %v3493 = vld [vmem:[#allocation17 + $0x28] sm:$0xff]
        %v3494 = vld [vmem:[#allocation17 + $0x30] sm:$0xff]
        %v3495 = vld [vmem:[#allocation17 + $0x38] sm:$0xff]
        %v3496 = vld [vmem:[#allocation17 + $0x40] sm:$0xff]
        %v3497 = vld [vmem:[#allocation17 + $0x48] sm:$0xff]
        %v3498 = vld [vmem:[#allocation17 + $0x50] sm:$0xff]
        %v3499 = vld [vmem:[#allocation17 + $0x58] sm:$0xff]
        %v3500 = vld [vmem:[#allocation17 + $0x60] sm:$0xff]
        %v3501 = vld [vmem:[#allocation17 + $0x68] sm:$0xff]
        %v3502 = vld [vmem:[#allocation17 + $0x70] sm:$0xff]
        %v3503 = vld [vmem:[#allocation17 + $0x78] sm:$0xff]
        %v3504 = vld [vmem:[#allocation17 + $0x80] sm:$0xff]
        %v3505 = vld [vmem:[#allocation17 + $0x88] sm:$0xff]
        %v3506 = vld [vmem:[#allocation17 + $0x90] sm:$0xff]
        %v3507 = vld [vmem:[#allocation17 + $0x98] sm:$0xff]
        %v3508 = vld [vmem:[#allocation17 + $0xa0] sm:$0xff]
        %v3509 = vld [vmem:[#allocation17 + $0xa8] sm:$0xff]
        %v3510 = vld [vmem:[#allocation17 + $0xb0] sm:$0xff]
        %v3511 = vld [vmem:[#allocation17 + $0xb8] sm:$0xff]
        %v3512 = vld [vmem:[#allocation17 + $0xc0] sm:$0xff]
        %v3513 = vld [vmem:[#allocation17 + $0xc8] sm:$0xff]
        %v3514 = vld [vmem:[#allocation17 + $0xd0] sm:$0xff]
        %v3515 = vld [vmem:[#allocation17 + $0xd8] sm:$0xff]
        %v3516 = vld [vmem:[#allocation17 + $0xe0] sm:$0xff]
        %v3517 = vld [vmem:[#allocation17 + $0xe8] sm:$0xff]
        %v3518 = vld [vmem:[#allocation17 + $0xf0] sm:$0xff]
        %v3519 = vld [vmem:[#allocation17 + $0xf8] sm:$0xff]
        %v3520 = vpack.c.bf16 %v3485, %v3484
        %v3521 = vpack.c.bf16 %v3487, %v3486
        %v3522 = vld [vmem:[%s19] sm:$0xf]
        %v3524 = vlaneseq
        %v3525 = vshrl.u32 %v3524, 7
        %v3526 = vsub.s32 0, %v3525
        %v3527 = vrot.slane %v3522, %v3526
        %v3528 = vlaneseq
        %v3529 = vshrl.u32 %v3528, 7
        %v3530 = vsub.s32 1, %v3529
        %v3531 = vrot.slane %v3522, %v3530
        %v3532 = vlaneseq
        %v3533 = vshrl.u32 %v3532, 7
        %v3534 = vsub.s32 2, %v3533
        %v3535 = vrot.slane %v3522, %v3534
        %v3536 = vlaneseq
        %v3537 = vshrl.u32 %v3536, 7
        %v3538 = vsub.s32 3, %v3537
        %v3539 = vrot.slane %v3522, %v3538
        %v3576 = vunpack.c.l.b16 %v3488
        %v3577 = vunpack.c.h.b16 %v3488
        %v3578 = vunpack.c.l.b16 %v3489
        %v3579 = vunpack.c.h.b16 %v3489
        %v3580 = vunpack.c.l.b16 %v3490
        %v3581 = vunpack.c.h.b16 %v3490
        %v3582 = vunpack.c.l.b16 %v3491
        %v3583 = vunpack.c.h.b16 %v3491
        %v3584 = vunpack.c.l.b16 %v3492
        %v3585 = vunpack.c.h.b16 %v3492
        %v3586 = vunpack.c.l.b16 %v3493
        %v3587 = vunpack.c.h.b16 %v3493
        %v3588 = vunpack.c.l.b16 %v3494
        %v3589 = vunpack.c.h.b16 %v3494
        %v3590 = vunpack.c.l.b16 %v3495
        %v3591 = vunpack.c.h.b16 %v3495
        %v3592 = vunpack.c.l.b16 %v3496
        %v3593 = vunpack.c.h.b16 %v3496
        %v3594 = vunpack.c.l.b16 %v3497
        %v3595 = vunpack.c.h.b16 %v3497
        %v3596 = vunpack.c.l.b16 %v3498
        %v3597 = vunpack.c.h.b16 %v3498
        %v3598 = vunpack.c.l.b16 %v3499
        %v3599 = vunpack.c.h.b16 %v3499
        %v3600 = vunpack.c.l.b16 %v3500
        %v3601 = vunpack.c.h.b16 %v3500
        %v3602 = vunpack.c.l.b16 %v3501
        %v3603 = vunpack.c.h.b16 %v3501
        %v3604 = vunpack.c.l.b16 %v3502
        %v3605 = vunpack.c.h.b16 %v3502
        %v3606 = vunpack.c.l.b16 %v3503
        %v3607 = vunpack.c.h.b16 %v3503
        %v3608 = vunpack.c.l.b16 %v3504
        %v3609 = vunpack.c.h.b16 %v3504
        %v3610 = vunpack.c.l.b16 %v3505
        %v3611 = vunpack.c.h.b16 %v3505
        %v3612 = vunpack.c.l.b16 %v3506
        %v3613 = vunpack.c.h.b16 %v3506
        %v3614 = vunpack.c.l.b16 %v3507
        %v3615 = vunpack.c.h.b16 %v3507
        %v3616 = vunpack.c.l.b16 %v3508
        %v3617 = vunpack.c.h.b16 %v3508
        %v3618 = vunpack.c.l.b16 %v3509
        %v3619 = vunpack.c.h.b16 %v3509
        %v3620 = vunpack.c.l.b16 %v3510
        %v3621 = vunpack.c.h.b16 %v3510
        %v3622 = vunpack.c.l.b16 %v3511
        %v3623 = vunpack.c.h.b16 %v3511
        %v3624 = vunpack.c.l.b16 %v3512
        %v3625 = vunpack.c.h.b16 %v3512
        %v3626 = vunpack.c.l.b16 %v3513
        %v3627 = vunpack.c.h.b16 %v3513
        %v3628 = vunpack.c.l.b16 %v3514
        %v3629 = vunpack.c.h.b16 %v3514
        %v3630 = vunpack.c.l.b16 %v3515
        %v3631 = vunpack.c.h.b16 %v3515
        %v3632 = vunpack.c.l.b16 %v3516
        %v3633 = vunpack.c.h.b16 %v3516
        %v3634 = vunpack.c.l.b16 %v3517
        %v3635 = vunpack.c.h.b16 %v3517
        %v3636 = vunpack.c.l.b16 %v3518
        %v3637 = vunpack.c.h.b16 %v3518
        %v3638 = vunpack.c.l.b16 %v3519
        %v3639 = vunpack.c.h.b16 %v3519
        %v3640 = vpack.c.b16 %v3580, %v3576
        %v3641 = vpack.c.b16 %v3581, %v3577
        %v3642 = vpack.c.b16 %v3582, %v3578
        %v3643 = vpack.c.b16 %v3583, %v3579
        %v3644 = vpack.c.b16 %v3588, %v3584
        %v3645 = vpack.c.b16 %v3589, %v3585
        %v3646 = vpack.c.b16 %v3590, %v3586
        %v3647 = vpack.c.b16 %v3591, %v3587
        %v3648 = vpack.c.b16 %v3596, %v3592
        %v3649 = vpack.c.b16 %v3597, %v3593
        %v3650 = vpack.c.b16 %v3598, %v3594
        %v3651 = vpack.c.b16 %v3599, %v3595
        %v3652 = vpack.c.b16 %v3604, %v3600
        %v3653 = vpack.c.b16 %v3605, %v3601
        %v3654 = vpack.c.b16 %v3606, %v3602
        %v3655 = vpack.c.b16 %v3607, %v3603
        %v3656 = vpack.c.b16 %v3612, %v3608
        %v3657 = vpack.c.b16 %v3613, %v3609
        %v3658 = vpack.c.b16 %v3614, %v3610
        %v3659 = vpack.c.b16 %v3615, %v3611
        %v3660 = vpack.c.b16 %v3620, %v3616
        %v3661 = vpack.c.b16 %v3621, %v3617
        %v3662 = vpack.c.b16 %v3622, %v3618
        %v3663 = vpack.c.b16 %v3623, %v3619
        %v3664 = vpack.c.b16 %v3628, %v3624
        %v3665 = vpack.c.b16 %v3629, %v3625
        %v3666 = vpack.c.b16 %v3630, %v3626
        %v3667 = vpack.c.b16 %v3631, %v3627
        %v3668 = vpack.c.b16 %v3636, %v3632
        %v3669 = vpack.c.b16 %v3637, %v3633
        %v3670 = vpack.c.b16 %v3638, %v3634
        %v3671 = vpack.c.b16 %v3639, %v3635
        %3704 = vmatprep.subr.bf16.mxu0 %v3641
        %3705 = vmatpush1.bf16.msra.mxu0 %v3640
        %3706 = vmatprep.subr.bf16.mxu0 %v3645
        %3707 = vmatpush1.bf16.msra.mxu0 %v3644
        %3708 = vmatprep.subr.bf16.mxu0 %v3649
        %3709 = vmatpush1.bf16.msra.mxu0 %v3648
        %3710 = vmatprep.subr.bf16.mxu0 %v3653
        %3711 = vmatpush1.bf16.msra.mxu0 %v3652
        %3712 = vmatprep.subr.bf16.mxu0 %v3657
        %3713 = vmatpush1.bf16.msra.mxu0 %v3656
        %3714 = vmatprep.subr.bf16.mxu0 %v3661
        %3715 = vmatpush1.bf16.msra.mxu0 %v3660
        %3716 = vmatprep.subr.bf16.mxu0 %v3665
        %3717 = vmatpush1.bf16.msra.mxu0 %v3664
        %3718 = vmatprep.subr.bf16.mxu0 %v3669
        %3719 = vmatpush1.bf16.msra.mxu0 %v3668
        %3720 = vmatprep.subr.bf16.mxu0 0
        %3721 = vmatpush1.bf16.msra.mxu0 0
        %3722 = vmatprep.subr.bf16.mxu0 0
        %3723 = vmatpush1.bf16.msra.mxu0 0
        %3724 = vmatprep.subr.bf16.mxu0 0
        %3725 = vmatpush1.bf16.msra.mxu0 0
        %3726 = vmatprep.subr.bf16.mxu0 0
        %3727 = vmatpush1.bf16.msra.mxu0 0
        %3728 = vmatprep.subr.bf16.mxu0 0
        %3729 = vmatpush1.bf16.msra.mxu0 0
        %3730 = vmatprep.subr.bf16.mxu0 0
        %3731 = vmatpush1.bf16.msra.mxu0 0
        %3732 = vmatprep.subr.bf16.mxu0 0
        %3733 = vmatpush1.bf16.msra.mxu0 0
        %3734 = vmatprep.subr.bf16.mxu0 0
        %3735 = vmatpush1.bf16.msra.mxu0 0
        %3736 = vmatprep.mubr.bf16.mxu0 0
        %3737 = vmatmul.mubr.bf16.gmra.mrb[0].mxu0 %v3520
        %v3738 = vpop.f32.mrb[0].mxu0
        %v3739 = vadd.f32 %v3527, %v3738
        %v3740 = vpop.f32.mrb[0].mxu0
        %v3741 = vadd.f32 %v3531, %v3740
        %v3742 = vpop.f32.mrb[0].mxu0
        %v3743 = vadd.f32 %v3527, %v3742
        %v3744 = vpop.f32.mrb[0].mxu0
        %v3745 = vadd.f32 %v3531, %v3744
        %3746 = vmatprep.mubr.bf16.mxu0 0
        %3747 = vmatmul.mubr.bf16.gmra.mrb[0].mxu0 %v3521
        %v3748 = vpop.f32.mrb[0].mxu0
        %v3749 = vadd.f32 %v3527, %v3748
        %v3750 = vpop.f32.mrb[0].mxu0
        %v3751 = vadd.f32 %v3531, %v3750
        %v3752 = vpop.f32.mrb[0].mxu0
        %v3753 = vadd.f32 %v3527, %v3752
        %v3754 = vpop.f32.mrb[0].mxu0
        %v3755 = vadd.f32 %v3531, %v3754
        %3756 = vdwg.mxu0
        %3757 = vmatprep.subr.bf16.mxu0 %v3643
        %3758 = vmatpush1.bf16.msra.mxu0 %v3642
        %3759 = vmatprep.subr.bf16.mxu0 %v3647
        %3760 = vmatpush1.bf16.msra.mxu0 %v3646
        %3761 = vmatprep.subr.bf16.mxu0 %v3651
        %3762 = vmatpush1.bf16.msra.mxu0 %v3650
        %3763 = vmatprep.subr.bf16.mxu0 %v3655
        %3764 = vmatpush1.bf16.msra.mxu0 %v3654
        %3765 = vmatprep.subr.bf16.mxu0 %v3659
        %3766 = vmatpush1.bf16.msra.mxu0 %v3658
        %3767 = vmatprep.subr.bf16.mxu0 %v3663
        %3768 = vmatpush1.bf16.msra.mxu0 %v3662
        %3769 = vmatprep.subr.bf16.mxu0 %v3667
        %3770 = vmatpush1.bf16.msra.mxu0 %v3666
        %3771 = vmatprep.subr.bf16.mxu0 %v3671
        %3772 = vmatpush1.bf16.msra.mxu0 %v3670
        %3773 = vmatprep.subr.bf16.mxu0 0
        %3774 = vmatpush1.bf16.msra.mxu0 0
        %3775 = vmatprep.subr.bf16.mxu0 0
        %3776 = vmatpush1.bf16.msra.mxu0 0
        %3777 = vmatprep.subr.bf16.mxu0 0
        %3778 = vmatpush1.bf16.msra.mxu0 0
        %3779 = vmatprep.subr.bf16.mxu0 0
        %3780 = vmatpush1.bf16.msra.mxu0 0
        %3781 = vmatprep.subr.bf16.mxu0 0
        %3782 = vmatpush1.bf16.msra.mxu0 0
        %3783 = vmatprep.subr.bf16.mxu0 0
        %3784 = vmatpush1.bf16.msra.mxu0 0
        %3785 = vmatprep.subr.bf16.mxu0 0
        %3786 = vmatpush1.bf16.msra.mxu0 0
        %3787 = vmatprep.subr.bf16.mxu0 0
        %3788 = vmatpush1.bf16.msra.mxu0 0
        %3789 = vmatprep.mubr.bf16.mxu0 0
        %3790 = vmatmul.mubr.bf16.gmra.mrb[0].mxu0 %v3520
        %v3791 = vpop.f32.mrb[0].mxu0
        %v3792 = vadd.f32 %v3535, %v3791
        %v3793 = vpop.f32.mrb[0].mxu0
        %v3794 = vadd.f32 %v3539, %v3793
        %v3795 = vpop.f32.mrb[0].mxu0
        %v3796 = vadd.f32 %v3535, %v3795
        %v3797 = vpop.f32.mrb[0].mxu0
        %v3798 = vadd.f32 %v3539, %v3797
        %3799 = vmatprep.mubr.bf16.mxu0 0
        %3800 = vmatmul.mubr.bf16.gmra.mrb[0].mxu0 %v3521
        %v3801 = vpop.f32.mrb[0].mxu0
        %v3802 = vadd.f32 %v3535, %v3801
        %v3803 = vpop.f32.mrb[0].mxu0
        %v3804 = vadd.f32 %v3539, %v3803
        %v3805 = vpop.f32.mrb[0].mxu0
        %v3806 = vadd.f32 %v3535, %v3805
        %v3807 = vpop.f32.mrb[0].mxu0
        %v3808 = vadd.f32 %v3539, %v3807
        %3809 = vdwg.mxu0
        %v3810 = vmax.f32 %v3739, 0.0
        %v3811 = vmax.f32 %v3741, 0.0
        %v3812 = vmax.f32 %v3792, 0.0
        %v3813 = vmax.f32 %v3794, 0.0
        %v3814 = vmax.f32 %v3743, 0.0
        %v3815 = vmax.f32 %v3745, 0.0
        %v3816 = vmax.f32 %v3796, 0.0
        %v3817 = vmax.f32 %v3798, 0.0
        %v3818 = vmax.f32 %v3749, 0.0
        %v3819 = vmax.f32 %v3751, 0.0
        %v3820 = vmax.f32 %v3802, 0.0
        %v3821 = vmax.f32 %v3804, 0.0
        %v3822 = vmax.f32 %v3753, 0.0
        %v3823 = vmax.f32 %v3755, 0.0
        %v3824 = vmax.f32 %v3806, 0.0
        %v3825 = vmax.f32 %v3808, 0.0
        %v3826 = vld [vmem:[#allocation18] sm:$0xf]
        %v3827 = vld [vmem:[#allocation18 + $0x4] sm:$0xf]
        %v3828 = vld [vmem:[#allocation18 + $0x8] sm:$0xf]
        %v3829 = vld [vmem:[#allocation18 + $0xc] sm:$0xf]
        %v3830 = vld [vmem:[#allocation18 + $0x10] sm:$0xf]
        %v3831 = vld [vmem:[#allocation18 + $0x14] sm:$0xf]
        %v3832 = vld [vmem:[#allocation18 + $0x18] sm:$0xf]
        %v3833 = vld [vmem:[#allocation18 + $0x1c] sm:$0xf]
        %v3834 = vld [vmem:[#allocation18 + $0x20] sm:$0xf]
        %v3835 = vld [vmem:[#allocation18 + $0x24] sm:$0xf]
        %v3836 = vld [vmem:[#allocation18 + $0x28] sm:$0xf]
        %v3837 = vld [vmem:[#allocation18 + $0x2c] sm:$0xf]
        %v3838 = vld [vmem:[#allocation18 + $0x30] sm:$0xf]
        %v3839 = vld [vmem:[#allocation18 + $0x34] sm:$0xf]
        %v3840 = vld [vmem:[#allocation18 + $0x38] sm:$0xf]
        %v3841 = vld [vmem:[#allocation18 + $0x3c] sm:$0xf]
        %v3842 = vld [vmem:[#allocation18 + $0x40] sm:$0xf]
        %v3843 = vld [vmem:[#allocation18 + $0x44] sm:$0xf]
        %v3844 = vld [vmem:[#allocation18 + $0x48] sm:$0xf]
        %v3845 = vld [vmem:[#allocation18 + $0x4c] sm:$0xf]
        %v3846 = vld [vmem:[#allocation18 + $0x50] sm:$0xf]
        %v3847 = vld [vmem:[#allocation18 + $0x54] sm:$0xf]
        %v3848 = vld [vmem:[#allocation18 + $0x58] sm:$0xf]
        %v3849 = vld [vmem:[#allocation18 + $0x5c] sm:$0xf]
        %v3850 = vld [vmem:[#allocation18 + $0x60] sm:$0xf]
        %v3851 = vld [vmem:[#allocation18 + $0x64] sm:$0xf]
        %v3852 = vld [vmem:[#allocation18 + $0x68] sm:$0xf]
        %v3853 = vld [vmem:[#allocation18 + $0x6c] sm:$0xf]
        %v3854 = vld [vmem:[#allocation18 + $0x70] sm:$0xf]
        %v3855 = vld [vmem:[#allocation18 + $0x74] sm:$0xf]
        %v3856 = vld [vmem:[#allocation18 + $0x78] sm:$0xf]
        %v3857 = vld [vmem:[#allocation18 + $0x7c] sm:$0xf]
        %v3858 = vld [vmem:[#allocation18 + $0x80] sm:$0xf]
        %v3859 = vld [vmem:[#allocation18 + $0x84] sm:$0xf]
        %v3860 = vld [vmem:[#allocation18 + $0x88] sm:$0xf]
        %v3861 = vld [vmem:[#allocation18 + $0x8c] sm:$0xf]
        %v3862 = vld [vmem:[#allocation18 + $0x90] sm:$0xf]
        %v3863 = vld [vmem:[#allocation18 + $0x94] sm:$0xf]
        %v3864 = vld [vmem:[#allocation18 + $0x98] sm:$0xf]
        %v3865 = vld [vmem:[#allocation18 + $0x9c] sm:$0xf]
        %v3866 = vld [vmem:[#allocation18 + $0xa0] sm:$0xf]
        %v3867 = vld [vmem:[#allocation18 + $0xa4] sm:$0xf]
        %v3868 = vld [vmem:[#allocation18 + $0xa8] sm:$0xf]
        %v3869 = vld [vmem:[#allocation18 + $0xac] sm:$0xf]
        %v3870 = vld [vmem:[#allocation18 + $0xb0] sm:$0xf]
        %v3871 = vld [vmem:[#allocation18 + $0xb4] sm:$0xf]
        %v3872 = vld [vmem:[#allocation18 + $0xb8] sm:$0xf]
        %v3873 = vld [vmem:[#allocation18 + $0xbc] sm:$0xf]
        %v3874 = vld [vmem:[#allocation18 + $0xc0] sm:$0xf]
        %v3875 = vld [vmem:[#allocation18 + $0xc4] sm:$0xf]
        %v3876 = vld [vmem:[#allocation18 + $0xc8] sm:$0xf]
        %v3877 = vld [vmem:[#allocation18 + $0xcc] sm:$0xf]
        %v3878 = vld [vmem:[#allocation18 + $0xd0] sm:$0xf]
        %v3879 = vld [vmem:[#allocation18 + $0xd4] sm:$0xf]
        %v3880 = vld [vmem:[#allocation18 + $0xd8] sm:$0xf]
        %v3881 = vld [vmem:[#allocation18 + $0xdc] sm:$0xf]
        %v3882 = vld [vmem:[#allocation18 + $0xe0] sm:$0xf]
        %v3883 = vld [vmem:[#allocation18 + $0xe4] sm:$0xf]
        %v3884 = vld [vmem:[#allocation18 + $0xe8] sm:$0xf]
        %v3885 = vld [vmem:[#allocation18 + $0xec] sm:$0xf]
        %v3886 = vld [vmem:[#allocation18 + $0xf0] sm:$0xf]
        %v3887 = vld [vmem:[#allocation18 + $0xf4] sm:$0xf]
        %v3888 = vld [vmem:[#allocation18 + $0xf8] sm:$0xf]
        %v3889 = vld [vmem:[#allocation18 + $0xfc] sm:$0xf]
        %v3890 = vpack.c.bf16 %v3814, %v3810
        %v3891 = vpack.c.bf16 %v3815, %v3811
        %v3892 = vpack.c.bf16 %v3816, %v3812
        %v3893 = vpack.c.bf16 %v3817, %v3813
        %v3894 = vpack.c.bf16 %v3822, %v3818
        %v3895 = vpack.c.bf16 %v3823, %v3819
        %v3896 = vpack.c.bf16 %v3824, %v3820
        %v3897 = vpack.c.bf16 %v3825, %v3821
        %v3898 = vld [vmem:[%s21] sm:$0x1]
        %v3900 = vlaneseq
        %v3901 = vshrl.u32 %v3900, 7
        %v3902 = vsub.s32 0, %v3901
        %v3903 = vrot.slane %v3898, %v3902
        %v3969 = vunpack.c.l.b16 %v3826
        %v3970 = vunpack.c.l.b16 %v3827
        %v3971 = vunpack.c.l.b16 %v3828
        %v3972 = vunpack.c.l.b16 %v3829
        %v3973 = vunpack.c.l.b16 %v3830
        %v3974 = vunpack.c.l.b16 %v3831
        %v3975 = vunpack.c.l.b16 %v3832
        %v3976 = vunpack.c.l.b16 %v3833
        %v3977 = vunpack.c.l.b16 %v3834
        %v3978 = vunpack.c.l.b16 %v3835
        %v3979 = vunpack.c.l.b16 %v3836
        %v3980 = vunpack.c.l.b16 %v3837
        %v3981 = vunpack.c.l.b16 %v3838
        %v3982 = vunpack.c.l.b16 %v3839
        %v3983 = vunpack.c.l.b16 %v3840
        %v3984 = vunpack.c.l.b16 %v3841
        %v3985 = vunpack.c.l.b16 %v3842
        %v3986 = vunpack.c.l.b16 %v3843
        %v3987 = vunpack.c.l.b16 %v3844
        %v3988 = vunpack.c.l.b16 %v3845
        %v3989 = vunpack.c.l.b16 %v3846
        %v3990 = vunpack.c.l.b16 %v3847
        %v3991 = vunpack.c.l.b16 %v3848
        %v3992 = vunpack.c.l.b16 %v3849
        %v3993 = vunpack.c.l.b16 %v3850
        %v3994 = vunpack.c.l.b16 %v3851
        %v3995 = vunpack.c.l.b16 %v3852
        %v3996 = vunpack.c.l.b16 %v3853
        %v3997 = vunpack.c.l.b16 %v3854
        %v3998 = vunpack.c.l.b16 %v3855
        %v3999 = vunpack.c.l.b16 %v3856
        %v4000 = vunpack.c.l.b16 %v3857
        %v4001 = vunpack.c.l.b16 %v3858
        %v4002 = vunpack.c.l.b16 %v3859
        %v4003 = vunpack.c.l.b16 %v3860
        %v4004 = vunpack.c.l.b16 %v3861
        %v4005 = vunpack.c.l.b16 %v3862
        %v4006 = vunpack.c.l.b16 %v3863
        %v4007 = vunpack.c.l.b16 %v3864
        %v4008 = vunpack.c.l.b16 %v3865
        %v4009 = vunpack.c.l.b16 %v3866
        %v4010 = vunpack.c.l.b16 %v3867
        %v4011 = vunpack.c.l.b16 %v3868
        %v4012 = vunpack.c.l.b16 %v3869
        %v4013 = vunpack.c.l.b16 %v3870
        %v4014 = vunpack.c.l.b16 %v3871
        %v4015 = vunpack.c.l.b16 %v3872
        %v4016 = vunpack.c.l.b16 %v3873
        %v4017 = vunpack.c.l.b16 %v3874
        %v4018 = vunpack.c.l.b16 %v3875
        %v4019 = vunpack.c.l.b16 %v3876
        %v4020 = vunpack.c.l.b16 %v3877
        %v4021 = vunpack.c.l.b16 %v3878
        %v4022 = vunpack.c.l.b16 %v3879
        %v4023 = vunpack.c.l.b16 %v3880
        %v4024 = vunpack.c.l.b16 %v3881
        %v4025 = vunpack.c.l.b16 %v3882
        %v4026 = vunpack.c.l.b16 %v3883
        %v4027 = vunpack.c.l.b16 %v3884
        %v4028 = vunpack.c.l.b16 %v3885
        %v4029 = vunpack.c.l.b16 %v3886
        %v4030 = vunpack.c.l.b16 %v3887
        %v4031 = vunpack.c.l.b16 %v3888
        %v4032 = vunpack.c.l.b16 %v3889
        %v4033 = vpack.c.b16 %v3970, %v3969
        %v4034 = vpack.c.b16 %v3972, %v3971
        %v4035 = vpack.c.b16 %v3974, %v3973
        %v4036 = vpack.c.b16 %v3976, %v3975
        %v4037 = vpack.c.b16 %v3978, %v3977
        %v4038 = vpack.c.b16 %v3980, %v3979
        %v4039 = vpack.c.b16 %v3982, %v3981
        %v4040 = vpack.c.b16 %v3984, %v3983
        %v4041 = vpack.c.b16 %v3986, %v3985
        %v4042 = vpack.c.b16 %v3988, %v3987
        %v4043 = vpack.c.b16 %v3990, %v3989
        %v4044 = vpack.c.b16 %v3992, %v3991
        %v4045 = vpack.c.b16 %v3994, %v3993
        %v4046 = vpack.c.b16 %v3996, %v3995
        %v4047 = vpack.c.b16 %v3998, %v3997
        %v4048 = vpack.c.b16 %v4000, %v3999
        %v4049 = vpack.c.b16 %v4002, %v4001
        %v4050 = vpack.c.b16 %v4004, %v4003
        %v4051 = vpack.c.b16 %v4006, %v4005
        %v4052 = vpack.c.b16 %v4008, %v4007
        %v4053 = vpack.c.b16 %v4010, %v4009
        %v4054 = vpack.c.b16 %v4012, %v4011
        %v4055 = vpack.c.b16 %v4014, %v4013
        %v4056 = vpack.c.b16 %v4016, %v4015
        %v4057 = vpack.c.b16 %v4018, %v4017
        %v4058 = vpack.c.b16 %v4020, %v4019
        %v4059 = vpack.c.b16 %v4022, %v4021
        %v4060 = vpack.c.b16 %v4024, %v4023
        %v4061 = vpack.c.b16 %v4026, %v4025
        %v4062 = vpack.c.b16 %v4028, %v4027
        %v4063 = vpack.c.b16 %v4030, %v4029
        %v4064 = vpack.c.b16 %v4032, %v4031
        %4097 = vmatprep.subr.bf16.mxu0 0
        %4098 = vmatpush1.bf16.msra.mxu0 %v4033
        %4099 = vmatprep.subr.bf16.mxu0 0
        %4100 = vmatpush1.bf16.msra.mxu0 %v4034
        %4101 = vmatprep.subr.bf16.mxu0 0
        %4102 = vmatpush1.bf16.msra.mxu0 %v4035
        %4103 = vmatprep.subr.bf16.mxu0 0
        %4104 = vmatpush1.bf16.msra.mxu0 %v4036
        %4105 = vmatprep.subr.bf16.mxu0 0
        %4106 = vmatpush1.bf16.msra.mxu0 %v4037
        %4107 = vmatprep.subr.bf16.mxu0 0
        %4108 = vmatpush1.bf16.msra.mxu0 %v4038
        %4109 = vmatprep.subr.bf16.mxu0 0
        %4110 = vmatpush1.bf16.msra.mxu0 %v4039
        %4111 = vmatprep.subr.bf16.mxu0 0
        %4112 = vmatpush1.bf16.msra.mxu0 %v4040
        %4113 = vmatprep.subr.bf16.mxu0 0
        %4114 = vmatpush1.bf16.msra.mxu0 %v4041
        %4115 = vmatprep.subr.bf16.mxu0 0
        %4116 = vmatpush1.bf16.msra.mxu0 %v4042
        %4117 = vmatprep.subr.bf16.mxu0 0
        %4118 = vmatpush1.bf16.msra.mxu0 %v4043
        %4119 = vmatprep.subr.bf16.mxu0 0
        %4120 = vmatpush1.bf16.msra.mxu0 %v4044
        %4121 = vmatprep.subr.bf16.mxu0 0
        %4122 = vmatpush1.bf16.msra.mxu0 %v4045
        %4123 = vmatprep.subr.bf16.mxu0 0
        %4124 = vmatpush1.bf16.msra.mxu0 %v4046
        %4125 = vmatprep.subr.bf16.mxu0 0
        %4126 = vmatpush1.bf16.msra.mxu0 %v4047
        %4127 = vmatprep.subr.bf16.mxu0 0
        %4128 = vmatpush1.bf16.msra.mxu0 %v4048
        %4129 = vmatprep.mubr.bf16.mxu0 %v3891
        %4130 = vmatmul.mubr.bf16.gmra.mrb[0].mxu0 %v3890
        %v4131 = vpop.f32.mrb[0].mxu0
        %v4132 = vadd.f32 %v3903, %v4131
        %v4133 = vpop.f32.mrb[0].mxu0
        %v4134 = vpop.f32.mrb[0].mxu0
        %v4135 = vadd.f32 %v3903, %v4134
        %v4136 = vpop.f32.mrb[0].mxu0
        %4137 = vmatprep.mubr.bf16.mxu0 %v3895
        %4138 = vmatmul.mubr.bf16.gmra.mrb[0].mxu0 %v3894
        %v4139 = vpop.f32.mrb[0].mxu0
        %v4140 = vadd.f32 %v3903, %v4139
        %v4141 = vpop.f32.mrb[0].mxu0
        %v4142 = vpop.f32.mrb[0].mxu0
        %v4143 = vadd.f32 %v3903, %v4142
        %v4144 = vpop.f32.mrb[0].mxu0
        %4145 = vdwg.mxu0
        %4146 = vmatprep.subr.bf16.mxu0 0
        %4147 = vmatpush1.bf16.msra.mxu0 %v4049
        %4148 = vmatprep.subr.bf16.mxu0 0
        %4149 = vmatpush1.bf16.msra.mxu0 %v4050
        %4150 = vmatprep.subr.bf16.mxu0 0
        %4151 = vmatpush1.bf16.msra.mxu0 %v4051
        %4152 = vmatprep.subr.bf16.mxu0 0
        %4153 = vmatpush1.bf16.msra.mxu0 %v4052
        %4154 = vmatprep.subr.bf16.mxu0 0
        %4155 = vmatpush1.bf16.msra.mxu0 %v4053
        %4156 = vmatprep.subr.bf16.mxu0 0
        %4157 = vmatpush1.bf16.msra.mxu0 %v4054
        %4158 = vmatprep.subr.bf16.mxu0 0
        %4159 = vmatpush1.bf16.msra.mxu0 %v4055
        %4160 = vmatprep.subr.bf16.mxu0 0
        %4161 = vmatpush1.bf16.msra.mxu0 %v4056
        %4162 = vmatprep.subr.bf16.mxu0 0
        %4163 = vmatpush1.bf16.msra.mxu0 %v4057
        %4164 = vmatprep.subr.bf16.mxu0 0
        %4165 = vmatpush1.bf16.msra.mxu0 %v4058
        %4166 = vmatprep.subr.bf16.mxu0 0
        %4167 = vmatpush1.bf16.msra.mxu0 %v4059
        %4168 = vmatprep.subr.bf16.mxu0 0
        %4169 = vmatpush1.bf16.msra.mxu0 %v4060
        %4170 = vmatprep.subr.bf16.mxu0 0
        %4171 = vmatpush1.bf16.msra.mxu0 %v4061
        %4172 = vmatprep.subr.bf16.mxu0 0
        %4173 = vmatpush1.bf16.msra.mxu0 %v4062
        %4174 = vmatprep.subr.bf16.mxu0 0
        %4175 = vmatpush1.bf16.msra.mxu0 %v4063
        %4176 = vmatprep.subr.bf16.mxu0 0
        %4177 = vmatpush1.bf16.msra.mxu0 %v4064
        %4178 = vmatprep.mubr.bf16.mxu0 %v3893
        %4179 = vmatmul.mubr.bf16.gmra.mrb[0].mxu0 %v3892
        %v4180 = vpop.f32.mrb[0].mxu0
        %v4181 = vadd.f32 %v4132, %v4180
        %v4182 = vpop.f32.mrb[0].mxu0
        %v4183 = vpop.f32.mrb[0].mxu0
        %v4184 = vadd.f32 %v4135, %v4183
        %v4185 = vpop.f32.mrb[0].mxu0
        %4186 = vmatprep.mubr.bf16.mxu0 %v3897
        %4187 = vmatmul.mubr.bf16.gmra.mrb[0].mxu0 %v3896
        %v4188 = vpop.f32.mrb[0].mxu0
        %v4189 = vadd.f32 %v4140, %v4188
        %v4190 = vpop.f32.mrb[0].mxu0
        %v4191 = vpop.f32.mrb[0].mxu0
        %v4192 = vadd.f32 %v4143, %v4191
        %v4193 = vpop.f32.mrb[0].mxu0
        %4194 = vdwg.mxu0
        %v4195 = vadd.f32 %v3484, %v4181
        %v4196 = vadd.f32 %v3485, %v4184
        %v4197 = vadd.f32 %v3486, %v4189
        %v4198 = vadd.f32 %v3487, %v4192
        %4199 = vst [vmem:[%s869] sm:$0xff] %v4195
        %4200 = vst [vmem:[%s869 + $0x8] sm:$0xff] %v4196
        %4201 = vst [vmem:[%s869 + $0x10] sm:$0xff] %v4197
        %4202 = vst [vmem:[%s869 + $0x18] sm:$0xff] %v4198
        %s4203 = sand.u32 %s540, 1
        %s4204 = scalar_lea.sflag [#allocation5], %s4203
        %s4205 = sand.u32 %s540, 1
        %s4206 = smul.addr %s4205, 32
        %s4207 = scalar_lea.vmem [#allocation20], %s4206
        // Predicated region
        $region149: #{tpu_custom_call.1} parent=107 // pred_check
          %p4208 = pneg %p550
        $region150: #{tpu_custom_call.1} parent=107 // pred_check_branch
          %4210 = sbr.rel (%p4208) target = $region152
        $region151: #{tpu_custom_call.1} parent=107 // pred_region
          %s4211 = smul.u32 4, %s51
          %s4213 = ssub.s32 512, 512
          %4214 = vsyncadd %s4204, %s4213
          %s4215 = smul.addr %s50, 4
          %s4216 = sadd.s32 %s4211, %s4215
          %s4217 = smul.addr %s4216, 128
          %s4218 = scalar_lea.hbm %s22, %s4217
          %s4219 = sshll.u32 %s4207, 4
          %s4220 = int_to_ptr.vmem [resolvable:$true] %s4219
          %4225 = dma.vmem_to_hbm [thread:$0]  %s4220, 512, %s4218, %s4204, 128, 128, 8
        $region152: #{tpu_custom_call.1} parent=107 // pred_fallthru
          _
      $region108: #{tpu_custom_call.1} parent=5 // pred_fallthru
        _
      %p4226 = scmp.le.s32.totalorder 2, %s41
      // Predicated region
      $region153: #{tpu_custom_call.1} parent=5 // pred_check
        %p4227 = pneg %p4226
      $region154: #{tpu_custom_call.1} parent=5 // pred_check_branch
        %4229 = sbr.rel (%p4227) target = $region156
      $region155: #{tpu_custom_call.1} parent=5 // pred_region
        %s4230 = ssub.s32 %s41, 2
        // Predicated region
        $region157: #{tpu_custom_call.1} parent=155 // pred_check
          %p4231 = pneg %p556
        $region158: #{tpu_custom_call.1} parent=155 // pred_check_branch
          %4233 = sbr.rel (%p4231) target = $region160
        $region159: #{tpu_custom_call.1} parent=155 // pred_region
          %s4234 = sand.u32 %s541, 1
          %s4235 = scalar_lea.sflag [#allocation5], %s4234
          %s4236 = sand.u32 %s541, 1
          %s4237 = smul.addr %s4236, 32
          %s4238 = scalar_lea.vmem [#allocation20], %s4237
          %4239 = dma.done %s4235, 512
        $region160: #{tpu_custom_call.1} parent=155 // pred_fallthru
          _
      $region156: #{tpu_custom_call.1} parent=5 // pred_fallthru
        _
    $region6: #{tpu_custom_call.1} parent=1 // loop_footer
      %s45 = sadd.s32 1, %s41
    $region7: #{tpu_custom_call.1} parent=1 // loop_footer_branch
      %40 = sbr.rel target = $region3
    $region8: #{tpu_custom_call.1} parent=1 // loop_exit
      _
    %4240 = vsyncpa [#allocation4], 1
    %s4241 = scalar_lea.sflag [#allocation4], 1
    %4242 = vsyncpa %s4241, 1
    %4243 = vsyncpa [#allocation7], 1
    %s4244 = scalar_lea.sflag [#allocation7], 1
    %4245 = vsyncpa %s4244, 1
    %4246 = vsyncpa [#allocation10], 1
    %4247 = vsyncpa [#allocation13], 1
    %4248 = vsyncpa [#allocation16], 1
    %4249 = vsyncpa [#allocation19], 1
    %4250 = vsyncpa [#allocation5], 1
    %s4251 = scalar_lea.sflag [#allocation5], 1
    %4252 = vsyncpa %s4251, 1

</llo_original>
